<compile_context>
chip_gen: v7x
topology: tpu7x:2x2x1
jax: 0.10.0
libtpu: 0.0.40
codegen_flags: <defaults>
</compile_context>

<pallas_src>
import jax
import jax.numpy as jnp
import numpy as np
from jax import lax
from jax.experimental import pallas as pl
from jax.experimental.pallas import tpu as pltpu

LN_EPS = 1e-5  # PyTorch nn.LayerNorm default eps


def _round_up(n, m):
    return ((n + m - 1) // m) * m


def _cdiv(a, b):
    return -(-a // b)


def _pad_axis(a, target, axis):
    pad = target - a.shape[axis]
    if pad <= 0:
        return a
    widths = [(0, 0)] * a.ndim
    widths[axis] = (0, pad)
    return jnp.pad(a, widths)


def _gelu_exact(x):
    # nn.GELU() default = exact (erf) formulation
    return 0.5 * x * (1.0 + jax.lax.erf(x * (2.0 ** -0.5)))


def _device_kind():
    try:
        return jax.devices()[0].device_kind.lower()
    except Exception:
        return ""


def _has_megacore(kind):
    # chips with 2 TensorCores: v4, v5p, v7x
    return any(t in kind for t in ("v4", "v5p", "v7", "7x"))


def _vmem_limit_bytes(kind):
    if ("v7" in kind) or ("7x" in kind):
        return 48 * 1024 * 1024            # 64 MiB physical -> leave headroom
    if any(t in kind for t in ("v4", "v5", "v6")):
        return 96 * 1024 * 1024            # 128 MiB physical, raise the default scope
    return None                            # unknown chip: keep compiler default


def qformer_upsample_kernel(x_ref, pos_ref, qh_ref, mask_ref,
                            n1g_ref, n1b_ref,
                            wkv_ref, bkv_ref,
                            wo_ref, bo_ref,
                            n2g_ref, n2b_ref,
                            w1_ref, b1_ref,
                            w2_ref, b2_ref,
                            out_ref):
    """Processes `bt` batch elements per grid step.

    Layout notes:
      * every activation/weight lane dim is zero-padded to a multiple of 128.
      * fused K/V projection is emitted transposed, (2W, N); heads split via
        free sublane slices/reshapes (Dh rows per head).
      * queries arrive pre-projected, pre-scaled, batch-tiled: (h, bt*Q, Dh).
      * mask_ref is the block-diagonal additive mask (bt*Q, bt*S): 0 on the
        per-batch diagonal blocks, -1e30 elsewhere.
    """
    f32 = jnp.float32
    bt, s_len, wp = x_ref.shape
    nhead, btq, dh = qh_ref.shape
    q_len = out_ref.shape[1]
    n_tok = bt * s_len
    w = wkv_ref.shape[0] // 2          # real (unpadded) model width
    mm_dt = wkv_ref.dtype              # weight / matmul stream dtype (f32 or bf16)
    attn_dt = qh_ref.dtype             # score / PV stream dtype (f32 when bf16 & Dh<16)
    inv_w = 1.0 / w

    # ---- norm1 (one-pass stats over the REAL width; padded lanes are zero) + pos
    # TODO(synk): one-pass E[x^2]-E[x]^2 can lose precision vs two-pass LN for
    # inputs with mean >> std; fine for unit-scale activations.
    x3 = x_ref[...].astype(f32)                                     # (bt, S, Wp)
    mu = jnp.sum(x3, axis=-1, keepdims=True) * inv_w
    var = jnp.maximum(jnp.sum(x3 * x3, axis=-1, keepdims=True) * inv_w - mu * mu, 0.0)
    kv3 = (x3 - mu) * lax.rsqrt(var + LN_EPS) * n1g_ref[...] + n1b_ref[...] + pos_ref[...]
    kv = kv3.reshape(n_tok, wp).astype(mm_dt)                       # (N, Wp), padded lanes = 0

    # ---- fused K+V projection: ONE matmul, transposed output (2W, N), single bias splat
    kvt = lax.dot_general(wkv_ref[...], kv, (((1,), (1,)), ((), ())),
                          preferred_element_type=f32) + bkv_ref[...]
    kh = kvt[:w].reshape(nhead, dh, n_tok).astype(attn_dt)          # free sublane head split
    vh = kvt[w:].reshape(nhead, dh, n_tok).astype(attn_dt)

    # ---- scores for ALL (batch-tiled query, key) pairs in one head-batched matmul;
    #      the block-diagonal mask keeps batch elements independent.
    s_all = lax.dot_general(qh_ref[...], kh, (((2,), (1,)), ((0,), (0,))),
                            preferred_element_type=f32)             # (h, bt*Q, bt*S)
    s_all = s_all + mask_ref[...]
    p = jnp.exp(s_all - jnp.max(s_all, axis=-1, keepdims=True))
    p = p * pl.reciprocal(jnp.sum(p, axis=-1, keepdims=True), approx=True)

    # ---- ONE PV matmul, emitted feature-major (h, Dh, bt*Q); head merge is layout-free
    ctx_t = lax.dot_general(vh, p.astype(attn_dt), (((2,), (2,)), ((0,), (0,))),
                            preferred_element_type=f32)             # (h, Dh, bt*Q)
    ctx_flat = ctx_t.reshape(w, btq).astype(mm_dt)                  # (W, bt*Q)

    # ---- output projection: ONE matmul with K = W (head reduction folded in)
    o = lax.dot_general(ctx_flat, wo_ref[...], (((0,), (0,)), ((), ())),
                        preferred_element_type=f32) + bo_ref[...]   # (bt*Q, Wp)

    # ---- norm2 + MLP (linear1 -> exact GELU -> dropout(identity) -> linear2)
    mu2 = jnp.sum(o, axis=-1, keepdims=True) * inv_w
    var2 = jnp.maximum(jnp.sum(o * o, axis=-1, keepdims=True) * inv_w - mu2 * mu2, 0.0)
    on = ((o - mu2) * lax.rsqrt(var2 + LN_EPS) * n2g_ref[...] + n2b_ref[...]).astype(mm_dt)

    h1 = jnp.dot(on, w1_ref[...], preferred_element_type=f32) + b1_ref[...]
    h1 = _gelu_exact(h1).astype(mm_dt)
    y = jnp.dot(h1, w2_ref[...], preferred_element_type=f32) + b2_ref[...]

    out_ref[...] = y.reshape(bt, q_len, wp).astype(out_ref.dtype)   # lane-dense (Wp) store


def qformer_upsample(x, params, num_queries, nhead, *, block_b=4,
                     param_dtype=None, cores_per_chip=None):
    """x: (S, B, W) seq-first (PyTorch convention).  Returns (num_queries, B, W).

    param_dtype=jnp.bfloat16 is recommended on v6e/v7x (halves weight DMA /
    residency, native bf16 MXU; accumulation stays f32).  Default matches the
    module dtype (f32) so results track the reference exactly.
    """
    S, B, W = x.shape
    if S == num_queries:                       # early-return branch of the module
        return x
    assert num_queries > S, "QFormerUpsample requires num_queries > input length"
    assert W % nhead == 0, "width must be divisible by nhead"
    Q = num_queries - S
    Dh = W // nhead
    F = params["lin1_w"].shape[0]
    Wp = _round_up(W, 128)
    Fp = _round_up(F, 128)
    f32 = jnp.float32
    dt = param_dtype if param_dtype is not None else x.dtype
    # bf16 packs 16 rows per sublane tile: with Dh < 16 the per-head tiles would be
    # half-populated and force packed relayouts, so keep the attention stream in f32.
    attn_dt = f32 if (np.dtype(dt) == np.dtype(jnp.bfloat16) and Dh < 16) else dt

    kind = _device_kind()
    tc = cores_per_chip if cores_per_chip is not None else (2 if _has_megacore(kind) else 1)

    # --- batch tiling: fewest, fattest steps (v5e/v6e); on 2-TC chips keep the step
    #     count an exact multiple of the core count for even megacore balance.
    #     (bt stays modest: the masked scores block scales with bt^2 * Q * S.)
    steps = _cdiv(B, max(1, block_b))
    if tc > 1:
        steps = _round_up(steps, tc)
    bt = _cdiv(B, steps)
    steps = _cdiv(B, bt)
    if tc > 1:
        steps = _round_up(steps, tc)
    n_steps = max(1, steps)
    Bp = bt * n_steps

    # --- activations: seq-first -> batch-major, pad batch & lane dims
    x_b = jnp.transpose(x, (1, 0, 2))                                        # (B, S, W)
    x_b = _pad_axis(_pad_axis(x_b, Bp, 0), Wp, 2).astype(dt)                 # (Bp, S, Wp)
    pos = _pad_axis(params["pos_emb"][:S, 0, :].astype(f32), Wp, 1)          # (S, Wp)

    # --- hoisted (batch-invariant) query projection; fold softmax scale; batch-tile
    wq, wk, wv = (params["in_proj_w"][:W],
                  params["in_proj_w"][W:2 * W],
                  params["in_proj_w"][2 * W:])
    bq, bk, bv = (params["in_proj_b"][:W],
                  params["in_proj_b"][W:2 * W],
                  params["in_proj_b"][2 * W:])
    qry = params["query_1d"][S:, 0, :]                                       # (Q, W)
    qh = ((qry @ wq.T + bq) * (Dh ** -0.5)).reshape(Q, nhead, Dh)
    qh = jnp.transpose(qh, (1, 0, 2))                                        # (nhead, Q, Dh)
    qh = jnp.tile(qh, (1, bt, 1)).astype(attn_dt)                            # (nhead, bt*Q, Dh)

    # --- block-diagonal additive attention mask (batch independence inside one step)
    eye = jnp.eye(bt, dtype=f32)
    mask = jnp.where(eye > 0, 0.0, -1e30).astype(f32)                        # (bt, bt)
    mask = jnp.repeat(jnp.repeat(mask, Q, axis=0), S, axis=1)                # (bt*Q, bt*S)

    # --- fused K/V weights: one (2W, Wp) projection, single (2W, 1) bias
    wkv = _pad_axis(jnp.concatenate([wk, wv], axis=0), Wp, 1).astype(dt)     # (2W, Wp)
    bkv = jnp.concatenate([bk, bv], axis=0).reshape(2 * W, 1).astype(f32)    # (2W, 1)

    # --- output projection (plain (W, Wp): head reduction folded into one matmul)
    wo = _pad_axis(params["out_proj_w"].T, Wp, 1).astype(dt)                 # (W, Wp)
    bo = _pad_axis(params["out_proj_b"].reshape(1, W).astype(f32), Wp, 1)

    # --- layernorm params (zero-padded so padded lanes stay exactly zero)
    g1 = _pad_axis(params["ln1_g"].reshape(1, W).astype(f32), Wp, 1)
    be1 = _pad_axis(params["ln1_b"].reshape(1, W).astype(f32), Wp, 1)
    g2 = _pad_axis(params["ln2_g"].reshape(1, W).astype(f32), Wp, 1)
    be2 = _pad_axis(params["ln2_b"].reshape(1, W).astype(f32), Wp, 1)

    # --- MLP weights, padded to (Wp, Fp) / (Fp, Wp)
    w1 = _pad_axis(_pad_axis(params["lin1_w"].T, Wp, 0), Fp, 1).astype(dt)
    b1m = _pad_axis(params["lin1_b"].reshape(1, F).astype(f32), Fp, 1)
    w2 = _pad_axis(_pad_axis(params["lin2_w"].T, Fp, 0), Wp, 1).astype(dt)
    b2m = _pad_axis(params["lin2_b"].reshape(1, W).astype(f32), Wp, 1)

    # TODO(synk): at production widths (W~1024, F~4096) additionally tile the MLP over
    # an "arbitrary" Fp grid axis (pl.when-initialized VMEM accumulator) and add a Q
    # tile axis if num_queries is large, so weights/intermediates stay within VMEM.

    def _call(single_buffer_consts):
        def const(shape):
            nd = len(shape)
            if single_buffer_consts:
                # constant-index blocks: single-buffer to halve resident weight VMEM
                return pl.BlockSpec(shape, lambda b: (0,) * nd,
                                    pipeline_mode=pl.Buffered(1))
            return pl.BlockSpec(shape, lambda b: (0,) * nd)

        grid_spec = pltpu.PrefetchScalarGridSpec(
            num_scalar_prefetch=0,
            grid=(n_steps,),
            in_specs=[
                pl.BlockSpec((bt, S, Wp), lambda b: (b, 0, 0)),     # x
                const((S, Wp)),                                     # pos emb (padded)
                const((nhead, bt * Q, Dh)),                         # pre-projected queries
                const((bt * Q, bt * S)),                            # block-diag mask
                const((1, Wp)), const((1, Wp)),                     # norm1 gamma/beta
                const((2 * W, Wp)), const((2 * W, 1)),              # fused K/V weight, bias
                const((W, Wp)), const((1, Wp)),                     # out proj, bias
                const((1, Wp)), const((1, Wp)),                     # norm2 gamma/beta
                const((Wp, Fp)), const((1, Fp)),                    # linear1, bias
                const((Fp, Wp)), const((1, Wp)),                    # linear2, bias
            ],
            out_specs=pl.BlockSpec((bt, Q, Wp), lambda b: (b, 0, 0)),
        )
        return pl.pallas_call(
            qformer_upsample_kernel,
            out_shape=jax.ShapeDtypeStruct((Bp, Q, Wp), x.dtype),
            grid_spec=grid_spec,
            compiler_params=pltpu.CompilerParams(
                dimension_semantics=("parallel",),
                vmem_limit_bytes=_vmem_limit_bytes(kind)),
        )(x_b, pos, qh, mask, g1, be1, wkv, bkv, wo, bo, g2, be2, w1, b1m, w2, b2m)

    try:
        out_pad = _call(True)
    except Exception:
        # pl.Buffered / pipeline_mode not supported by this JAX build: default buffering.
        out_pad = _call(False)

    x2 = jnp.transpose(out_pad[:B, :, :W], (1, 0, 2)).astype(x.dtype)        # (Q, B, W)
    return jnp.concatenate([x, x2], axis=0)                                  # torch.cat dim=0


def init_params(key, width, nhead, num_queries, mlp_ratio=4.0, dtype=jnp.float32):
    """Deterministic synthetic parameters matching the module's __init__ shapes."""
    F_dim = int(width * mlp_ratio)
    scale = width ** -0.5
    ks = jax.random.split(key, 10)
    return dict(
        query_1d=scale * jax.random.normal(ks[0], (num_queries, 1, width), dtype),
        pos_emb=scale * jax.random.normal(ks[1], (num_queries, 1, width), dtype),
        in_proj_w=0.02 * jax.random.normal(ks[2], (3 * width, width), dtype),
        in_proj_b=0.02 * jax.random.normal(ks[3], (3 * width,), dtype),
        out_proj_w=0.02 * jax.random.normal(ks[4], (width, width), dtype),
        out_proj_b=0.02 * jax.random.normal(ks[5], (width,), dtype),
        lin1_w=0.02 * jax.random.normal(ks[6], (F_dim, width), dtype),
        lin1_b=0.02 * jax.random.normal(ks[7], (F_dim,), dtype),
        lin2_w=0.02 * jax.random.normal(ks[8], (width, F_dim), dtype),
        lin2_b=0.02 * jax.random.normal(ks[9], (width,), dtype),
        ln1_g=jnp.ones((width,), dtype), ln1_b=jnp.zeros((width,), dtype),
        ln2_g=jnp.ones((width,), dtype), ln2_b=jnp.zeros((width,), dtype),
    )


def reference(x, params, num_queries, nhead):
    """Pure-JAX reference of the PyTorch forward pass (eval mode)."""
    S, B, W = x.shape
    if S == num_queries:
        return x
    Qn = num_queries - S
    Dh = W // nhead

    def ln(z, g, b):
        mu = z.mean(-1, keepdims=True)
        var = ((z - mu) ** 2).mean(-1, keepdims=True)
        return (z - mu) / jnp.sqrt(var + LN_EPS) * g + b

    wq, wk, wv = (params["in_proj_w"][:W],
                  params["in_proj_w"][W:2 * W],
                  params["in_proj_w"][2 * W:])
    bq, bk, bv = (params["in_proj_b"][:W],
                  params["in_proj_b"][W:2 * W],
                  params["in_proj_b"][2 * W:])

    kv = ln(x, params["ln1_g"], params["ln1_b"]) + params["pos_emb"][:S]     # (S, B, W)
    qry = params["query_1d"][S:, 0, :]                                       # (Qn, W)

    q = qry @ wq.T + bq                                                      # (Qn, W)
    k = kv @ wk.T + bk                                                       # (S, B, W)
    v = kv @ wv.T + bv

    qh = q.reshape(Qn, nhead, Dh)
    kh = k.reshape(S, B, nhead, Dh)
    vh = v.reshape(S, B, nhead, Dh)
    scores = jnp.einsum('qhd,sbhd->bhqs', qh, kh) * (Dh ** -0.5)
    p = jax.nn.softmax(scores, axis=-1)
    o = jnp.einsum('bhqs,sbhd->bqhd', p, vh).reshape(B, Qn, W)
    o = o @ params["out_proj_w"].T + params["out_proj_b"]
    o = ln(o, params["ln2_g"], params["ln2_b"])
    h1 = _gelu_exact(o @ params["lin1_w"].T + params["lin1_b"])
    y = h1 @ params["lin2_w"].T + params["lin2_b"]
    x2 = jnp.transpose(y, (1, 0, 2))                                         # (Qn, B, W)
    return jnp.concatenate([x, x2], axis=0)


if __name__ == "__main__":
    width, nhead, num_queries = 32, 4, 16
    S, B = 8, 4

    key = jax.random.PRNGKey(0)
    kp, kx = jax.random.split(key)
    params = init_params(kp, width, nhead, num_queries)
    x = jax.random.normal(kx, (S, B, width), jnp.float32)        # (seq, batch, width)

    # f32 path (asserted against the pure-JAX reference)
    out = jax.block_until_ready(qformer_upsample(x, params, num_queries, nhead))
    ref = reference(x, params, num_queries, nhead)
    assert out.shape == (num_queries, B, width), out.shape
    np.testing.assert_allclose(np.asarray(out), np.asarray(ref), rtol=2e-3, atol=2e-3)

    # early-return branch (input already has num_queries tokens)
    x_full = jax.random.normal(kx, (num_queries, B, width), jnp.float32)
    np.testing.assert_array_equal(
        np.asarray(qformer_upsample(x_full, params, num_queries, nhead)),
        np.asarray(x_full))

    # forced 2-step even grid (megacore-style bt=2 path, exercises the block-diag mask)
    out_mc = jax.block_until_ready(
        qformer_upsample(x, params, num_queries, nhead, cores_per_chip=2))
    np.testing.assert_allclose(np.asarray(out_mc), np.asarray(ref), rtol=2e-3, atol=2e-3)

    # bf16 weight / activation-stream path (v6e / v7x DMA + MXU optimization)
    out_bf16 = jax.block_until_ready(
        qformer_upsample(x, params, num_queries, nhead, param_dtype=jnp.bfloat16))
    np.testing.assert_allclose(np.asarray(out_bf16), np.asarray(ref), rtol=5e-2, atol=5e-2)

    print("KERNEL_OK")
</pallas_src>

<mosaic_0001>
module attributes {stable_mosaic.version = 11 : i64} {
  func.func @qformer_upsample_kernel(%arg0: i32, %arg1: memref<4x8x128xf32, #tpu.memory_space<vmem>>, %arg2: memref<8x128xf32, #tpu.memory_space<vmem>>, %arg3: memref<4x32x8xf32, #tpu.memory_space<vmem>>, %arg4: memref<32x32xf32, #tpu.memory_space<vmem>>, %arg5: memref<1x128xf32, #tpu.memory_space<vmem>>, %arg6: memref<1x128xf32, #tpu.memory_space<vmem>>, %arg7: memref<64x128xf32, #tpu.memory_space<vmem>>, %arg8: memref<64x1xf32, #tpu.memory_space<vmem>>, %arg9: memref<32x128xf32, #tpu.memory_space<vmem>>, %arg10: memref<1x128xf32, #tpu.memory_space<vmem>>, %arg11: memref<1x128xf32, #tpu.memory_space<vmem>>, %arg12: memref<1x128xf32, #tpu.memory_space<vmem>>, %arg13: memref<128x128xf32, #tpu.memory_space<vmem>>, %arg14: memref<1x128xf32, #tpu.memory_space<vmem>>, %arg15: memref<128x128xf32, #tpu.memory_space<vmem>>, %arg16: memref<1x128xf32, #tpu.memory_space<vmem>>, %arg17: memref<4x8x128xf32, #tpu.memory_space<vmem>>) attributes {dimension_semantics = [#tpu.dimension_semantics<parallel>], iteration_bounds = array<i64: 1>, scalar_prefetch = 0 : i64, scratch_operands = 0 : i64, tpu.core_type = #tpu.core_type<tc>, window_params = [{transform_indices = @transform_0, window_bounds = array<i64: 4, 8, 128>}, {pipeline_mode = #tpu.pipeline_mode<synchronous>, transform_indices = @transform_1, window_bounds = array<i64: 8, 128>}, {pipeline_mode = #tpu.pipeline_mode<synchronous>, transform_indices = @transform_2, window_bounds = array<i64: 4, 32, 8>}, {pipeline_mode = #tpu.pipeline_mode<synchronous>, transform_indices = @transform_3, window_bounds = array<i64: 32, 32>}, {pipeline_mode = #tpu.pipeline_mode<synchronous>, transform_indices = @transform_4, window_bounds = array<i64: 1, 128>}, {pipeline_mode = #tpu.pipeline_mode<synchronous>, transform_indices = @transform_5, window_bounds = array<i64: 1, 128>}, {pipeline_mode = #tpu.pipeline_mode<synchronous>, transform_indices = @transform_6, window_bounds = array<i64: 64, 128>}, {pipeline_mode = #tpu.pipeline_mode<synchronous>, transform_indices = @transform_7, window_bounds = array<i64: 64, 1>}, {pipeline_mode = #tpu.pipeline_mode<synchronous>, transform_indices = @transform_8, window_bounds = array<i64: 32, 128>}, {pipeline_mode = #tpu.pipeline_mode<synchronous>, transform_indices = @transform_9, window_bounds = array<i64: 1, 128>}, {pipeline_mode = #tpu.pipeline_mode<synchronous>, transform_indices = @transform_10, window_bounds = array<i64: 1, 128>}, {pipeline_mode = #tpu.pipeline_mode<synchronous>, transform_indices = @transform_11, window_bounds = array<i64: 1, 128>}, {pipeline_mode = #tpu.pipeline_mode<synchronous>, transform_indices = @transform_12, window_bounds = array<i64: 128, 128>}, {pipeline_mode = #tpu.pipeline_mode<synchronous>, transform_indices = @transform_13, window_bounds = array<i64: 1, 128>}, {pipeline_mode = #tpu.pipeline_mode<synchronous>, transform_indices = @transform_14, window_bounds = array<i64: 128, 128>}, {pipeline_mode = #tpu.pipeline_mode<synchronous>, transform_indices = @transform_15, window_bounds = array<i64: 1, 128>}, {transform_indices = @transform_16, window_bounds = array<i64: 4, 8, 128>}]} {
    %c0 = arith.constant 0 : index
    %c0_0 = arith.constant 0 : index
    %c0_1 = arith.constant 0 : index
    %0 = vector.load %arg1[%c0, %c0_0, %c0_1] : memref<4x8x128xf32, #tpu.memory_space<vmem>>, vector<4x8x128xf32>
    %cst = arith.constant dense<0.000000e+00> : vector<4x8xf32>
    %1 = vector.multi_reduction <add>, %0, %cst [2] : vector<4x8x128xf32> to vector<4x8xf32>
    %2 = vector.shape_cast %1 : vector<4x8xf32> to vector<4x8x1xf32>
    %cst_2 = arith.constant 3.125000e-02 : f32
    %3 = vector.broadcast %cst_2 : f32 to vector<4x8x1xf32>
    %4 = arith.mulf %2, %3 : vector<4x8x1xf32>
    %5 = arith.mulf %0, %0 : vector<4x8x128xf32>
    %cst_3 = arith.constant dense<0.000000e+00> : vector<4x8xf32>
    %6 = vector.multi_reduction <add>, %5, %cst_3 [2] : vector<4x8x128xf32> to vector<4x8xf32>
    %7 = vector.shape_cast %6 : vector<4x8xf32> to vector<4x8x1xf32>
    %cst_4 = arith.constant 3.125000e-02 : f32
    %8 = vector.broadcast %cst_4 : f32 to vector<4x8x1xf32>
    %9 = arith.mulf %7, %8 : vector<4x8x1xf32>
    %10 = arith.mulf %4, %4 : vector<4x8x1xf32>
    %11 = arith.subf %9, %10 : vector<4x8x1xf32>
    %cst_5 = arith.constant 0.000000e+00 : f32
    %12 = vector.broadcast %cst_5 : f32 to vector<4x8x1xf32>
    %13 = arith.maximumf %11, %12 : vector<4x8x1xf32>
    %14 = vector.broadcast %4 : vector<4x8x1xf32> to vector<4x8x128xf32>
    %15 = arith.subf %0, %14 : vector<4x8x128xf32>
    %cst_6 = arith.constant 9.99999974E-6 : f32
    %16 = vector.broadcast %cst_6 : f32 to vector<4x8x1xf32>
    %17 = arith.addf %13, %16 : vector<4x8x1xf32>
    %18 = math.rsqrt %17 : vector<4x8x1xf32>
    %19 = vector.broadcast %18 : vector<4x8x1xf32> to vector<4x8x128xf32>
    %20 = arith.mulf %15, %19 : vector<4x8x128xf32>
    %c0_7 = arith.constant 0 : index
    %c0_8 = arith.constant 0 : index
    %21 = vector.load %arg5[%c0_7, %c0_8] : memref<1x128xf32, #tpu.memory_space<vmem>>, vector<1x128xf32>
    %22 = vector.shape_cast %21 : vector<1x128xf32> to vector<1x1x128xf32>
    %23 = vector.broadcast %22 : vector<1x1x128xf32> to vector<4x8x128xf32>
    %24 = arith.mulf %20, %23 : vector<4x8x128xf32>
    %c0_9 = arith.constant 0 : index
    %c0_10 = arith.constant 0 : index
    %25 = vector.load %arg6[%c0_9, %c0_10] : memref<1x128xf32, #tpu.memory_space<vmem>>, vector<1x128xf32>
    %26 = vector.shape_cast %25 : vector<1x128xf32> to vector<1x1x128xf32>
    %27 = vector.broadcast %26 : vector<1x1x128xf32> to vector<4x8x128xf32>
    %28 = arith.addf %24, %27 : vector<4x8x128xf32>
    %c0_11 = arith.constant 0 : index
    %c0_12 = arith.constant 0 : index
    %29 = vector.load %arg2[%c0_11, %c0_12] : memref<8x128xf32, #tpu.memory_space<vmem>>, vector<8x128xf32>
    %30 = vector.shape_cast %29 : vector<8x128xf32> to vector<1x8x128xf32>
    %31 = vector.broadcast %30 : vector<1x8x128xf32> to vector<4x8x128xf32>
    %32 = arith.addf %28, %31 : vector<4x8x128xf32>
    %33 = vector.shape_cast %32 : vector<4x8x128xf32> to vector<32x128xf32>
    %c0_13 = arith.constant 0 : index
    %c0_14 = arith.constant 0 : index
    %34 = vector.load %arg7[%c0_13, %c0_14] : memref<64x128xf32, #tpu.memory_space<vmem>>, vector<64x128xf32>
    %cst_15 = arith.constant dense<0.000000e+00> : vector<64x32xf32>
    %35 = tpu.matmul %34, %33, %cst_15 {dimension_numbers = #tpu.dot_dimension_numbers<[1], [1], [0], [0], [0, 0, 1, 0], [], []>} : vector<64x128xf32>, vector<32x128xf32>, vector<64x32xf32> -> vector<64x32xf32>
    %c0_16 = arith.constant 0 : index
    %c0_17 = arith.constant 0 : index
    %36 = vector.load %arg8[%c0_16, %c0_17] : memref<64x1xf32, #tpu.memory_space<vmem>>, vector<64x1xf32>
    %37 = vector.broadcast %36 : vector<64x1xf32> to vector<64x32xf32>
    %38 = arith.addf %35, %37 : vector<64x32xf32>
    %39 = vector.extract_strided_slice %38 {offsets = [0, 0], sizes = [32, 32], strides = [1, 1]} : vector<64x32xf32> to vector<32x32xf32>
    %40 = vector.shape_cast %39 : vector<32x32xf32> to vector<4x8x32xf32>
    %41 = vector.extract_strided_slice %38 {offsets = [32, 0], sizes = [32, 32], strides = [1, 1]} : vector<64x32xf32> to vector<32x32xf32>
    %42 = vector.shape_cast %41 : vector<32x32xf32> to vector<4x8x32xf32>
    %c0_18 = arith.constant 0 : index
    %c0_19 = arith.constant 0 : index
    %c0_20 = arith.constant 0 : index
    %43 = vector.load %arg3[%c0_18, %c0_19, %c0_20] : memref<4x32x8xf32, #tpu.memory_space<vmem>>, vector<4x32x8xf32>
    %cst_21 = arith.constant dense<0.000000e+00> : vector<4x32x32xf32>
    %44 = tpu.matmul %43, %40, %cst_21 {dimension_numbers = #tpu.dot_dimension_numbers<[2], [1], [1], [2], [0, 0, 0, 1, 1, 2], [0], [0]>} : vector<4x32x8xf32>, vector<4x8x32xf32>, vector<4x32x32xf32> -> vector<4x32x32xf32>
    %c0_22 = arith.constant 0 : index
    %c0_23 = arith.constant 0 : index
    %45 = vector.load %arg4[%c0_22, %c0_23] : memref<32x32xf32, #tpu.memory_space<vmem>>, vector<32x32xf32>
    %46 = vector.shape_cast %45 : vector<32x32xf32> to vector<1x32x32xf32>
    %47 = vector.broadcast %46 : vector<1x32x32xf32> to vector<4x32x32xf32>
    %48 = arith.addf %44, %47 : vector<4x32x32xf32>
    %cst_24 = arith.constant dense<0xFF800000> : vector<4x32xf32>
    %49 = vector.multi_reduction <maximumf>, %48, %cst_24 [2] : vector<4x32x32xf32> to vector<4x32xf32>
    %50 = vector.shape_cast %49 : vector<4x32xf32> to vector<4x32x1xf32>
    %51 = vector.broadcast %50 : vector<4x32x1xf32> to vector<4x32x32xf32>
    %52 = arith.subf %48, %51 : vector<4x32x32xf32>
    %53 = math.exp %52 : vector<4x32x32xf32>
    %cst_25 = arith.constant dense<0.000000e+00> : vector<4x32xf32>
    %54 = vector.multi_reduction <add>, %53, %cst_25 [2] : vector<4x32x32xf32> to vector<4x32xf32>
    %55 = vector.shape_cast %54 : vector<4x32xf32> to vector<4x32x1xf32>
    %56 = tpu.reciprocal %55 {approx = true} : vector<4x32x1xf32> -> vector<4x32x1xf32>
    %57 = vector.broadcast %56 : vector<4x32x1xf32> to vector<4x32x32xf32>
    %58 = arith.mulf %53, %57 : vector<4x32x32xf32>
    %cst_26 = arith.constant dense<0.000000e+00> : vector<4x8x32xf32>
    %59 = tpu.matmul %42, %58, %cst_26 {dimension_numbers = #tpu.dot_dimension_numbers<[2], [2], [1], [1], [0, 0, 0, 1, 1, 1], [0], [0]>} : vector<4x8x32xf32>, vector<4x32x32xf32>, vector<4x8x32xf32> -> vector<4x8x32xf32>
    %60 = vector.shape_cast %59 : vector<4x8x32xf32> to vector<32x32xf32>
    %c0_27 = arith.constant 0 : index
    %c0_28 = arith.constant 0 : index
    %61 = vector.load %arg9[%c0_27, %c0_28] : memref<32x128xf32, #tpu.memory_space<vmem>>, vector<32x128xf32>
    %cst_29 = arith.constant dense<0.000000e+00> : vector<32x128xf32>
    %62 = tpu.matmul %60, %61, %cst_29 {dimension_numbers = #tpu.dot_dimension_numbers<[0], [0], [1], [1], [0, 1, 1, 1], [], []>} : vector<32x32xf32>, vector<32x128xf32>, vector<32x128xf32> -> vector<32x128xf32>
    %c0_30 = arith.constant 0 : index
    %c0_31 = arith.constant 0 : index
    %63 = vector.load %arg10[%c0_30, %c0_31] : memref<1x128xf32, #tpu.memory_space<vmem>>, vector<1x128xf32>
    %64 = vector.broadcast %63 : vector<1x128xf32> to vector<32x128xf32>
    %65 = arith.addf %62, %64 : vector<32x128xf32>
    %cst_32 = arith.constant dense<0.000000e+00> : vector<32xf32>
    %66 = vector.multi_reduction <add>, %65, %cst_32 [1] : vector<32x128xf32> to vector<32xf32>
    %67 = vector.shape_cast %66 : vector<32xf32> to vector<32x1xf32>
    %cst_33 = arith.constant 3.125000e-02 : f32
    %68 = vector.broadcast %cst_33 : f32 to vector<32x1xf32>
    %69 = arith.mulf %67, %68 : vector<32x1xf32>
    %70 = arith.mulf %65, %65 : vector<32x128xf32>
    %cst_34 = arith.constant dense<0.000000e+00> : vector<32xf32>
    %71 = vector.multi_reduction <add>, %70, %cst_34 [1] : vector<32x128xf32> to vector<32xf32>
    %72 = vector.shape_cast %71 : vector<32xf32> to vector<32x1xf32>
    %cst_35 = arith.constant 3.125000e-02 : f32
    %73 = vector.broadcast %cst_35 : f32 to vector<32x1xf32>
    %74 = arith.mulf %72, %73 : vector<32x1xf32>
    %75 = arith.mulf %69, %69 : vector<32x1xf32>
    %76 = arith.subf %74, %75 : vector<32x1xf32>
    %cst_36 = arith.constant 0.000000e+00 : f32
    %77 = vector.broadcast %cst_36 : f32 to vector<32x1xf32>
    %78 = arith.maximumf %76, %77 : vector<32x1xf32>
    %79 = vector.broadcast %69 : vector<32x1xf32> to vector<32x128xf32>
    %80 = arith.subf %65, %79 : vector<32x128xf32>
    %cst_37 = arith.constant 9.99999974E-6 : f32
    %81 = vector.broadcast %cst_37 : f32 to vector<32x1xf32>
    %82 = arith.addf %78, %81 : vector<32x1xf32>
    %83 = math.rsqrt %82 : vector<32x1xf32>
    %84 = vector.broadcast %83 : vector<32x1xf32> to vector<32x128xf32>
    %85 = arith.mulf %80, %84 : vector<32x128xf32>
    %c0_38 = arith.constant 0 : index
    %c0_39 = arith.constant 0 : index
    %86 = vector.load %arg11[%c0_38, %c0_39] : memref<1x128xf32, #tpu.memory_space<vmem>>, vector<1x128xf32>
    %87 = vector.broadcast %86 : vector<1x128xf32> to vector<32x128xf32>
    %88 = arith.mulf %85, %87 : vector<32x128xf32>
    %c0_40 = arith.constant 0 : index
    %c0_41 = arith.constant 0 : index
    %89 = vector.load %arg12[%c0_40, %c0_41] : memref<1x128xf32, #tpu.memory_space<vmem>>, vector<1x128xf32>
    %90 = vector.broadcast %89 : vector<1x128xf32> to vector<32x128xf32>
    %91 = arith.addf %88, %90 : vector<32x128xf32>
    %c0_42 = arith.constant 0 : index
    %c0_43 = arith.constant 0 : index
    %92 = vector.load %arg13[%c0_42, %c0_43] : memref<128x128xf32, #tpu.memory_space<vmem>>, vector<128x128xf32>
    %cst_44 = arith.constant dense<0.000000e+00> : vector<32x128xf32>
    %93 = tpu.matmul %91, %92, %cst_44 {dimension_numbers = #tpu.dot_dimension_numbers<[1], [0], [0], [1], [0, 0, 1, 1], [], []>} : vector<32x128xf32>, vector<128x128xf32>, vector<32x128xf32> -> vector<32x128xf32>
    %c0_45 = arith.constant 0 : index
    %c0_46 = arith.constant 0 : index
    %94 = vector.load %arg14[%c0_45, %c0_46] : memref<1x128xf32, #tpu.memory_space<vmem>>, vector<1x128xf32>
    %95 = vector.broadcast %94 : vector<1x128xf32> to vector<32x128xf32>
    %96 = arith.addf %93, %95 : vector<32x128xf32>
    %cst_47 = arith.constant 5.000000e-01 : f32
    %97 = vector.broadcast %cst_47 : f32 to vector<32x128xf32>
    %98 = arith.mulf %97, %96 : vector<32x128xf32>
    %cst_48 = arith.constant 0.707106769 : f32
    %99 = vector.broadcast %cst_48 : f32 to vector<32x128xf32>
    %100 = arith.mulf %96, %99 : vector<32x128xf32>
    %101 = math.erf %100 : vector<32x128xf32>
    %cst_49 = arith.constant 1.000000e+00 : f32
    %102 = vector.broadcast %cst_49 : f32 to vector<32x128xf32>
    %103 = arith.addf %102, %101 : vector<32x128xf32>
    %104 = arith.mulf %98, %103 : vector<32x128xf32>
    %c0_50 = arith.constant 0 : index
    %c0_51 = arith.constant 0 : index
    %105 = vector.load %arg15[%c0_50, %c0_51] : memref<128x128xf32, #tpu.memory_space<vmem>>, vector<128x128xf32>
    %cst_52 = arith.constant dense<0.000000e+00> : vector<32x128xf32>
    %106 = tpu.matmul %104, %105, %cst_52 {dimension_numbers = #tpu.dot_dimension_numbers<[1], [0], [0], [1], [0, 0, 1, 1], [], []>} : vector<32x128xf32>, vector<128x128xf32>, vector<32x128xf32> -> vector<32x128xf32>
    %c0_53 = arith.constant 0 : index
    %c0_54 = arith.constant 0 : index
    %107 = vector.load %arg16[%c0_53, %c0_54] : memref<1x128xf32, #tpu.memory_space<vmem>>, vector<1x128xf32>
    %108 = vector.broadcast %107 : vector<1x128xf32> to vector<32x128xf32>
    %109 = arith.addf %106, %108 : vector<32x128xf32>
    %110 = vector.shape_cast %109 : vector<32x128xf32> to vector<4x8x128xf32>
    %c0_55 = arith.constant 0 : index
    %c0_56 = arith.constant 0 : index
    %c0_57 = arith.constant 0 : index
    %111 = vector.load %arg17[%c0_55, %c0_56, %c0_57] : memref<4x8x128xf32, #tpu.memory_space<vmem>>, vector<4x8x128xf32>
    tpu.vector_store %arg17[%c0_55, %c0_56, %c0_57], %110 {strides = array<i32>} : memref<4x8x128xf32, #tpu.memory_space<vmem>>, vector<4x8x128xf32>,
    return
  }
  func.func @transform_0(%arg0: i32) -> (i32, i32, i32) {
    %c0_i32 = arith.constant 0 : i32
    %c0_i32_0 = arith.constant 0 : i32
    %c0_i32_1 = arith.constant 0 : i32
    return %arg0, %c0_i32, %c0_i32_0 : i32, i32, i32
  }
  func.func @transform_1(%arg0: i32) -> (i32, i32) {
    %c0_i32 = arith.constant 0 : i32
    %c0_i32_0 = arith.constant 0 : i32
    %c0_i32_1 = arith.constant 0 : i32
    return %c0_i32, %c0_i32_0 : i32, i32
  }
  func.func @transform_2(%arg0: i32) -> (i32, i32, i32) {
    %c0_i32 = arith.constant 0 : i32
    %c0_i32_0 = arith.constant 0 : i32
    %c0_i32_1 = arith.constant 0 : i32
    %c0_i32_2 = arith.constant 0 : i32
    return %c0_i32, %c0_i32_0, %c0_i32_1 : i32, i32, i32
  }
  func.func @transform_3(%arg0: i32) -> (i32, i32) {
    %c0_i32 = arith.constant 0 : i32
    %c0_i32_0 = arith.constant 0 : i32
    %c0_i32_1 = arith.constant 0 : i32
    return %c0_i32, %c0_i32_0 : i32, i32
  }
  func.func @transform_4(%arg0: i32) -> (i32, i32) {
    %c0_i32 = arith.constant 0 : i32
    %c0_i32_0 = arith.constant 0 : i32
    %c0_i32_1 = arith.constant 0 : i32
    return %c0_i32, %c0_i32_0 : i32, i32
  }
  func.func @transform_5(%arg0: i32) -> (i32, i32) {
    %c0_i32 = arith.constant 0 : i32
    %c0_i32_0 = arith.constant 0 : i32
    %c0_i32_1 = arith.constant 0 : i32
    return %c0_i32, %c0_i32_0 : i32, i32
  }
  func.func @transform_6(%arg0: i32) -> (i32, i32) {
    %c0_i32 = arith.constant 0 : i32
    %c0_i32_0 = arith.constant 0 : i32
    %c0_i32_1 = arith.constant 0 : i32
    return %c0_i32, %c0_i32_0 : i32, i32
  }
  func.func @transform_7(%arg0: i32) -> (i32, i32) {
    %c0_i32 = arith.constant 0 : i32
    %c0_i32_0 = arith.constant 0 : i32
    %c0_i32_1 = arith.constant 0 : i32
    return %c0_i32, %c0_i32_0 : i32, i32
  }
  func.func @transform_8(%arg0: i32) -> (i32, i32) {
    %c0_i32 = arith.constant 0 : i32
    %c0_i32_0 = arith.constant 0 : i32
    %c0_i32_1 = arith.constant 0 : i32
    return %c0_i32, %c0_i32_0 : i32, i32
  }
  func.func @transform_9(%arg0: i32) -> (i32, i32) {
    %c0_i32 = arith.constant 0 : i32
    %c0_i32_0 = arith.constant 0 : i32
    %c0_i32_1 = arith.constant 0 : i32
    return %c0_i32, %c0_i32_0 : i32, i32
  }
  func.func @transform_10(%arg0: i32) -> (i32, i32) {
    %c0_i32 = arith.constant 0 : i32
    %c0_i32_0 = arith.constant 0 : i32
    %c0_i32_1 = arith.constant 0 : i32
    return %c0_i32, %c0_i32_0 : i32, i32
  }
  func.func @transform_11(%arg0: i32) -> (i32, i32) {
    %c0_i32 = arith.constant 0 : i32
    %c0_i32_0 = arith.constant 0 : i32
    %c0_i32_1 = arith.constant 0 : i32
    return %c0_i32, %c0_i32_0 : i32, i32
  }
  func.func @transform_12(%arg0: i32) -> (i32, i32) {
    %c0_i32 = arith.constant 0 : i32
    %c0_i32_0 = arith.constant 0 : i32
    %c0_i32_1 = arith.constant 0 : i32
    return %c0_i32, %c0_i32_0 : i32, i32
  }
  func.func @transform_13(%arg0: i32) -> (i32, i32) {
    %c0_i32 = arith.constant 0 : i32
    %c0_i32_0 = arith.constant 0 : i32
    %c0_i32_1 = arith.constant 0 : i32
    return %c0_i32, %c0_i32_0 : i32, i32
  }
  func.func @transform_14(%arg0: i32) -> (i32, i32) {
    %c0_i32 = arith.constant 0 : i32
    %c0_i32_0 = arith.constant 0 : i32
    %c0_i32_1 = arith.constant 0 : i32
    return %c0_i32, %c0_i32_0 : i32, i32
  }
  func.func @transform_15(%arg0: i32) -> (i32, i32) {
    %c0_i32 = arith.constant 0 : i32
    %c0_i32_0 = arith.constant 0 : i32
    %c0_i32_1 = arith.constant 0 : i32
    return %c0_i32, %c0_i32_0 : i32, i32
  }
  func.func @transform_16(%arg0: i32) -> (i32, i32, i32) {
    %c0_i32 = arith.constant 0 : i32
    %c0_i32_0 = arith.constant 0 : i32
    %c0_i32_1 = arith.constant 0 : i32
    return %arg0, %c0_i32, %c0_i32_0 : i32, i32, i32
  }
}

module attributes {stable_mosaic.version = 11 : i64} {
  func.func @qformer_upsample_kernel(%arg0: i32, %arg1: memref<4x8x128xf32, #tpu.memory_space<vmem>>, %arg2: memref<8x128xf32, #tpu.memory_space<vmem>>, %arg3: memref<4x32x8xf32, #tpu.memory_space<vmem>>, %arg4: memref<32x32xf32, #tpu.memory_space<vmem>>, %arg5: memref<1x128xf32, #tpu.memory_space<vmem>>, %arg6: memref<1x128xf32, #tpu.memory_space<vmem>>, %arg7: memref<64x128xf32, #tpu.memory_space<vmem>>, %arg8: memref<64x1xf32, #tpu.memory_space<vmem>>, %arg9: memref<32x128xf32, #tpu.memory_space<vmem>>, %arg10: memref<1x128xf32, #tpu.memory_space<vmem>>, %arg11: memref<1x128xf32, #tpu.memory_space<vmem>>, %arg12: memref<1x128xf32, #tpu.memory_space<vmem>>, %arg13: memref<128x128xf32, #tpu.memory_space<vmem>>, %arg14: memref<1x128xf32, #tpu.memory_space<vmem>>, %arg15: memref<128x128xf32, #tpu.memory_space<vmem>>, %arg16: memref<1x128xf32, #tpu.memory_space<vmem>>, %arg17: memref<4x8x128xf32, #tpu.memory_space<vmem>>) attributes {dimension_semantics = [#tpu.dimension_semantics<parallel>], iteration_bounds = array<i64: 1>, scalar_prefetch = 0 : i64, scratch_operands = 0 : i64, tpu.core_type = #tpu.core_type<tc>, window_params = [{transform_indices = @transform_0, window_bounds = array<i64: 4, 8, 128>}, {pipeline_mode = #tpu.pipeline_mode<synchronous>, transform_indices = @transform_1, window_bounds = array<i64: 8, 128>}, {pipeline_mode = #tpu.pipeline_mode<synchronous>, transform_indices = @transform_2, window_bounds = array<i64: 4, 32, 8>}, {pipeline_mode = #tpu.pipeline_mode<synchronous>, transform_indices = @transform_3, window_bounds = array<i64: 32, 32>}, {pipeline_mode = #tpu.pipeline_mode<synchronous>, transform_indices = @transform_4, window_bounds = array<i64: 1, 128>}, {pipeline_mode = #tpu.pipeline_mode<synchronous>, transform_indices = @transform_5, window_bounds = array<i64: 1, 128>}, {pipeline_mode = #tpu.pipeline_mode<synchronous>, transform_indices = @transform_6, window_bounds = array<i64: 64, 128>}, {pipeline_mode = #tpu.pipeline_mode<synchronous>, transform_indices = @transform_7, window_bounds = array<i64: 64, 1>}, {pipeline_mode = #tpu.pipeline_mode<synchronous>, transform_indices = @transform_8, window_bounds = array<i64: 32, 128>}, {pipeline_mode = #tpu.pipeline_mode<synchronous>, transform_indices = @transform_9, window_bounds = array<i64: 1, 128>}, {pipeline_mode = #tpu.pipeline_mode<synchronous>, transform_indices = @transform_10, window_bounds = array<i64: 1, 128>}, {pipeline_mode = #tpu.pipeline_mode<synchronous>, transform_indices = @transform_11, window_bounds = array<i64: 1, 128>}, {pipeline_mode = #tpu.pipeline_mode<synchronous>, transform_indices = @transform_12, window_bounds = array<i64: 128, 128>}, {pipeline_mode = #tpu.pipeline_mode<synchronous>, transform_indices = @transform_13, window_bounds = array<i64: 1, 128>}, {pipeline_mode = #tpu.pipeline_mode<synchronous>, transform_indices = @transform_14, window_bounds = array<i64: 128, 128>}, {pipeline_mode = #tpu.pipeline_mode<synchronous>, transform_indices = @transform_15, window_bounds = array<i64: 1, 128>}, {transform_indices = @transform_16, window_bounds = array<i64: 4, 8, 128>}]} {
    %c0 = arith.constant 0 : index
    %c0_0 = arith.constant 0 : index
    %c0_1 = arith.constant 0 : index
    %0 = vector.load %arg1[%c0, %c0_0, %c0_1] : memref<4x8x128xf32, #tpu.memory_space<vmem>>, vector<4x8x128xf32>
    %cst = arith.constant dense<0.000000e+00> : vector<4x8xf32>
    %1 = vector.multi_reduction <add>, %0, %cst [2] : vector<4x8x128xf32> to vector<4x8xf32>
    %2 = vector.shape_cast %1 : vector<4x8xf32> to vector<4x8x1xf32>
    %cst_2 = arith.constant 3.125000e-02 : f32
    %3 = vector.broadcast %cst_2 : f32 to vector<4x8x1xf32>
    %4 = arith.mulf %2, %3 : vector<4x8x1xf32>
    %5 = arith.mulf %0, %0 : vector<4x8x128xf32>
    %cst_3 = arith.constant dense<0.000000e+00> : vector<4x8xf32>
    %6 = vector.multi_reduction <add>, %5, %cst_3 [2] : vector<4x8x128xf32> to vector<4x8xf32>
    %7 = vector.shape_cast %6 : vector<4x8xf32> to vector<4x8x1xf32>
    %cst_4 = arith.constant 3.125000e-02 : f32
    %8 = vector.broadcast %cst_4 : f32 to vector<4x8x1xf32>
    %9 = arith.mulf %7, %8 : vector<4x8x1xf32>
    %10 = arith.mulf %4, %4 : vector<4x8x1xf32>
    %11 = arith.subf %9, %10 : vector<4x8x1xf32>
    %cst_5 = arith.constant 0.000000e+00 : f32
    %12 = vector.broadcast %cst_5 : f32 to vector<4x8x1xf32>
    %13 = arith.maximumf %11, %12 : vector<4x8x1xf32>
    %14 = vector.broadcast %4 : vector<4x8x1xf32> to vector<4x8x128xf32>
    %15 = arith.subf %0, %14 : vector<4x8x128xf32>
    %cst_6 = arith.constant 9.99999974E-6 : f32
    %16 = vector.broadcast %cst_6 : f32 to vector<4x8x1xf32>
    %17 = arith.addf %13, %16 : vector<4x8x1xf32>
    %18 = math.rsqrt %17 : vector<4x8x1xf32>
    %19 = vector.broadcast %18 : vector<4x8x1xf32> to vector<4x8x128xf32>
    %20 = arith.mulf %15, %19 : vector<4x8x128xf32>
    %c0_7 = arith.constant 0 : index
    %c0_8 = arith.constant 0 : index
    %21 = vector.load %arg5[%c0_7, %c0_8] : memref<1x128xf32, #tpu.memory_space<vmem>>, vector<1x128xf32>
    %22 = vector.shape_cast %21 : vector<1x128xf32> to vector<1x1x128xf32>
    %23 = vector.broadcast %22 : vector<1x1x128xf32> to vector<4x8x128xf32>
    %24 = arith.mulf %20, %23 : vector<4x8x128xf32>
    %c0_9 = arith.constant 0 : index
    %c0_10 = arith.constant 0 : index
    %25 = vector.load %arg6[%c0_9, %c0_10] : memref<1x128xf32, #tpu.memory_space<vmem>>, vector<1x128xf32>
    %26 = vector.shape_cast %25 : vector<1x128xf32> to vector<1x1x128xf32>
    %27 = vector.broadcast %26 : vector<1x1x128xf32> to vector<4x8x128xf32>
    %28 = arith.addf %24, %27 : vector<4x8x128xf32>
    %c0_11 = arith.constant 0 : index
    %c0_12 = arith.constant 0 : index
    %29 = vector.load %arg2[%c0_11, %c0_12] : memref<8x128xf32, #tpu.memory_space<vmem>>, vector<8x128xf32>
    %30 = vector.shape_cast %29 : vector<8x128xf32> to vector<1x8x128xf32>
    %31 = vector.broadcast %30 : vector<1x8x128xf32> to vector<4x8x128xf32>
    %32 = arith.addf %28, %31 : vector<4x8x128xf32>
    %33 = vector.shape_cast %32 : vector<4x8x128xf32> to vector<32x128xf32>
    %c0_13 = arith.constant 0 : index
    %c0_14 = arith.constant 0 : index
    %34 = vector.load %arg7[%c0_13, %c0_14] : memref<64x128xf32, #tpu.memory_space<vmem>>, vector<64x128xf32>
    %cst_15 = arith.constant dense<0.000000e+00> : vector<64x32xf32>
    %35 = tpu.matmul %34, %33, %cst_15 {dimension_numbers = #tpu.dot_dimension_numbers<[1], [1], [0], [0], [0, 0, 1, 0], [], []>} : vector<64x128xf32>, vector<32x128xf32>, vector<64x32xf32> -> vector<64x32xf32>
    %c0_16 = arith.constant 0 : index
    %c0_17 = arith.constant 0 : index
    %36 = vector.load %arg8[%c0_16, %c0_17] : memref<64x1xf32, #tpu.memory_space<vmem>>, vector<64x1xf32>
    %37 = vector.broadcast %36 : vector<64x1xf32> to vector<64x32xf32>
    %38 = arith.addf %35, %37 : vector<64x32xf32>
    %39 = vector.extract_strided_slice %38 {offsets = [0, 0], sizes = [32, 32], strides = [1, 1]} : vector<64x32xf32> to vector<32x32xf32>
    %40 = vector.shape_cast %39 : vector<32x32xf32> to vector<4x8x32xf32>
    %41 = vector.extract_strided_slice %38 {offsets = [32, 0], sizes = [32, 32], strides = [1, 1]} : vector<64x32xf32> to vector<32x32xf32>
    %42 = vector.shape_cast %41 : vector<32x32xf32> to vector<4x8x32xf32>
    %c0_18 = arith.constant 0 : index
    %c0_19 = arith.constant 0 : index
    %c0_20 = arith.constant 0 : index
    %43 = vector.load %arg3[%c0_18, %c0_19, %c0_20] : memref<4x32x8xf32, #tpu.memory_space<vmem>>, vector<4x32x8xf32>
    %cst_21 = arith.constant dense<0.000000e+00> : vector<4x32x32xf32>
    %44 = tpu.matmul %43, %40, %cst_21 {dimension_numbers = #tpu.dot_dimension_numbers<[2], [1], [1], [2], [0, 0, 0, 1, 1, 2], [0], [0]>} : vector<4x32x8xf32>, vector<4x8x32xf32>, vector<4x32x32xf32> -> vector<4x32x32xf32>
    %c0_22 = arith.constant 0 : index
    %c0_23 = arith.constant 0 : index
    %45 = vector.load %arg4[%c0_22, %c0_23] : memref<32x32xf32, #tpu.memory_space<vmem>>, vector<32x32xf32>
    %46 = vector.shape_cast %45 : vector<32x32xf32> to vector<1x32x32xf32>
    %47 = vector.broadcast %46 : vector<1x32x32xf32> to vector<4x32x32xf32>
    %48 = arith.addf %44, %47 : vector<4x32x32xf32>
    %cst_24 = arith.constant dense<0xFF800000> : vector<4x32xf32>
    %49 = vector.multi_reduction <maximumf>, %48, %cst_24 [2] : vector<4x32x32xf32> to vector<4x32xf32>
    %50 = vector.shape_cast %49 : vector<4x32xf32> to vector<4x32x1xf32>
    %51 = vector.broadcast %50 : vector<4x32x1xf32> to vector<4x32x32xf32>
    %52 = arith.subf %48, %51 : vector<4x32x32xf32>
    %53 = math.exp %52 : vector<4x32x32xf32>
    %cst_25 = arith.constant dense<0.000000e+00> : vector<4x32xf32>
    %54 = vector.multi_reduction <add>, %53, %cst_25 [2] : vector<4x32x32xf32> to vector<4x32xf32>
    %55 = vector.shape_cast %54 : vector<4x32xf32> to vector<4x32x1xf32>
    %56 = tpu.reciprocal %55 {approx = true} : vector<4x32x1xf32> -> vector<4x32x1xf32>
    %57 = vector.broadcast %56 : vector<4x32x1xf32> to vector<4x32x32xf32>
    %58 = arith.mulf %53, %57 : vector<4x32x32xf32>
    %cst_26 = arith.constant dense<0.000000e+00> : vector<4x8x32xf32>
    %59 = tpu.matmul %42, %58, %cst_26 {dimension_numbers = #tpu.dot_dimension_numbers<[2], [2], [1], [1], [0, 0, 0, 1, 1, 1], [0], [0]>} : vector<4x8x32xf32>, vector<4x32x32xf32>, vector<4x8x32xf32> -> vector<4x8x32xf32>
    %60 = vector.shape_cast %59 : vector<4x8x32xf32> to vector<32x32xf32>
    %c0_27 = arith.constant 0 : index
    %c0_28 = arith.constant 0 : index
    %61 = vector.load %arg9[%c0_27, %c0_28] : memref<32x128xf32, #tpu.memory_space<vmem>>, vector<32x128xf32>
    %cst_29 = arith.constant dense<0.000000e+00> : vector<32x128xf32>
    %62 = tpu.matmul %60, %61, %cst_29 {dimension_numbers = #tpu.dot_dimension_numbers<[0], [0], [1], [1], [0, 1, 1, 1], [], []>} : vector<32x32xf32>, vector<32x128xf32>, vector<32x128xf32> -> vector<32x128xf32>
    %c0_30 = arith.constant 0 : index
    %c0_31 = arith.constant 0 : index
    %63 = vector.load %arg10[%c0_30, %c0_31] : memref<1x128xf32, #tpu.memory_space<vmem>>, vector<1x128xf32>
    %64 = vector.broadcast %63 : vector<1x128xf32> to vector<32x128xf32>
    %65 = arith.addf %62, %64 : vector<32x128xf32>
    %cst_32 = arith.constant dense<0.000000e+00> : vector<32xf32>
    %66 = vector.multi_reduction <add>, %65, %cst_32 [1] : vector<32x128xf32> to vector<32xf32>
    %67 = vector.shape_cast %66 : vector<32xf32> to vector<32x1xf32>
    %cst_33 = arith.constant 3.125000e-02 : f32
    %68 = vector.broadcast %cst_33 : f32 to vector<32x1xf32>
    %69 = arith.mulf %67, %68 : vector<32x1xf32>
    %70 = arith.mulf %65, %65 : vector<32x128xf32>
    %cst_34 = arith.constant dense<0.000000e+00> : vector<32xf32>
    %71 = vector.multi_reduction <add>, %70, %cst_34 [1] : vector<32x128xf32> to vector<32xf32>
    %72 = vector.shape_cast %71 : vector<32xf32> to vector<32x1xf32>
    %cst_35 = arith.constant 3.125000e-02 : f32
    %73 = vector.broadcast %cst_35 : f32 to vector<32x1xf32>
    %74 = arith.mulf %72, %73 : vector<32x1xf32>
    %75 = arith.mulf %69, %69 : vector<32x1xf32>
    %76 = arith.subf %74, %75 : vector<32x1xf32>
    %cst_36 = arith.constant 0.000000e+00 : f32
    %77 = vector.broadcast %cst_36 : f32 to vector<32x1xf32>
    %78 = arith.maximumf %76, %77 : vector<32x1xf32>
    %79 = vector.broadcast %69 : vector<32x1xf32> to vector<32x128xf32>
    %80 = arith.subf %65, %79 : vector<32x128xf32>
    %cst_37 = arith.constant 9.99999974E-6 : f32
    %81 = vector.broadcast %cst_37 : f32 to vector<32x1xf32>
    %82 = arith.addf %78, %81 : vector<32x1xf32>
    %83 = math.rsqrt %82 : vector<32x1xf32>
    %84 = vector.broadcast %83 : vector<32x1xf32> to vector<32x128xf32>
    %85 = arith.mulf %80, %84 : vector<32x128xf32>
    %c0_38 = arith.constant 0 : index
    %c0_39 = arith.constant 0 : index
    %86 = vector.load %arg11[%c0_38, %c0_39] : memref<1x128xf32, #tpu.memory_space<vmem>>, vector<1x128xf32>
    %87 = vector.broadcast %86 : vector<1x128xf32> to vector<32x128xf32>
    %88 = arith.mulf %85, %87 : vector<32x128xf32>
    %c0_40 = arith.constant 0 : index
    %c0_41 = arith.constant 0 : index
    %89 = vector.load %arg12[%c0_40, %c0_41] : memref<1x128xf32, #tpu.memory_space<vmem>>, vector<1x128xf32>
    %90 = vector.broadcast %89 : vector<1x128xf32> to vector<32x128xf32>
    %91 = arith.addf %88, %90 : vector<32x128xf32>
    %c0_42 = arith.constant 0 : index
    %c0_43 = arith.constant 0 : index
    %92 = vector.load %arg13[%c0_42, %c0_43] : memref<128x128xf32, #tpu.memory_space<vmem>>, vector<128x128xf32>
    %cst_44 = arith.constant dense<0.000000e+00> : vector<32x128xf32>
    %93 = tpu.matmul %91, %92, %cst_44 {dimension_numbers = #tpu.dot_dimension_numbers<[1], [0], [0], [1], [0, 0, 1, 1], [], []>} : vector<32x128xf32>, vector<128x128xf32>, vector<32x128xf32> -> vector<32x128xf32>
    %c0_45 = arith.constant 0 : index
    %c0_46 = arith.constant 0 : index
    %94 = vector.load %arg14[%c0_45, %c0_46] : memref<1x128xf32, #tpu.memory_space<vmem>>, vector<1x128xf32>
    %95 = vector.broadcast %94 : vector<1x128xf32> to vector<32x128xf32>
    %96 = arith.addf %93, %95 : vector<32x128xf32>
    %cst_47 = arith.constant 5.000000e-01 : f32
    %97 = vector.broadcast %cst_47 : f32 to vector<32x128xf32>
    %98 = arith.mulf %97, %96 : vector<32x128xf32>
    %cst_48 = arith.constant 0.707106769 : f32
    %99 = vector.broadcast %cst_48 : f32 to vector<32x128xf32>
    %100 = arith.mulf %96, %99 : vector<32x128xf32>
    %101 = math.erf %100 : vector<32x128xf32>
    %cst_49 = arith.constant 1.000000e+00 : f32
    %102 = vector.broadcast %cst_49 : f32 to vector<32x128xf32>
    %103 = arith.addf %102, %101 : vector<32x128xf32>
    %104 = arith.mulf %98, %103 : vector<32x128xf32>
    %c0_50 = arith.constant 0 : index
    %c0_51 = arith.constant 0 : index
    %105 = vector.load %arg15[%c0_50, %c0_51] : memref<128x128xf32, #tpu.memory_space<vmem>>, vector<128x128xf32>
    %cst_52 = arith.constant dense<0.000000e+00> : vector<32x128xf32>
    %106 = tpu.matmul %104, %105, %cst_52 {dimension_numbers = #tpu.dot_dimension_numbers<[1], [0], [0], [1], [0, 0, 1, 1], [], []>} : vector<32x128xf32>, vector<128x128xf32>, vector<32x128xf32> -> vector<32x128xf32>
    %c0_53 = arith.constant 0 : index
    %c0_54 = arith.constant 0 : index
    %107 = vector.load %arg16[%c0_53, %c0_54] : memref<1x128xf32, #tpu.memory_space<vmem>>, vector<1x128xf32>
    %108 = vector.broadcast %107 : vector<1x128xf32> to vector<32x128xf32>
    %109 = arith.addf %106, %108 : vector<32x128xf32>
    %110 = vector.shape_cast %109 : vector<32x128xf32> to vector<4x8x128xf32>
    %c0_55 = arith.constant 0 : index
    %c0_56 = arith.constant 0 : index
    %c0_57 = arith.constant 0 : index
    %111 = vector.load %arg17[%c0_55, %c0_56, %c0_57] : memref<4x8x128xf32, #tpu.memory_space<vmem>>, vector<4x8x128xf32>
    tpu.vector_store %arg17[%c0_55, %c0_56, %c0_57], %110 {strides = array<i32>} : memref<4x8x128xf32, #tpu.memory_space<vmem>>, vector<4x8x128xf32>,
    return
  }
  func.func @transform_0(%arg0: i32) -> (i32, i32, i32) {
    %c0_i32 = arith.constant 0 : i32
    %c0_i32_0 = arith.constant 0 : i32
    %c0_i32_1 = arith.constant 0 : i32
    return %arg0, %c0_i32, %c0_i32_0 : i32, i32, i32
  }
  func.func @transform_1(%arg0: i32) -> (i32, i32) {
    %c0_i32 = arith.constant 0 : i32
    %c0_i32_0 = arith.constant 0 : i32
    %c0_i32_1 = arith.constant 0 : i32
    return %c0_i32, %c0_i32_0 : i32, i32
  }
  func.func @transform_2(%arg0: i32) -> (i32, i32, i32) {
    %c0_i32 = arith.constant 0 : i32
    %c0_i32_0 = arith.constant 0 : i32
    %c0_i32_1 = arith.constant 0 : i32
    %c0_i32_2 = arith.constant 0 : i32
    return %c0_i32, %c0_i32_0, %c0_i32_1 : i32, i32, i32
  }
  func.func @transform_3(%arg0: i32) -> (i32, i32) {
    %c0_i32 = arith.constant 0 : i32
    %c0_i32_0 = arith.constant 0 : i32
    %c0_i32_1 = arith.constant 0 : i32
    return %c0_i32, %c0_i32_0 : i32, i32
  }
  func.func @transform_4(%arg0: i32) -> (i32, i32) {
    %c0_i32 = arith.constant 0 : i32
    %c0_i32_0 = arith.constant 0 : i32
    %c0_i32_1 = arith.constant 0 : i32
    return %c0_i32, %c0_i32_0 : i32, i32
  }
  func.func @transform_5(%arg0: i32) -> (i32, i32) {
    %c0_i32 = arith.constant 0 : i32
    %c0_i32_0 = arith.constant 0 : i32
    %c0_i32_1 = arith.constant 0 : i32
    return %c0_i32, %c0_i32_0 : i32, i32
  }
  func.func @transform_6(%arg0: i32) -> (i32, i32) {
    %c0_i32 = arith.constant 0 : i32
    %c0_i32_0 = arith.constant 0 : i32
    %c0_i32_1 = arith.constant 0 : i32
    return %c0_i32, %c0_i32_0 : i32, i32
  }
  func.func @transform_7(%arg0: i32) -> (i32, i32) {
    %c0_i32 = arith.constant 0 : i32
    %c0_i32_0 = arith.constant 0 : i32
    %c0_i32_1 = arith.constant 0 : i32
    return %c0_i32, %c0_i32_0 : i32, i32
  }
  func.func @transform_8(%arg0: i32) -> (i32, i32) {
    %c0_i32 = arith.constant 0 : i32
    %c0_i32_0 = arith.constant 0 : i32
    %c0_i32_1 = arith.constant 0 : i32
    return %c0_i32, %c0_i32_0 : i32, i32
  }
  func.func @transform_9(%arg0: i32) -> (i32, i32) {
    %c0_i32 = arith.constant 0 : i32
    %c0_i32_0 = arith.constant 0 : i32
    %c0_i32_1 = arith.constant 0 : i32
    return %c0_i32, %c0_i32_0 : i32, i32
  }
  func.func @transform_10(%arg0: i32) -> (i32, i32) {
    %c0_i32 = arith.constant 0 : i32
    %c0_i32_0 = arith.constant 0 : i32
    %c0_i32_1 = arith.constant 0 : i32
    return %c0_i32, %c0_i32_0 : i32, i32
  }
  func.func @transform_11(%arg0: i32) -> (i32, i32) {
    %c0_i32 = arith.constant 0 : i32
    %c0_i32_0 = arith.constant 0 : i32
    %c0_i32_1 = arith.constant 0 : i32
    return %c0_i32, %c0_i32_0 : i32, i32
  }
  func.func @transform_12(%arg0: i32) -> (i32, i32) {
    %c0_i32 = arith.constant 0 : i32
    %c0_i32_0 = arith.constant 0 : i32
    %c0_i32_1 = arith.constant 0 : i32
    return %c0_i32, %c0_i32_0 : i32, i32
  }
  func.func @transform_13(%arg0: i32) -> (i32, i32) {
    %c0_i32 = arith.constant 0 : i32
    %c0_i32_0 = arith.constant 0 : i32
    %c0_i32_1 = arith.constant 0 : i32
    return %c0_i32, %c0_i32_0 : i32, i32
  }
  func.func @transform_14(%arg0: i32) -> (i32, i32) {
    %c0_i32 = arith.constant 0 : i32
    %c0_i32_0 = arith.constant 0 : i32
    %c0_i32_1 = arith.constant 0 : i32
    return %c0_i32, %c0_i32_0 : i32, i32
  }
  func.func @transform_15(%arg0: i32) -> (i32, i32) {
    %c0_i32 = arith.constant 0 : i32
    %c0_i32_0 = arith.constant 0 : i32
    %c0_i32_1 = arith.constant 0 : i32
    return %c0_i32, %c0_i32_0 : i32, i32
  }
  func.func @transform_16(%arg0: i32) -> (i32, i32, i32) {
    %c0_i32 = arith.constant 0 : i32
    %c0_i32_0 = arith.constant 0 : i32
    %c0_i32_1 = arith.constant 0 : i32
    return %arg0, %c0_i32, %c0_i32_0 : i32, i32, i32
  }
}

</mosaic_0001>

<llo_original>
// kernel: tpu_custom_call.1
$region0: #{tpu_custom_call.1}
  #allocation0 [shape = 'u32[]', space=smem, size = 0x4, offset = 0x4, fixed_abs, tag = 'smem constant byte address 0x4 - core index']
  #allocation1 [shape = 'u32[144,128]{1,0:T(1,128)}', space=vmem, size = 0x12000, scoped, tag = 'internal scratch']
  %s0 = inlined_call_operand.hbm [shape: f32[4,8,128], index: 0, kind: input, shape index: {}]
  %s1 = inlined_call_operand.hbm [shape: f32[8,128], index: 1, kind: input, shape index: {}]
  %s2 = inlined_call_operand.vmem [shape: f32[4,32,8], index: 2, kind: input, shape index: {}]
  %s3 = inlined_call_operand.hbm [shape: f32[32,32], index: 3, kind: input, shape index: {}]
  %s4 = inlined_call_operand.vmem [shape: f32[1,128], index: 4, kind: input, shape index: {}]
  %s5 = inlined_call_operand.vmem [shape: f32[1,128], index: 5, kind: input, shape index: {}]
  %s6 = inlined_call_operand.hbm [shape: f32[64,128], index: 6, kind: input, shape index: {}]
  %s7 = inlined_call_operand.vmem [shape: f32[64,1], index: 7, kind: input, shape index: {}]
  %s8 = inlined_call_operand.hbm [shape: f32[32,128], index: 8, kind: input, shape index: {}]
  %s9 = inlined_call_operand.vmem [shape: f32[1,128], index: 9, kind: input, shape index: {}]
  %s10 = inlined_call_operand.vmem [shape: f32[1,128], index: 10, kind: input, shape index: {}]
  %s11 = inlined_call_operand.vmem [shape: f32[1,128], index: 11, kind: input, shape index: {}]
  %s12 = inlined_call_operand.vmem [shape: f32[128,128], index: 12, kind: input, shape index: {}]
  %s13 = inlined_call_operand.vmem [shape: f32[1,128], index: 13, kind: input, shape index: {}]
  %s14 = inlined_call_operand.vmem [shape: f32[128,128], index: 14, kind: input, shape index: {}]
  %s15 = inlined_call_operand.vmem [shape: f32[1,128], index: 15, kind: input, shape index: {}]
  %s16 = inlined_call_operand.hbm [shape: f32[4,8,128], index: 16, kind: output, shape index: {}]
  %s17 = sld [smem:[#allocation0]]
  $region94: #{tpu_custom_call.1} parent=0
    _
  %s19 = ssub.s32 1, %s17
  %s20 = scalar_select 0, %s19, %s17
  $region1: #{tpu_custom_call.1} parent=0
    #allocation2 [shape = 'u8[16384]{0}', space=vmem, size = 0x4000, scoped, tag = 'input window, operand 0, single buffered']
    #allocation3 [shape = 's32[1]{0}', space=sflag, size = 0x4, scoped, tag = 'scoped memory for tpu_custom_call.1']
    #allocation4 [shape = 's32[1]{0}', space=sflag, size = 0x4, scoped, tag = 'scoped memory for tpu_custom_call.1']
    #allocation5 [shape = 'u8[4096]{0}', space=vmem, size = 0x1000, scoped, tag = 'input window, operand 1, single buffered']
    #allocation6 [shape = 's32[1]{0}', space=sflag, size = 0x4, scoped, tag = 'scoped memory for tpu_custom_call.1']
    #allocation7 [shape = 'u8[16384]{0}', space=vmem, size = 0x4000, scoped, tag = 'input window, operand 3, single buffered']
    #allocation8 [shape = 'u8[32768]{0}', space=vmem, size = 0x8000, scoped, tag = 'input window, operand 6, single buffered']
    #allocation9 [shape = 's32[1]{0}', space=sflag, size = 0x4, scoped, tag = 'scoped memory for tpu_custom_call.1']
    #allocation10 [shape = 'u8[16384]{0}', space=vmem, size = 0x4000, scoped, tag = 'input window, operand 8, single buffered']
    #allocation11 [shape = 'u8[16384]{0}', space=vmem, size = 0x4000, scoped, tag = 'output window, operand 0, single buffered']
    %21 = vsyncpa [#allocation3], 0
    %22 = vsyncpa [#allocation6], 0
    %23 = vsyncpa [#allocation9], 0
    %24 = vsyncpa [#allocation4], 0
    // Predicated region
    $region2: #{tpu_custom_call.1} parent=1 // pred_check
      _
    $region3: #{tpu_custom_call.1} parent=1 // pred_check_branch
      %26 = sbr.rel (0) target = $region5
    $region4: #{tpu_custom_call.1} parent=1 // pred_region
      %s28 = ssub.s32 512, 512
      %29 = vsyncadd [#allocation3], %s28
      %s30 = sshll.u32 [#allocation2], 4
      %s31 = int_to_ptr.vmem [resolvable:$true] %s30
      %36 = dma.hbm_to_vmem [thread:$0]  %s0, 512, %s31, [#allocation3], 128, 128, 8
    $region5: #{tpu_custom_call.1} parent=1 // pred_fallthru
      _
    // Predicated region
    $region6: #{tpu_custom_call.1} parent=1 // pred_check
      _
    $region7: #{tpu_custom_call.1} parent=1 // pred_check_branch
      %38 = sbr.rel (0) target = $region9
    $region8: #{tpu_custom_call.1} parent=1 // pred_region
      %s40 = ssub.s32 128, 128
      %41 = vsyncadd [#allocation6], %s40
      %s43 = sshll.u32 [#allocation5], 4
      %s44 = int_to_ptr.vmem [resolvable:$true] %s43
      %46 = dma.hbm_to_vmem [thread:$0]  %s1, 128, %s44, [#allocation6]
    $region9: #{tpu_custom_call.1} parent=1 // pred_fallthru
      _
    // Predicated region
    $region10: #{tpu_custom_call.1} parent=1 // pred_check
      _
    $region11: #{tpu_custom_call.1} parent=1 // pred_check_branch
      %48 = sbr.rel (0) target = $region13
    $region12: #{tpu_custom_call.1} parent=1 // pred_region
      _
    $region13: #{tpu_custom_call.1} parent=1 // pred_fallthru
      _
    // Predicated region
    $region14: #{tpu_custom_call.1} parent=1 // pred_check
      _
    $region15: #{tpu_custom_call.1} parent=1 // pred_check_branch
      %50 = sbr.rel (0) target = $region17
    $region16: #{tpu_custom_call.1} parent=1 // pred_region
      %s52 = ssub.s32 512, 512
      %53 = vsyncadd [#allocation6], %s52
      %s54 = sshll.u32 [#allocation7], 4
      %s55 = int_to_ptr.vmem [resolvable:$true] %s54
      %60 = dma.hbm_to_vmem [thread:$0]  %s3, 512, %s55, [#allocation6], 128, 128, 8
    $region17: #{tpu_custom_call.1} parent=1 // pred_fallthru
      _
    // Predicated region
    $region18: #{tpu_custom_call.1} parent=1 // pred_check
      _
    $region19: #{tpu_custom_call.1} parent=1 // pred_check_branch
      %62 = sbr.rel (0) target = $region21
    $region20: #{tpu_custom_call.1} parent=1 // pred_region
      _
    $region21: #{tpu_custom_call.1} parent=1 // pred_fallthru
      _
    // Predicated region
    $region22: #{tpu_custom_call.1} parent=1 // pred_check
      _
    $region23: #{tpu_custom_call.1} parent=1 // pred_check_branch
      %64 = sbr.rel (0) target = $region25
    $region24: #{tpu_custom_call.1} parent=1 // pred_region
      _
    $region25: #{tpu_custom_call.1} parent=1 // pred_fallthru
      _
    // Predicated region
    $region26: #{tpu_custom_call.1} parent=1 // pred_check
      _
    $region27: #{tpu_custom_call.1} parent=1 // pred_check_branch
      %66 = sbr.rel (0) target = $region29
    $region28: #{tpu_custom_call.1} parent=1 // pred_region
      %s68 = ssub.s32 1024, 1024
      %69 = vsyncadd [#allocation9], %s68
      %s70 = sshll.u32 [#allocation8], 4
      %s71 = int_to_ptr.vmem [resolvable:$true] %s70
      %76 = dma.hbm_to_vmem [thread:$0]  %s6, 1024, %s71, [#allocation9], 128, 128, 8
    $region29: #{tpu_custom_call.1} parent=1 // pred_fallthru
      _
    // Predicated region
    $region30: #{tpu_custom_call.1} parent=1 // pred_check
      _
    $region31: #{tpu_custom_call.1} parent=1 // pred_check_branch
      %78 = sbr.rel (0) target = $region33
    $region32: #{tpu_custom_call.1} parent=1 // pred_region
      _
    $region33: #{tpu_custom_call.1} parent=1 // pred_fallthru
      _
    // Predicated region
    $region34: #{tpu_custom_call.1} parent=1 // pred_check
      _
    $region35: #{tpu_custom_call.1} parent=1 // pred_check_branch
      %80 = sbr.rel (0) target = $region37
    $region36: #{tpu_custom_call.1} parent=1 // pred_region
      %s82 = ssub.s32 512, 512
      %83 = vsyncadd [#allocation9], %s82
      %s84 = sshll.u32 [#allocation10], 4
      %s85 = int_to_ptr.vmem [resolvable:$true] %s84
      %90 = dma.hbm_to_vmem [thread:$0]  %s8, 512, %s85, [#allocation9], 128, 128, 8
    $region37: #{tpu_custom_call.1} parent=1 // pred_fallthru
      _
    // Predicated region
    $region38: #{tpu_custom_call.1} parent=1 // pred_check
      _
    $region39: #{tpu_custom_call.1} parent=1 // pred_check_branch
      %92 = sbr.rel (0) target = $region41
    $region40: #{tpu_custom_call.1} parent=1 // pred_region
      _
    $region41: #{tpu_custom_call.1} parent=1 // pred_fallthru
      _
    // Predicated region
    $region42: #{tpu_custom_call.1} parent=1 // pred_check
      _
    $region43: #{tpu_custom_call.1} parent=1 // pred_check_branch
      %94 = sbr.rel (0) target = $region45
    $region44: #{tpu_custom_call.1} parent=1 // pred_region
      _
    $region45: #{tpu_custom_call.1} parent=1 // pred_fallthru
      _
    // Predicated region
    $region46: #{tpu_custom_call.1} parent=1 // pred_check
      _
    $region47: #{tpu_custom_call.1} parent=1 // pred_check_branch
      %96 = sbr.rel (0) target = $region49
    $region48: #{tpu_custom_call.1} parent=1 // pred_region
      _
    $region49: #{tpu_custom_call.1} parent=1 // pred_fallthru
      _
    // Predicated region
    $region50: #{tpu_custom_call.1} parent=1 // pred_check
      _
    $region51: #{tpu_custom_call.1} parent=1 // pred_check_branch
      %98 = sbr.rel (0) target = $region53
    $region52: #{tpu_custom_call.1} parent=1 // pred_region
      _
    $region53: #{tpu_custom_call.1} parent=1 // pred_fallthru
      _
    // Predicated region
    $region54: #{tpu_custom_call.1} parent=1 // pred_check
      _
    $region55: #{tpu_custom_call.1} parent=1 // pred_check_branch
      %100 = sbr.rel (0) target = $region57
    $region56: #{tpu_custom_call.1} parent=1 // pred_region
      _
    $region57: #{tpu_custom_call.1} parent=1 // pred_fallthru
      _
    // Predicated region
    $region58: #{tpu_custom_call.1} parent=1 // pred_check
      _
    $region59: #{tpu_custom_call.1} parent=1 // pred_check_branch
      %102 = sbr.rel (0) target = $region61
    $region60: #{tpu_custom_call.1} parent=1 // pred_region
      _
    $region61: #{tpu_custom_call.1} parent=1 // pred_fallthru
      _
    // Predicated region
    $region62: #{tpu_custom_call.1} parent=1 // pred_check
      _
    $region63: #{tpu_custom_call.1} parent=1 // pred_check_branch
      %104 = sbr.rel (0) target = $region65
    $region64: #{tpu_custom_call.1} parent=1 // pred_region
      _
    $region65: #{tpu_custom_call.1} parent=1 // pred_fallthru
      _
    // Predicated region
    $region66: #{tpu_custom_call.1} parent=1 // pred_check
      _
    $region67: #{tpu_custom_call.1} parent=1 // pred_check_branch
      %106 = sbr.rel (0) target = $region69
    $region68: #{tpu_custom_call.1} parent=1 // pred_region
      %107 = dma.done [#allocation3], 512
    $region69: #{tpu_custom_call.1} parent=1 // pred_fallthru
      _
    // Predicated region
    $region70: #{tpu_custom_call.1} parent=1 // pred_check
      _
    $region71: #{tpu_custom_call.1} parent=1 // pred_check_branch
      %109 = sbr.rel (0) target = $region73
    $region72: #{tpu_custom_call.1} parent=1 // pred_region
      %110 = dma.done [#allocation6], 128
    $region73: #{tpu_custom_call.1} parent=1 // pred_fallthru
      _
    // Predicated region
    $region74: #{tpu_custom_call.1} parent=1 // pred_check
      _
    $region75: #{tpu_custom_call.1} parent=1 // pred_check_branch
      %112 = sbr.rel (0) target = $region77
    $region76: #{tpu_custom_call.1} parent=1 // pred_region
      %113 = dma.done [#allocation6], 512
    $region77: #{tpu_custom_call.1} parent=1 // pred_fallthru
      _
    // Predicated region
    $region78: #{tpu_custom_call.1} parent=1 // pred_check
      _
    $region79: #{tpu_custom_call.1} parent=1 // pred_check_branch
      %115 = sbr.rel (0) target = $region81
    $region80: #{tpu_custom_call.1} parent=1 // pred_region
      %116 = dma.done [#allocation9], 1024
    $region81: #{tpu_custom_call.1} parent=1 // pred_fallthru
      _
    // Predicated region
    $region82: #{tpu_custom_call.1} parent=1 // pred_check
      _
    $region83: #{tpu_custom_call.1} parent=1 // pred_check_branch
      %118 = sbr.rel (0) target = $region85
    $region84: #{tpu_custom_call.1} parent=1 // pred_region
      %119 = dma.done [#allocation9], 512
    $region85: #{tpu_custom_call.1} parent=1 // pred_fallthru
      _
    %v120 = vld [vmem:[#allocation2] sm:$0xff]
    %v121 = vld [vmem:[#allocation2 + $0x8] sm:$0xff]
    %v122 = vld [vmem:[#allocation2 + $0x10] sm:$0xff]
    %v123 = vld [vmem:[#allocation2 + $0x18] sm:$0xff]
    %124 = vadd.xlane.f32.xlu0 %v120
    %v125 = vpop.xlane.xlu0 %124
    %126 = vadd.xlane.f32.xlu0 %v121
    %v127 = vpop.xlane.xlu0 %126
    %128 = vadd.xlane.f32.xlu0 %v122
    %v129 = vpop.xlane.xlu0 %128
    %130 = vadd.xlane.f32.xlu0 %v123
    %v131 = vpop.xlane.xlu0 %130
    %v132 = vmul.f32 %v125, 0.03125
    %v133 = vmul.f32 %v127, 0.03125
    %v134 = vmul.f32 %v129, 0.03125
    %v135 = vmul.f32 %v131, 0.03125
    %v136 = vmul.f32 %v120, %v120
    %v137 = vmul.f32 %v121, %v121
    %v138 = vmul.f32 %v122, %v122
    %v139 = vmul.f32 %v123, %v123
    %140 = vadd.xlane.f32.xlu0 %v136
    %v141 = vpop.xlane.xlu0 %140
    %142 = vadd.xlane.f32.xlu0 %v137
    %v143 = vpop.xlane.xlu0 %142
    %144 = vadd.xlane.f32.xlu0 %v138
    %v145 = vpop.xlane.xlu0 %144
    %146 = vadd.xlane.f32.xlu0 %v139
    %v147 = vpop.xlane.xlu0 %146
    %v148 = vmul.f32 %v141, 0.03125
    %v149 = vmul.f32 %v143, 0.03125
    %v150 = vmul.f32 %v145, 0.03125
    %v151 = vmul.f32 %v147, 0.03125
    %v152 = vmul.f32 %v132, %v132
    %v153 = vmul.f32 %v133, %v133
    %v154 = vmul.f32 %v134, %v134
    %v155 = vmul.f32 %v135, %v135
    %v156 = vsub.f32 %v148, %v152
    %v157 = vsub.f32 %v149, %v153
    %v158 = vsub.f32 %v150, %v154
    %v159 = vsub.f32 %v151, %v155
    %v160 = vmax.f32 %v156, 0.0
    %v161 = vmax.f32 %v157, 0.0
    %v162 = vmax.f32 %v158, 0.0
    %v163 = vmax.f32 %v159, 0.0
    %v164 = vsub.f32 %v120, %v132
    %v165 = vsub.f32 %v121, %v133
    %v166 = vsub.f32 %v122, %v134
    %v167 = vsub.f32 %v123, %v135
    %v168 = vadd.f32 %v160, 1e-05
    %v169 = vadd.f32 %v161, 1e-05
    %v170 = vadd.f32 %v162, 1e-05
    %v171 = vadd.f32 %v163, 1e-05
    %v172 = vrsqrt.pop %v168
    %v173 = vrsqrt.pop %v169
    %v174 = vrsqrt.pop %v170
    %v175 = vrsqrt.pop %v171
    %v176 = vmul.f32 %v164, %v172
    %v177 = vmul.f32 %v165, %v173
    %v178 = vmul.f32 %v166, %v174
    %v179 = vmul.f32 %v167, %v175
    %v180 = vld [vmem:[%s4] sm:$0x1]
    %v182 = vlaneseq
    %v183 = vshrl.u32 %v182, 7
    %v184 = vsub.s32 0, %v183
    %v185 = vrot.slane %v180, %v184
    %v187 = vmul.f32 %v176, %v185
    %v188 = vmul.f32 %v177, %v185
    %v189 = vmul.f32 %v178, %v185
    %v190 = vmul.f32 %v179, %v185
    %v191 = vld [vmem:[%s5] sm:$0x1]
    %v193 = vlaneseq
    %v194 = vshrl.u32 %v193, 7
    %v195 = vsub.s32 0, %v194
    %v196 = vrot.slane %v191, %v195
    %v198 = vadd.f32 %v187, %v196
    %v199 = vadd.f32 %v188, %v196
    %v200 = vadd.f32 %v189, %v196
    %v201 = vadd.f32 %v190, %v196
    %v202 = vld [vmem:[#allocation5] sm:$0xff]
    %v203 = vadd.f32 %v198, %v202
    %v204 = vadd.f32 %v199, %v202
    %v205 = vadd.f32 %v200, %v202
    %v206 = vadd.f32 %v201, %v202
    %v207 = vld [vmem:[#allocation8] sm:$0xff]
    %v208 = vld [vmem:[#allocation8 + $0x8] sm:$0xff]
    %v209 = vld [vmem:[#allocation8 + $0x10] sm:$0xff]
    %v210 = vld [vmem:[#allocation8 + $0x18] sm:$0xff]
    %v211 = vld [vmem:[#allocation8 + $0x20] sm:$0xff]
    %v212 = vld [vmem:[#allocation8 + $0x28] sm:$0xff]
    %v213 = vld [vmem:[#allocation8 + $0x30] sm:$0xff]
    %v214 = vld [vmem:[#allocation8 + $0x38] sm:$0xff]
    %v215 = vld [vmem:[%s7] sm:$0xff]
    %v216 = vld [vmem:[%s7 + $0x8] sm:$0xff]
    %v217 = vld [vmem:[%s7 + $0x10] sm:$0xff]
    %v218 = vld [vmem:[%s7 + $0x18] sm:$0xff]
    %v219 = vld [vmem:[%s7 + $0x20] sm:$0xff]
    %v220 = vld [vmem:[%s7 + $0x28] sm:$0xff]
    %v221 = vld [vmem:[%s7 + $0x30] sm:$0xff]
    %v222 = vld [vmem:[%s7 + $0x38] sm:$0xff]
    %224 = vset.pattern.permute.xlu0 0
    %225 = vperm.xlu0 %224, %v215
    %v226 = vpop.permute.xlu0 %225
    %229 = vset.pattern.permute.xlu0 0
    %230 = vperm.xlu0 %229, %v216
    %v231 = vpop.permute.xlu0 %230
    %234 = vset.pattern.permute.xlu0 0
    %235 = vperm.xlu0 %234, %v217
    %v236 = vpop.permute.xlu0 %235
    %239 = vset.pattern.permute.xlu0 0
    %240 = vperm.xlu0 %239, %v218
    %v241 = vpop.permute.xlu0 %240
    %244 = vset.pattern.permute.xlu0 0
    %245 = vperm.xlu0 %244, %v219
    %v246 = vpop.permute.xlu0 %245
    %249 = vset.pattern.permute.xlu0 0
    %250 = vperm.xlu0 %249, %v220
    %v251 = vpop.permute.xlu0 %250
    %254 = vset.pattern.permute.xlu0 0
    %255 = vperm.xlu0 %254, %v221
    %v256 = vpop.permute.xlu0 %255
    %259 = vset.pattern.permute.xlu0 0
    %260 = vperm.xlu0 %259, %v222
    %v261 = vpop.permute.xlu0 %260
    %263 = vmatprep.subr.mxu0 0.0
    %264 = vmatpush1.xpose.msra.mxu0 %v203
    %265 = vmatprep.subr.mxu0 0.0
    %266 = vmatpush1.xpose.msra.mxu0 %v204
    %267 = vmatprep.subr.mxu0 0.0
    %268 = vmatpush1.xpose.msra.mxu0 %v205
    %269 = vmatprep.subr.mxu0 0.0
    %270 = vmatpush1.xpose.msra.mxu0 %v206
    %271 = vmatprep.subr.mxu0 0.0
    %272 = vmatpush1.xpose.msra.mxu0 0.0
    %273 = vmatprep.subr.mxu0 0.0
    %274 = vmatpush1.xpose.msra.mxu0 0.0
    %275 = vmatprep.subr.mxu0 0.0
    %276 = vmatpush1.xpose.msra.mxu0 0.0
    %277 = vmatprep.subr.mxu0 0.0
    %278 = vmatpush1.xpose.msra.mxu0 0.0
    %279 = vmatprep.subr.mxu0 0.0
    %280 = vmatpush1.xpose.msra.mxu0 0.0
    %281 = vmatprep.subr.mxu0 0.0
    %282 = vmatpush1.xpose.msra.mxu0 0.0
    %283 = vmatprep.subr.mxu0 0.0
    %284 = vmatpush1.xpose.msra.mxu0 0.0
    %285 = vmatprep.subr.mxu0 0.0
    %286 = vmatpush1.xpose.msra.mxu0 0.0
    %287 = vmatprep.subr.mxu0 0.0
    %288 = vmatpush1.xpose.msra.mxu0 0.0
    %289 = vmatprep.subr.mxu0 0.0
    %290 = vmatpush1.xpose.msra.mxu0 0.0
    %291 = vmatprep.subr.mxu0 0.0
    %292 = vmatpush1.xpose.msra.mxu0 0.0
    %293 = vmatprep.subr.mxu0 0.0
    %294 = vmatpush1.xpose.msra.mxu0 0.0
    %295 = vmatprep.subr.mxu0 0.0
    %296 = vmatpush1.xpose.msra.mxu0 0.0
    %297 = vmatprep.subr.mxu0 0.0
    %298 = vmatpush1.xpose.msra.mxu0 0.0
    %299 = vmatprep.subr.mxu0 0.0
    %300 = vmatpush1.xpose.msra.mxu0 0.0
    %301 = vmatprep.subr.mxu0 0.0
    %302 = vmatpush1.xpose.msra.mxu0 0.0
    %303 = vmatprep.subr.mxu0 0.0
    %304 = vmatpush1.xpose.msra.mxu0 0.0
    %305 = vmatprep.subr.mxu0 0.0
    %306 = vmatpush1.xpose.msra.mxu0 0.0
    %307 = vmatprep.subr.mxu0 0.0
    %308 = vmatpush1.xpose.msra.mxu0 0.0
    %309 = vmatprep.subr.mxu0 0.0
    %310 = vmatpush1.xpose.msra.mxu0 0.0
    %311 = vmatprep.subr.mxu0 0.0
    %312 = vmatpush1.xpose.msra.mxu0 0.0
    %313 = vmatprep.subr.mxu0 0.0
    %314 = vmatpush1.xpose.msra.mxu0 0.0
    %315 = vmatprep.subr.mxu0 0.0
    %316 = vmatpush1.xpose.msra.mxu0 0.0
    %317 = vmatprep.subr.mxu0 0.0
    %318 = vmatpush1.xpose.msra.mxu0 0.0
    %319 = vmatprep.subr.mxu0 0.0
    %320 = vmatpush1.xpose.msra.mxu0 0.0
    %321 = vmatprep.subr.mxu0 0.0
    %322 = vmatpush1.xpose.msra.mxu0 0.0
    %323 = vmatprep.subr.mxu0 0.0
    %324 = vmatpush1.xpose.msra.mxu0 0.0
    %325 = vmatprep.subr.mxu0 0.0
    %326 = vmatpush1.xpose.msra.mxu0 0.0
    %327 = vmatprep.mubr.f32.mxu0 0.0
    %328 = vmatmul.mubr.f32.gmra.mrb[0].mxu0 %v207
    %v329 = vpop.f32.mrb[0].mxu0
    %v330 = vadd.f32 %v226, %v329
    %v331 = vpop.f32.mrb[0].mxu0
    %332 = vmatprep.mubr.f32.mxu0 0.0
    %333 = vmatmul.mubr.f32.gmra.mrb[0].mxu0 %v208
    %v334 = vpop.f32.mrb[0].mxu0
    %v335 = vadd.f32 %v231, %v334
    %v336 = vpop.f32.mrb[0].mxu0
    %337 = vmatprep.mubr.f32.mxu0 0.0
    %338 = vmatmul.mubr.f32.gmra.mrb[0].mxu0 %v209
    %v339 = vpop.f32.mrb[0].mxu0
    %v340 = vadd.f32 %v236, %v339
    %v341 = vpop.f32.mrb[0].mxu0
    %342 = vmatprep.mubr.f32.mxu0 0.0
    %343 = vmatmul.mubr.f32.gmra.mrb[0].mxu0 %v210
    %v344 = vpop.f32.mrb[0].mxu0
    %v345 = vadd.f32 %v241, %v344
    %v346 = vpop.f32.mrb[0].mxu0
    %347 = vmatprep.mubr.f32.mxu0 0.0
    %348 = vmatmul.mubr.f32.gmra.mrb[0].mxu0 %v211
    %v349 = vpop.f32.mrb[0].mxu0
    %v350 = vadd.f32 %v246, %v349
    %v351 = vpop.f32.mrb[0].mxu0
    %352 = vmatprep.mubr.f32.mxu0 0.0
    %353 = vmatmul.mubr.f32.gmra.mrb[0].mxu0 %v212
    %v354 = vpop.f32.mrb[0].mxu0
    %v355 = vadd.f32 %v251, %v354
    %v356 = vpop.f32.mrb[0].mxu0
    %357 = vmatprep.mubr.f32.mxu0 0.0
    %358 = vmatmul.mubr.f32.gmra.mrb[0].mxu0 %v213
    %v359 = vpop.f32.mrb[0].mxu0
    %v360 = vadd.f32 %v256, %v359
    %v361 = vpop.f32.mrb[0].mxu0
    %362 = vmatprep.mubr.f32.mxu0 0.0
    %363 = vmatmul.mubr.f32.gmra.mrb[0].mxu0 %v214
    %v364 = vpop.f32.mrb[0].mxu0
    %v365 = vadd.f32 %v261, %v364
    %v366 = vpop.f32.mrb[0].mxu0
    %367 = vdwg.mxu0
    %v368 = vld [vmem:[%s2] sm:$0xff]
    %v369 = vld [vmem:[%s2 + $0x8] sm:$0xff]
    %v370 = vld [vmem:[%s2 + $0x10] sm:$0xff]
    %v371 = vld [vmem:[%s2 + $0x18] sm:$0xff]
    %v372 = vld [vmem:[%s2 + $0x20] sm:$0xff]
    %v373 = vld [vmem:[%s2 + $0x28] sm:$0xff]
    %v374 = vld [vmem:[%s2 + $0x30] sm:$0xff]
    %v375 = vld [vmem:[%s2 + $0x38] sm:$0xff]
    %v376 = vld [vmem:[%s2 + $0x40] sm:$0xff]
    %v377 = vld [vmem:[%s2 + $0x48] sm:$0xff]
    %v378 = vld [vmem:[%s2 + $0x50] sm:$0xff]
    %v379 = vld [vmem:[%s2 + $0x58] sm:$0xff]
    %v380 = vld [vmem:[%s2 + $0x60] sm:$0xff]
    %v381 = vld [vmem:[%s2 + $0x68] sm:$0xff]
    %v382 = vld [vmem:[%s2 + $0x70] sm:$0xff]
    %v383 = vld [vmem:[%s2 + $0x78] sm:$0xff]
    %v384 = vld [vmem:[#allocation7] sm:$0xff]
    %v385 = vld [vmem:[#allocation7 + $0x8] sm:$0xff]
    %v386 = vld [vmem:[#allocation7 + $0x10] sm:$0xff]
    %v387 = vld [vmem:[#allocation7 + $0x18] sm:$0xff]
    %vm388 = vcmask 64512
    %v390 = vsel %vm388, %v368, 0
    %v393 = vsel %vm388, %v369, 0
    %v396 = vsel %vm388, %v370, 0
    %v399 = vsel %vm388, %v371, 0
    %401 = vmatprep.subr.mxu0 0.0
    %402 = vmatpush1.msra.mxu0 %v330
    %403 = vmatprep.subr.mxu0 0.0
    %404 = vmatpush1.msra.mxu0 0.0
    %405 = vmatprep.subr.mxu0 0.0
    %406 = vmatpush1.msra.mxu0 0.0
    %407 = vmatprep.subr.mxu0 0.0
    %408 = vmatpush1.msra.mxu0 0.0
    %409 = vmatprep.subr.mxu0 0.0
    %410 = vmatpush1.msra.mxu0 0.0
    %411 = vmatprep.subr.mxu0 0.0
    %412 = vmatpush1.msra.mxu0 0.0
    %413 = vmatprep.subr.mxu0 0.0
    %414 = vmatpush1.msra.mxu0 0.0
    %415 = vmatprep.subr.mxu0 0.0
    %416 = vmatpush1.msra.mxu0 0.0
    %417 = vmatprep.subr.mxu0 0.0
    %418 = vmatpush1.msra.mxu0 0.0
    %419 = vmatprep.subr.mxu0 0.0
    %420 = vmatpush1.msra.mxu0 0.0
    %421 = vmatprep.subr.mxu0 0.0
    %422 = vmatpush1.msra.mxu0 0.0
    %423 = vmatprep.subr.mxu0 0.0
    %424 = vmatpush1.msra.mxu0 0.0
    %425 = vmatprep.subr.mxu0 0.0
    %426 = vmatpush1.msra.mxu0 0.0
    %427 = vmatprep.subr.mxu0 0.0
    %428 = vmatpush1.msra.mxu0 0.0
    %429 = vmatprep.subr.mxu0 0.0
    %430 = vmatpush1.msra.mxu0 0.0
    %431 = vmatprep.subr.mxu0 0.0
    %432 = vmatpush1.msra.mxu0 0.0
    %433 = vmatprep.subr.mxu0 0.0
    %434 = vmatpush1.msra.mxu0 0.0
    %435 = vmatprep.subr.mxu0 0.0
    %436 = vmatpush1.msra.mxu0 0.0
    %437 = vmatprep.subr.mxu0 0.0
    %438 = vmatpush1.msra.mxu0 0.0
    %439 = vmatprep.subr.mxu0 0.0
    %440 = vmatpush1.msra.mxu0 0.0
    %441 = vmatprep.subr.mxu0 0.0
    %442 = vmatpush1.msra.mxu0 0.0
    %443 = vmatprep.subr.mxu0 0.0
    %444 = vmatpush1.msra.mxu0 0.0
    %445 = vmatprep.subr.mxu0 0.0
    %446 = vmatpush1.msra.mxu0 0.0
    %447 = vmatprep.subr.mxu0 0.0
    %448 = vmatpush1.msra.mxu0 0.0
    %449 = vmatprep.subr.mxu0 0.0
    %450 = vmatpush1.msra.mxu0 0.0
    %451 = vmatprep.subr.mxu0 0.0
    %452 = vmatpush1.msra.mxu0 0.0
    %453 = vmatprep.subr.mxu0 0.0
    %454 = vmatpush1.msra.mxu0 0.0
    %455 = vmatprep.subr.mxu0 0.0
    %456 = vmatpush1.msra.mxu0 0.0
    %457 = vmatprep.subr.mxu0 0.0
    %458 = vmatpush1.msra.mxu0 0.0
    %459 = vmatprep.subr.mxu0 0.0
    %460 = vmatpush1.msra.mxu0 0.0
    %461 = vmatprep.subr.mxu0 0.0
    %462 = vmatpush1.msra.mxu0 0.0
    %463 = vmatprep.subr.mxu0 0.0
    %464 = vmatpush1.msra.mxu0 0.0
    %465 = vmatprep.mubr.f32.mxu0 0.0
    %466 = vmatmul.mubr.f32.gmra.mrb[0].mxu0 %v390
    %v467 = vpop.f32.mrb[0].mxu0
    %v468 = vadd.f32 %v384, %v467
    %v469 = vpop.f32.mrb[0].mxu0
    %470 = vmatprep.mubr.f32.mxu0 0.0
    %471 = vmatmul.mubr.f32.gmra.mrb[0].mxu0 %v393
    %v472 = vpop.f32.mrb[0].mxu0
    %v473 = vadd.f32 %v385, %v472
    %v474 = vpop.f32.mrb[0].mxu0
    %475 = vmatprep.mubr.f32.mxu0 0.0
    %476 = vmatmul.mubr.f32.gmra.mrb[0].mxu0 %v396
    %v477 = vpop.f32.mrb[0].mxu0
    %v478 = vadd.f32 %v386, %v477
    %v479 = vpop.f32.mrb[0].mxu0
    %480 = vmatprep.mubr.f32.mxu0 0.0
    %481 = vmatmul.mubr.f32.gmra.mrb[0].mxu0 %v399
    %v482 = vpop.f32.mrb[0].mxu0
    %v483 = vadd.f32 %v387, %v482
    %v484 = vpop.f32.mrb[0].mxu0
    %485 = vdwg.mxu0
    %v487 = vsel %vm388, %v372, 0
    %v490 = vsel %vm388, %v373, 0
    %v493 = vsel %vm388, %v374, 0
    %v496 = vsel %vm388, %v375, 0
    %498 = vmatprep.subr.mxu0 0.0
    %499 = vmatpush1.msra.mxu0 %v335
    %500 = vmatprep.subr.mxu0 0.0
    %501 = vmatpush1.msra.mxu0 0.0
    %502 = vmatprep.subr.mxu0 0.0
    %503 = vmatpush1.msra.mxu0 0.0
    %504 = vmatprep.subr.mxu0 0.0
    %505 = vmatpush1.msra.mxu0 0.0
    %506 = vmatprep.subr.mxu0 0.0
    %507 = vmatpush1.msra.mxu0 0.0
    %508 = vmatprep.subr.mxu0 0.0
    %509 = vmatpush1.msra.mxu0 0.0
    %510 = vmatprep.subr.mxu0 0.0
    %511 = vmatpush1.msra.mxu0 0.0
    %512 = vmatprep.subr.mxu0 0.0
    %513 = vmatpush1.msra.mxu0 0.0
    %514 = vmatprep.subr.mxu0 0.0
    %515 = vmatpush1.msra.mxu0 0.0
    %516 = vmatprep.subr.mxu0 0.0
    %517 = vmatpush1.msra.mxu0 0.0
    %518 = vmatprep.subr.mxu0 0.0
    %519 = vmatpush1.msra.mxu0 0.0
    %520 = vmatprep.subr.mxu0 0.0
    %521 = vmatpush1.msra.mxu0 0.0
    %522 = vmatprep.subr.mxu0 0.0
    %523 = vmatpush1.msra.mxu0 0.0
    %524 = vmatprep.subr.mxu0 0.0
    %525 = vmatpush1.msra.mxu0 0.0
    %526 = vmatprep.subr.mxu0 0.0
    %527 = vmatpush1.msra.mxu0 0.0
    %528 = vmatprep.subr.mxu0 0.0
    %529 = vmatpush1.msra.mxu0 0.0
    %530 = vmatprep.subr.mxu0 0.0
    %531 = vmatpush1.msra.mxu0 0.0
    %532 = vmatprep.subr.mxu0 0.0
    %533 = vmatpush1.msra.mxu0 0.0
    %534 = vmatprep.subr.mxu0 0.0
    %535 = vmatpush1.msra.mxu0 0.0
    %536 = vmatprep.subr.mxu0 0.0
    %537 = vmatpush1.msra.mxu0 0.0
    %538 = vmatprep.subr.mxu0 0.0
    %539 = vmatpush1.msra.mxu0 0.0
    %540 = vmatprep.subr.mxu0 0.0
    %541 = vmatpush1.msra.mxu0 0.0
    %542 = vmatprep.subr.mxu0 0.0
    %543 = vmatpush1.msra.mxu0 0.0
    %544 = vmatprep.subr.mxu0 0.0
    %545 = vmatpush1.msra.mxu0 0.0
    %546 = vmatprep.subr.mxu0 0.0
    %547 = vmatpush1.msra.mxu0 0.0
    %548 = vmatprep.subr.mxu0 0.0
    %549 = vmatpush1.msra.mxu0 0.0
    %550 = vmatprep.subr.mxu0 0.0
    %551 = vmatpush1.msra.mxu0 0.0
    %552 = vmatprep.subr.mxu0 0.0
    %553 = vmatpush1.msra.mxu0 0.0
    %554 = vmatprep.subr.mxu0 0.0
    %555 = vmatpush1.msra.mxu0 0.0
    %556 = vmatprep.subr.mxu0 0.0
    %557 = vmatpush1.msra.mxu0 0.0
    %558 = vmatprep.subr.mxu0 0.0
    %559 = vmatpush1.msra.mxu0 0.0
    %560 = vmatprep.subr.mxu0 0.0
    %561 = vmatpush1.msra.mxu0 0.0
    %562 = vmatprep.mubr.f32.mxu0 0.0
    %563 = vmatmul.mubr.f32.gmra.mrb[0].mxu0 %v487
    %v564 = vpop.f32.mrb[0].mxu0
    %v565 = vadd.f32 %v384, %v564
    %v566 = vpop.f32.mrb[0].mxu0
    %567 = vmatprep.mubr.f32.mxu0 0.0
    %568 = vmatmul.mubr.f32.gmra.mrb[0].mxu0 %v490
    %v569 = vpop.f32.mrb[0].mxu0
    %v570 = vadd.f32 %v385, %v569
    %v571 = vpop.f32.mrb[0].mxu0
    %572 = vmatprep.mubr.f32.mxu0 0.0
    %573 = vmatmul.mubr.f32.gmra.mrb[0].mxu0 %v493
    %v574 = vpop.f32.mrb[0].mxu0
    %v575 = vadd.f32 %v386, %v574
    %v576 = vpop.f32.mrb[0].mxu0
    %577 = vmatprep.mubr.f32.mxu0 0.0
    %578 = vmatmul.mubr.f32.gmra.mrb[0].mxu0 %v496
    %v579 = vpop.f32.mrb[0].mxu0
    %v580 = vadd.f32 %v387, %v579
    %v581 = vpop.f32.mrb[0].mxu0
    %582 = vdwg.mxu0
    %v584 = vsel %vm388, %v376, 0
    %v587 = vsel %vm388, %v377, 0
    %v590 = vsel %vm388, %v378, 0
    %v593 = vsel %vm388, %v379, 0
    %595 = vmatprep.subr.mxu0 0.0
    %596 = vmatpush1.msra.mxu0 %v340
    %597 = vmatprep.subr.mxu0 0.0
    %598 = vmatpush1.msra.mxu0 0.0
    %599 = vmatprep.subr.mxu0 0.0
    %600 = vmatpush1.msra.mxu0 0.0
    %601 = vmatprep.subr.mxu0 0.0
    %602 = vmatpush1.msra.mxu0 0.0
    %603 = vmatprep.subr.mxu0 0.0
    %604 = vmatpush1.msra.mxu0 0.0
    %605 = vmatprep.subr.mxu0 0.0
    %606 = vmatpush1.msra.mxu0 0.0
    %607 = vmatprep.subr.mxu0 0.0
    %608 = vmatpush1.msra.mxu0 0.0
    %609 = vmatprep.subr.mxu0 0.0
    %610 = vmatpush1.msra.mxu0 0.0
    %611 = vmatprep.subr.mxu0 0.0
    %612 = vmatpush1.msra.mxu0 0.0
    %613 = vmatprep.subr.mxu0 0.0
    %614 = vmatpush1.msra.mxu0 0.0
    %615 = vmatprep.subr.mxu0 0.0
    %616 = vmatpush1.msra.mxu0 0.0
    %617 = vmatprep.subr.mxu0 0.0
    %618 = vmatpush1.msra.mxu0 0.0
    %619 = vmatprep.subr.mxu0 0.0
    %620 = vmatpush1.msra.mxu0 0.0
    %621 = vmatprep.subr.mxu0 0.0
    %622 = vmatpush1.msra.mxu0 0.0
    %623 = vmatprep.subr.mxu0 0.0
    %624 = vmatpush1.msra.mxu0 0.0
    %625 = vmatprep.subr.mxu0 0.0
    %626 = vmatpush1.msra.mxu0 0.0
    %627 = vmatprep.subr.mxu0 0.0
    %628 = vmatpush1.msra.mxu0 0.0
    %629 = vmatprep.subr.mxu0 0.0
    %630 = vmatpush1.msra.mxu0 0.0
    %631 = vmatprep.subr.mxu0 0.0
    %632 = vmatpush1.msra.mxu0 0.0
    %633 = vmatprep.subr.mxu0 0.0
    %634 = vmatpush1.msra.mxu0 0.0
    %635 = vmatprep.subr.mxu0 0.0
    %636 = vmatpush1.msra.mxu0 0.0
    %637 = vmatprep.subr.mxu0 0.0
    %638 = vmatpush1.msra.mxu0 0.0
    %639 = vmatprep.subr.mxu0 0.0
    %640 = vmatpush1.msra.mxu0 0.0
    %641 = vmatprep.subr.mxu0 0.0
    %642 = vmatpush1.msra.mxu0 0.0
    %643 = vmatprep.subr.mxu0 0.0
    %644 = vmatpush1.msra.mxu0 0.0
    %645 = vmatprep.subr.mxu0 0.0
    %646 = vmatpush1.msra.mxu0 0.0
    %647 = vmatprep.subr.mxu0 0.0
    %648 = vmatpush1.msra.mxu0 0.0
    %649 = vmatprep.subr.mxu0 0.0
    %650 = vmatpush1.msra.mxu0 0.0
    %651 = vmatprep.subr.mxu0 0.0
    %652 = vmatpush1.msra.mxu0 0.0
    %653 = vmatprep.subr.mxu0 0.0
    %654 = vmatpush1.msra.mxu0 0.0
    %655 = vmatprep.subr.mxu0 0.0
    %656 = vmatpush1.msra.mxu0 0.0
    %657 = vmatprep.subr.mxu0 0.0
    %658 = vmatpush1.msra.mxu0 0.0
    %659 = vmatprep.mubr.f32.mxu0 0.0
    %660 = vmatmul.mubr.f32.gmra.mrb[0].mxu0 %v584
    %v661 = vpop.f32.mrb[0].mxu0
    %v662 = vadd.f32 %v384, %v661
    %v663 = vpop.f32.mrb[0].mxu0
    %664 = vmatprep.mubr.f32.mxu0 0.0
    %665 = vmatmul.mubr.f32.gmra.mrb[0].mxu0 %v587
    %v666 = vpop.f32.mrb[0].mxu0
    %v667 = vadd.f32 %v385, %v666
    %v668 = vpop.f32.mrb[0].mxu0
    %669 = vmatprep.mubr.f32.mxu0 0.0
    %670 = vmatmul.mubr.f32.gmra.mrb[0].mxu0 %v590
    %v671 = vpop.f32.mrb[0].mxu0
    %v672 = vadd.f32 %v386, %v671
    %v673 = vpop.f32.mrb[0].mxu0
    %674 = vmatprep.mubr.f32.mxu0 0.0
    %675 = vmatmul.mubr.f32.gmra.mrb[0].mxu0 %v593
    %v676 = vpop.f32.mrb[0].mxu0
    %v677 = vadd.f32 %v387, %v676
    %v678 = vpop.f32.mrb[0].mxu0
    %679 = vdwg.mxu0
    %v681 = vsel %vm388, %v380, 0
    %v684 = vsel %vm388, %v381, 0
    %v687 = vsel %vm388, %v382, 0
    %v690 = vsel %vm388, %v383, 0
    %692 = vmatprep.subr.mxu0 0.0
    %693 = vmatpush1.msra.mxu0 %v345
    %694 = vmatprep.subr.mxu0 0.0
    %695 = vmatpush1.msra.mxu0 0.0
    %696 = vmatprep.subr.mxu0 0.0
    %697 = vmatpush1.msra.mxu0 0.0
    %698 = vmatprep.subr.mxu0 0.0
    %699 = vmatpush1.msra.mxu0 0.0
    %700 = vmatprep.subr.mxu0 0.0
    %701 = vmatpush1.msra.mxu0 0.0
    %702 = vmatprep.subr.mxu0 0.0
    %703 = vmatpush1.msra.mxu0 0.0
    %704 = vmatprep.subr.mxu0 0.0
    %705 = vmatpush1.msra.mxu0 0.0
    %706 = vmatprep.subr.mxu0 0.0
    %707 = vmatpush1.msra.mxu0 0.0
    %708 = vmatprep.subr.mxu0 0.0
    %709 = vmatpush1.msra.mxu0 0.0
    %710 = vmatprep.subr.mxu0 0.0
    %711 = vmatpush1.msra.mxu0 0.0
    %712 = vmatprep.subr.mxu0 0.0
    %713 = vmatpush1.msra.mxu0 0.0
    %714 = vmatprep.subr.mxu0 0.0
    %715 = vmatpush1.msra.mxu0 0.0
    %716 = vmatprep.subr.mxu0 0.0
    %717 = vmatpush1.msra.mxu0 0.0
    %718 = vmatprep.subr.mxu0 0.0
    %719 = vmatpush1.msra.mxu0 0.0
    %720 = vmatprep.subr.mxu0 0.0
    %721 = vmatpush1.msra.mxu0 0.0
    %722 = vmatprep.subr.mxu0 0.0
    %723 = vmatpush1.msra.mxu0 0.0
    %724 = vmatprep.subr.mxu0 0.0
    %725 = vmatpush1.msra.mxu0 0.0
    %726 = vmatprep.subr.mxu0 0.0
    %727 = vmatpush1.msra.mxu0 0.0
    %728 = vmatprep.subr.mxu0 0.0
    %729 = vmatpush1.msra.mxu0 0.0
    %730 = vmatprep.subr.mxu0 0.0
    %731 = vmatpush1.msra.mxu0 0.0
    %732 = vmatprep.subr.mxu0 0.0
    %733 = vmatpush1.msra.mxu0 0.0
    %734 = vmatprep.subr.mxu0 0.0
    %735 = vmatpush1.msra.mxu0 0.0
    %736 = vmatprep.subr.mxu0 0.0
    %737 = vmatpush1.msra.mxu0 0.0
    %738 = vmatprep.subr.mxu0 0.0
    %739 = vmatpush1.msra.mxu0 0.0
    %740 = vmatprep.subr.mxu0 0.0
    %741 = vmatpush1.msra.mxu0 0.0
    %742 = vmatprep.subr.mxu0 0.0
    %743 = vmatpush1.msra.mxu0 0.0
    %744 = vmatprep.subr.mxu0 0.0
    %745 = vmatpush1.msra.mxu0 0.0
    %746 = vmatprep.subr.mxu0 0.0
    %747 = vmatpush1.msra.mxu0 0.0
    %748 = vmatprep.subr.mxu0 0.0
    %749 = vmatpush1.msra.mxu0 0.0
    %750 = vmatprep.subr.mxu0 0.0
    %751 = vmatpush1.msra.mxu0 0.0
    %752 = vmatprep.subr.mxu0 0.0
    %753 = vmatpush1.msra.mxu0 0.0
    %754 = vmatprep.subr.mxu0 0.0
    %755 = vmatpush1.msra.mxu0 0.0
    %756 = vmatprep.mubr.f32.mxu0 0.0
    %757 = vmatmul.mubr.f32.gmra.mrb[0].mxu0 %v681
    %v758 = vpop.f32.mrb[0].mxu0
    %v759 = vadd.f32 %v384, %v758
    %v760 = vpop.f32.mrb[0].mxu0
    %761 = vmatprep.mubr.f32.mxu0 0.0
    %762 = vmatmul.mubr.f32.gmra.mrb[0].mxu0 %v684
    %v763 = vpop.f32.mrb[0].mxu0
    %v764 = vadd.f32 %v385, %v763
    %v765 = vpop.f32.mrb[0].mxu0
    %766 = vmatprep.mubr.f32.mxu0 0.0
    %767 = vmatmul.mubr.f32.gmra.mrb[0].mxu0 %v687
    %v768 = vpop.f32.mrb[0].mxu0
    %v769 = vadd.f32 %v386, %v768
    %v770 = vpop.f32.mrb[0].mxu0
    %771 = vmatprep.mubr.f32.mxu0 0.0
    %772 = vmatmul.mubr.f32.gmra.mrb[0].mxu0 %v690
    %v773 = vpop.f32.mrb[0].mxu0
    %v774 = vadd.f32 %v387, %v773
    %v775 = vpop.f32.mrb[0].mxu0
    %776 = vdwg.mxu0
    %vm777 = vcmask 261120
    %v778 = vsel %vm777, %v468, -inf
    %779 = vmax.xlane.f32.xlu0 %v778
    %v780 = vpop.xlane.xlu0 %779
    %v781 = vsel %vm777, %v473, -inf
    %782 = vmax.xlane.f32.xlu0 %v781
    %v783 = vpop.xlane.xlu0 %782
    %v784 = vsel %vm777, %v478, -inf
    %785 = vmax.xlane.f32.xlu0 %v784
    %v786 = vpop.xlane.xlu0 %785
    %v787 = vsel %vm777, %v483, -inf
    %788 = vmax.xlane.f32.xlu0 %v787
    %v789 = vpop.xlane.xlu0 %788
    %v790 = vsel %vm777, %v565, -inf
    %791 = vmax.xlane.f32.xlu0 %v790
    %v792 = vpop.xlane.xlu0 %791
    %v793 = vsel %vm777, %v570, -inf
    %794 = vmax.xlane.f32.xlu0 %v793
    %v795 = vpop.xlane.xlu0 %794
    %v796 = vsel %vm777, %v575, -inf
    %797 = vmax.xlane.f32.xlu0 %v796
    %v798 = vpop.xlane.xlu0 %797
    %v799 = vsel %vm777, %v580, -inf
    %800 = vmax.xlane.f32.xlu0 %v799
    %v801 = vpop.xlane.xlu0 %800
    %v802 = vsel %vm777, %v662, -inf
    %803 = vmax.xlane.f32.xlu0 %v802
    %v804 = vpop.xlane.xlu0 %803
    %v805 = vsel %vm777, %v667, -inf
    %806 = vmax.xlane.f32.xlu0 %v805
    %v807 = vpop.xlane.xlu0 %806
    %v808 = vsel %vm777, %v672, -inf
    %809 = vmax.xlane.f32.xlu0 %v808
    %v810 = vpop.xlane.xlu0 %809
    %v811 = vsel %vm777, %v677, -inf
    %812 = vmax.xlane.f32.xlu0 %v811
    %v813 = vpop.xlane.xlu0 %812
    %v814 = vsel %vm777, %v759, -inf
    %815 = vmax.xlane.f32.xlu0 %v814
    %v816 = vpop.xlane.xlu0 %815
    %v817 = vsel %vm777, %v764, -inf
    %818 = vmax.xlane.f32.xlu0 %v817
    %v819 = vpop.xlane.xlu0 %818
    %v820 = vsel %vm777, %v769, -inf
    %821 = vmax.xlane.f32.xlu0 %v820
    %v822 = vpop.xlane.xlu0 %821
    %v823 = vsel %vm777, %v774, -inf
    %824 = vmax.xlane.f32.xlu0 %v823
    %v825 = vpop.xlane.xlu0 %824
    %v826 = vsub.f32 %v468, %v780
    %v827 = vsub.f32 %v473, %v783
    %v828 = vsub.f32 %v478, %v786
    %v829 = vsub.f32 %v483, %v789
    %v830 = vsub.f32 %v565, %v792
    %v831 = vsub.f32 %v570, %v795
    %v832 = vsub.f32 %v575, %v798
    %v833 = vsub.f32 %v580, %v801
    %v834 = vsub.f32 %v662, %v804
    %v835 = vsub.f32 %v667, %v807
    %v836 = vsub.f32 %v672, %v810
    %v837 = vsub.f32 %v677, %v813
    %v838 = vsub.f32 %v759, %v816
    %v839 = vsub.f32 %v764, %v819
    %v840 = vsub.f32 %v769, %v822
    %v841 = vsub.f32 %v774, %v825
    %v842 = vmul.f32 %v826, 1.442695
    %v843 = vpow.pop %v842
    %v844 = vmul.f32 %v827, 1.442695
    %v845 = vpow.pop %v844
    %v846 = vmul.f32 %v828, 1.442695
    %v847 = vpow.pop %v846
    %v848 = vmul.f32 %v829, 1.442695
    %v849 = vpow.pop %v848
    %v850 = vmul.f32 %v830, 1.442695
    %v851 = vpow.pop %v850
    %v852 = vmul.f32 %v831, 1.442695
    %v853 = vpow.pop %v852
    %v854 = vmul.f32 %v832, 1.442695
    %v855 = vpow.pop %v854
    %v856 = vmul.f32 %v833, 1.442695
    %v857 = vpow.pop %v856
    %v858 = vmul.f32 %v834, 1.442695
    %v859 = vpow.pop %v858
    %v860 = vmul.f32 %v835, 1.442695
    %v861 = vpow.pop %v860
    %v862 = vmul.f32 %v836, 1.442695
    %v863 = vpow.pop %v862
    %v864 = vmul.f32 %v837, 1.442695
    %v865 = vpow.pop %v864
    %v866 = vmul.f32 %v838, 1.442695
    %v867 = vpow.pop %v866
    %v868 = vmul.f32 %v839, 1.442695
    %v869 = vpow.pop %v868
    %v870 = vmul.f32 %v840, 1.442695
    %v871 = vpow.pop %v870
    %v872 = vmul.f32 %v841, 1.442695
    %v873 = vpow.pop %v872
    %v874 = vsel %vm777, %v843, 0.0
    %875 = vadd.xlane.f32.xlu0 %v874
    %v876 = vpop.xlane.xlu0 %875
    %v877 = vsel %vm777, %v845, 0.0
    %878 = vadd.xlane.f32.xlu0 %v877
    %v879 = vpop.xlane.xlu0 %878
    %v880 = vsel %vm777, %v847, 0.0
    %881 = vadd.xlane.f32.xlu0 %v880
    %v882 = vpop.xlane.xlu0 %881
    %v883 = vsel %vm777, %v849, 0.0
    %884 = vadd.xlane.f32.xlu0 %v883
    %v885 = vpop.xlane.xlu0 %884
    %v886 = vsel %vm777, %v851, 0.0
    %887 = vadd.xlane.f32.xlu0 %v886
    %v888 = vpop.xlane.xlu0 %887
    %v889 = vsel %vm777, %v853, 0.0
    %890 = vadd.xlane.f32.xlu0 %v889
    %v891 = vpop.xlane.xlu0 %890
    %v892 = vsel %vm777, %v855, 0.0
    %893 = vadd.xlane.f32.xlu0 %v892
    %v894 = vpop.xlane.xlu0 %893
    %v895 = vsel %vm777, %v857, 0.0
    %896 = vadd.xlane.f32.xlu0 %v895
    %v897 = vpop.xlane.xlu0 %896
    %v898 = vsel %vm777, %v859, 0.0
    %899 = vadd.xlane.f32.xlu0 %v898
    %v900 = vpop.xlane.xlu0 %899
    %v901 = vsel %vm777, %v861, 0.0
    %902 = vadd.xlane.f32.xlu0 %v901
    %v903 = vpop.xlane.xlu0 %902
    %v904 = vsel %vm777, %v863, 0.0
    %905 = vadd.xlane.f32.xlu0 %v904
    %v906 = vpop.xlane.xlu0 %905
    %v907 = vsel %vm777, %v865, 0.0
    %908 = vadd.xlane.f32.xlu0 %v907
    %v909 = vpop.xlane.xlu0 %908
    %v910 = vsel %vm777, %v867, 0.0
    %911 = vadd.xlane.f32.xlu0 %v910
    %v912 = vpop.xlane.xlu0 %911
    %v913 = vsel %vm777, %v869, 0.0
    %914 = vadd.xlane.f32.xlu0 %v913
    %v915 = vpop.xlane.xlu0 %914
    %v916 = vsel %vm777, %v871, 0.0
    %917 = vadd.xlane.f32.xlu0 %v916
    %v918 = vpop.xlane.xlu0 %917
    %v919 = vsel %vm777, %v873, 0.0
    %920 = vadd.xlane.f32.xlu0 %v919
    %v921 = vpop.xlane.xlu0 %920
    %v922 = vrcp.pop %v876
    %v923 = vrcp.pop %v879
    %v924 = vrcp.pop %v882
    %v925 = vrcp.pop %v885
    %v926 = vrcp.pop %v888
    %v927 = vrcp.pop %v891
    %v928 = vrcp.pop %v894
    %v929 = vrcp.pop %v897
    %v930 = vrcp.pop %v900
    %v931 = vrcp.pop %v903
    %v932 = vrcp.pop %v906
    %v933 = vrcp.pop %v909
    %v934 = vrcp.pop %v912
    %v935 = vrcp.pop %v915
    %v936 = vrcp.pop %v918
    %v937 = vrcp.pop %v921
    %v938 = vmul.f32 %v843, %v922
    %v939 = vmul.f32 %v845, %v923
    %v940 = vmul.f32 %v847, %v924
    %v941 = vmul.f32 %v849, %v925
    %v942 = vmul.f32 %v851, %v926
    %v943 = vmul.f32 %v853, %v927
    %v944 = vmul.f32 %v855, %v928
    %v945 = vmul.f32 %v857, %v929
    %v946 = vmul.f32 %v859, %v930
    %v947 = vmul.f32 %v861, %v931
    %v948 = vmul.f32 %v863, %v932
    %v949 = vmul.f32 %v865, %v933
    %v950 = vmul.f32 %v867, %v934
    %v951 = vmul.f32 %v869, %v935
    %v952 = vmul.f32 %v871, %v936
    %v953 = vmul.f32 %v873, %v937
    %v955 = vsel %vm777, %v350, 0
    %v958 = vsel %vm777, %v938, 0
    %v961 = vsel %vm777, %v939, 0
    %v964 = vsel %vm777, %v940, 0
    %v967 = vsel %vm777, %v941, 0
    %969 = vmatprep.subr.mxu0 0.0
    %970 = vmatpush1.xpose.msra.mxu0 %v958
    %971 = vmatprep.subr.mxu0 0.0
    %972 = vmatpush1.xpose.msra.mxu0 %v961
    %973 = vmatprep.subr.mxu0 0.0
    %974 = vmatpush1.xpose.msra.mxu0 %v964
    %975 = vmatprep.subr.mxu0 0.0
    %976 = vmatpush1.xpose.msra.mxu0 %v967
    %977 = vmatprep.subr.mxu0 0.0
    %978 = vmatpush1.xpose.msra.mxu0 0.0
    %979 = vmatprep.subr.mxu0 0.0
    %980 = vmatpush1.xpose.msra.mxu0 0.0
    %981 = vmatprep.subr.mxu0 0.0
    %982 = vmatpush1.xpose.msra.mxu0 0.0
    %983 = vmatprep.subr.mxu0 0.0
    %984 = vmatpush1.xpose.msra.mxu0 0.0
    %985 = vmatprep.subr.mxu0 0.0
    %986 = vmatpush1.xpose.msra.mxu0 0.0
    %987 = vmatprep.subr.mxu0 0.0
    %988 = vmatpush1.xpose.msra.mxu0 0.0
    %989 = vmatprep.subr.mxu0 0.0
    %990 = vmatpush1.xpose.msra.mxu0 0.0
    %991 = vmatprep.subr.mxu0 0.0
    %992 = vmatpush1.xpose.msra.mxu0 0.0
    %993 = vmatprep.subr.mxu0 0.0
    %994 = vmatpush1.xpose.msra.mxu0 0.0
    %995 = vmatprep.subr.mxu0 0.0
    %996 = vmatpush1.xpose.msra.mxu0 0.0
    %997 = vmatprep.subr.mxu0 0.0
    %998 = vmatpush1.xpose.msra.mxu0 0.0
    %999 = vmatprep.subr.mxu0 0.0
    %1000 = vmatpush1.xpose.msra.mxu0 0.0
    %1001 = vmatprep.subr.mxu0 0.0
    %1002 = vmatpush1.xpose.msra.mxu0 0.0
    %1003 = vmatprep.subr.mxu0 0.0
    %1004 = vmatpush1.xpose.msra.mxu0 0.0
    %1005 = vmatprep.subr.mxu0 0.0
    %1006 = vmatpush1.xpose.msra.mxu0 0.0
    %1007 = vmatprep.subr.mxu0 0.0
    %1008 = vmatpush1.xpose.msra.mxu0 0.0
    %1009 = vmatprep.subr.mxu0 0.0
    %1010 = vmatpush1.xpose.msra.mxu0 0.0
    %1011 = vmatprep.subr.mxu0 0.0
    %1012 = vmatpush1.xpose.msra.mxu0 0.0
    %1013 = vmatprep.subr.mxu0 0.0
    %1014 = vmatpush1.xpose.msra.mxu0 0.0
    %1015 = vmatprep.subr.mxu0 0.0
    %1016 = vmatpush1.xpose.msra.mxu0 0.0
    %1017 = vmatprep.subr.mxu0 0.0
    %1018 = vmatpush1.xpose.msra.mxu0 0.0
    %1019 = vmatprep.subr.mxu0 0.0
    %1020 = vmatpush1.xpose.msra.mxu0 0.0
    %1021 = vmatprep.subr.mxu0 0.0
    %1022 = vmatpush1.xpose.msra.mxu0 0.0
    %1023 = vmatprep.subr.mxu0 0.0
    %1024 = vmatpush1.xpose.msra.mxu0 0.0
    %1025 = vmatprep.subr.mxu0 0.0
    %1026 = vmatpush1.xpose.msra.mxu0 0.0
    %1027 = vmatprep.subr.mxu0 0.0
    %1028 = vmatpush1.xpose.msra.mxu0 0.0
    %1029 = vmatprep.subr.mxu0 0.0
    %1030 = vmatpush1.xpose.msra.mxu0 0.0
    %1031 = vmatprep.subr.mxu0 0.0
    %1032 = vmatpush1.xpose.msra.mxu0 0.0
    %1033 = vmatprep.mubr.f32.mxu0 0.0
    %1034 = vmatmul.mubr.f32.gmra.mrb[0].mxu0 %v955
    %v1035 = vpop.f32.mrb[0].mxu0
    %v1036 = vadd.f32 0.0, %v1035
    %v1037 = vpop.f32.mrb[0].mxu0
    %1038 = vdwg.mxu0
    %v1040 = vsel %vm777, %v355, 0
    %v1043 = vsel %vm777, %v942, 0
    %v1046 = vsel %vm777, %v943, 0
    %v1049 = vsel %vm777, %v944, 0
    %v1052 = vsel %vm777, %v945, 0
    %1054 = vmatprep.subr.mxu0 0.0
    %1055 = vmatpush1.xpose.msra.mxu0 %v1043
    %1056 = vmatprep.subr.mxu0 0.0
    %1057 = vmatpush1.xpose.msra.mxu0 %v1046
    %1058 = vmatprep.subr.mxu0 0.0
    %1059 = vmatpush1.xpose.msra.mxu0 %v1049
    %1060 = vmatprep.subr.mxu0 0.0
    %1061 = vmatpush1.xpose.msra.mxu0 %v1052
    %1062 = vmatprep.subr.mxu0 0.0
    %1063 = vmatpush1.xpose.msra.mxu0 0.0
    %1064 = vmatprep.subr.mxu0 0.0
    %1065 = vmatpush1.xpose.msra.mxu0 0.0
    %1066 = vmatprep.subr.mxu0 0.0
    %1067 = vmatpush1.xpose.msra.mxu0 0.0
    %1068 = vmatprep.subr.mxu0 0.0
    %1069 = vmatpush1.xpose.msra.mxu0 0.0
    %1070 = vmatprep.subr.mxu0 0.0
    %1071 = vmatpush1.xpose.msra.mxu0 0.0
    %1072 = vmatprep.subr.mxu0 0.0
    %1073 = vmatpush1.xpose.msra.mxu0 0.0
    %1074 = vmatprep.subr.mxu0 0.0
    %1075 = vmatpush1.xpose.msra.mxu0 0.0
    %1076 = vmatprep.subr.mxu0 0.0
    %1077 = vmatpush1.xpose.msra.mxu0 0.0
    %1078 = vmatprep.subr.mxu0 0.0
    %1079 = vmatpush1.xpose.msra.mxu0 0.0
    %1080 = vmatprep.subr.mxu0 0.0
    %1081 = vmatpush1.xpose.msra.mxu0 0.0
    %1082 = vmatprep.subr.mxu0 0.0
    %1083 = vmatpush1.xpose.msra.mxu0 0.0
    %1084 = vmatprep.subr.mxu0 0.0
    %1085 = vmatpush1.xpose.msra.mxu0 0.0
    %1086 = vmatprep.subr.mxu0 0.0
    %1087 = vmatpush1.xpose.msra.mxu0 0.0
    %1088 = vmatprep.subr.mxu0 0.0
    %1089 = vmatpush1.xpose.msra.mxu0 0.0
    %1090 = vmatprep.subr.mxu0 0.0
    %1091 = vmatpush1.xpose.msra.mxu0 0.0
    %1092 = vmatprep.subr.mxu0 0.0
    %1093 = vmatpush1.xpose.msra.mxu0 0.0
    %1094 = vmatprep.subr.mxu0 0.0
    %1095 = vmatpush1.xpose.msra.mxu0 0.0
    %1096 = vmatprep.subr.mxu0 0.0
    %1097 = vmatpush1.xpose.msra.mxu0 0.0
    %1098 = vmatprep.subr.mxu0 0.0
    %1099 = vmatpush1.xpose.msra.mxu0 0.0
    %1100 = vmatprep.subr.mxu0 0.0
    %1101 = vmatpush1.xpose.msra.mxu0 0.0
    %1102 = vmatprep.subr.mxu0 0.0
    %1103 = vmatpush1.xpose.msra.mxu0 0.0
    %1104 = vmatprep.subr.mxu0 0.0
    %1105 = vmatpush1.xpose.msra.mxu0 0.0
    %1106 = vmatprep.subr.mxu0 0.0
    %1107 = vmatpush1.xpose.msra.mxu0 0.0
    %1108 = vmatprep.subr.mxu0 0.0
    %1109 = vmatpush1.xpose.msra.mxu0 0.0
    %1110 = vmatprep.subr.mxu0 0.0
    %1111 = vmatpush1.xpose.msra.mxu0 0.0
    %1112 = vmatprep.subr.mxu0 0.0
    %1113 = vmatpush1.xpose.msra.mxu0 0.0
    %1114 = vmatprep.subr.mxu0 0.0
    %1115 = vmatpush1.xpose.msra.mxu0 0.0
    %1116 = vmatprep.subr.mxu0 0.0
    %1117 = vmatpush1.xpose.msra.mxu0 0.0
    %1118 = vmatprep.mubr.f32.mxu0 0.0
    %1119 = vmatmul.mubr.f32.gmra.mrb[0].mxu0 %v1040
    %v1120 = vpop.f32.mrb[0].mxu0
    %v1121 = vadd.f32 0.0, %v1120
    %v1122 = vpop.f32.mrb[0].mxu0
    %1123 = vdwg.mxu0
    %v1125 = vsel %vm777, %v360, 0
    %v1128 = vsel %vm777, %v946, 0
    %v1131 = vsel %vm777, %v947, 0
    %v1134 = vsel %vm777, %v948, 0
    %v1137 = vsel %vm777, %v949, 0
    %1139 = vmatprep.subr.mxu0 0.0
    %1140 = vmatpush1.xpose.msra.mxu0 %v1128
    %1141 = vmatprep.subr.mxu0 0.0
    %1142 = vmatpush1.xpose.msra.mxu0 %v1131
    %1143 = vmatprep.subr.mxu0 0.0
    %1144 = vmatpush1.xpose.msra.mxu0 %v1134
    %1145 = vmatprep.subr.mxu0 0.0
    %1146 = vmatpush1.xpose.msra.mxu0 %v1137
    %1147 = vmatprep.subr.mxu0 0.0
    %1148 = vmatpush1.xpose.msra.mxu0 0.0
    %1149 = vmatprep.subr.mxu0 0.0
    %1150 = vmatpush1.xpose.msra.mxu0 0.0
    %1151 = vmatprep.subr.mxu0 0.0
    %1152 = vmatpush1.xpose.msra.mxu0 0.0
    %1153 = vmatprep.subr.mxu0 0.0
    %1154 = vmatpush1.xpose.msra.mxu0 0.0
    %1155 = vmatprep.subr.mxu0 0.0
    %1156 = vmatpush1.xpose.msra.mxu0 0.0
    %1157 = vmatprep.subr.mxu0 0.0
    %1158 = vmatpush1.xpose.msra.mxu0 0.0
    %1159 = vmatprep.subr.mxu0 0.0
    %1160 = vmatpush1.xpose.msra.mxu0 0.0
    %1161 = vmatprep.subr.mxu0 0.0
    %1162 = vmatpush1.xpose.msra.mxu0 0.0
    %1163 = vmatprep.subr.mxu0 0.0
    %1164 = vmatpush1.xpose.msra.mxu0 0.0
    %1165 = vmatprep.subr.mxu0 0.0
    %1166 = vmatpush1.xpose.msra.mxu0 0.0
    %1167 = vmatprep.subr.mxu0 0.0
    %1168 = vmatpush1.xpose.msra.mxu0 0.0
    %1169 = vmatprep.subr.mxu0 0.0
    %1170 = vmatpush1.xpose.msra.mxu0 0.0
    %1171 = vmatprep.subr.mxu0 0.0
    %1172 = vmatpush1.xpose.msra.mxu0 0.0
    %1173 = vmatprep.subr.mxu0 0.0
    %1174 = vmatpush1.xpose.msra.mxu0 0.0
    %1175 = vmatprep.subr.mxu0 0.0
    %1176 = vmatpush1.xpose.msra.mxu0 0.0
    %1177 = vmatprep.subr.mxu0 0.0
    %1178 = vmatpush1.xpose.msra.mxu0 0.0
    %1179 = vmatprep.subr.mxu0 0.0
    %1180 = vmatpush1.xpose.msra.mxu0 0.0
    %1181 = vmatprep.subr.mxu0 0.0
    %1182 = vmatpush1.xpose.msra.mxu0 0.0
    %1183 = vmatprep.subr.mxu0 0.0
    %1184 = vmatpush1.xpose.msra.mxu0 0.0
    %1185 = vmatprep.subr.mxu0 0.0
    %1186 = vmatpush1.xpose.msra.mxu0 0.0
    %1187 = vmatprep.subr.mxu0 0.0
    %1188 = vmatpush1.xpose.msra.mxu0 0.0
    %1189 = vmatprep.subr.mxu0 0.0
    %1190 = vmatpush1.xpose.msra.mxu0 0.0
    %1191 = vmatprep.subr.mxu0 0.0
    %1192 = vmatpush1.xpose.msra.mxu0 0.0
    %1193 = vmatprep.subr.mxu0 0.0
    %1194 = vmatpush1.xpose.msra.mxu0 0.0
    %1195 = vmatprep.subr.mxu0 0.0
    %1196 = vmatpush1.xpose.msra.mxu0 0.0
    %1197 = vmatprep.subr.mxu0 0.0
    %1198 = vmatpush1.xpose.msra.mxu0 0.0
    %1199 = vmatprep.subr.mxu0 0.0
    %1200 = vmatpush1.xpose.msra.mxu0 0.0
    %1201 = vmatprep.subr.mxu0 0.0
    %1202 = vmatpush1.xpose.msra.mxu0 0.0
    %1203 = vmatprep.mubr.f32.mxu0 0.0
    %1204 = vmatmul.mubr.f32.gmra.mrb[0].mxu0 %v1125
    %v1205 = vpop.f32.mrb[0].mxu0
    %v1206 = vadd.f32 0.0, %v1205
    %v1207 = vpop.f32.mrb[0].mxu0
    %1208 = vdwg.mxu0
    %v1210 = vsel %vm777, %v365, 0
    %v1213 = vsel %vm777, %v950, 0
    %v1216 = vsel %vm777, %v951, 0
    %v1219 = vsel %vm777, %v952, 0
    %v1222 = vsel %vm777, %v953, 0
    %1224 = vmatprep.subr.mxu0 0.0
    %1225 = vmatpush1.xpose.msra.mxu0 %v1213
    %1226 = vmatprep.subr.mxu0 0.0
    %1227 = vmatpush1.xpose.msra.mxu0 %v1216
    %1228 = vmatprep.subr.mxu0 0.0
    %1229 = vmatpush1.xpose.msra.mxu0 %v1219
    %1230 = vmatprep.subr.mxu0 0.0
    %1231 = vmatpush1.xpose.msra.mxu0 %v1222
    %1232 = vmatprep.subr.mxu0 0.0
    %1233 = vmatpush1.xpose.msra.mxu0 0.0
    %1234 = vmatprep.subr.mxu0 0.0
    %1235 = vmatpush1.xpose.msra.mxu0 0.0
    %1236 = vmatprep.subr.mxu0 0.0
    %1237 = vmatpush1.xpose.msra.mxu0 0.0
    %1238 = vmatprep.subr.mxu0 0.0
    %1239 = vmatpush1.xpose.msra.mxu0 0.0
    %1240 = vmatprep.subr.mxu0 0.0
    %1241 = vmatpush1.xpose.msra.mxu0 0.0
    %1242 = vmatprep.subr.mxu0 0.0
    %1243 = vmatpush1.xpose.msra.mxu0 0.0
    %1244 = vmatprep.subr.mxu0 0.0
    %1245 = vmatpush1.xpose.msra.mxu0 0.0
    %1246 = vmatprep.subr.mxu0 0.0
    %1247 = vmatpush1.xpose.msra.mxu0 0.0
    %1248 = vmatprep.subr.mxu0 0.0
    %1249 = vmatpush1.xpose.msra.mxu0 0.0
    %1250 = vmatprep.subr.mxu0 0.0
    %1251 = vmatpush1.xpose.msra.mxu0 0.0
    %1252 = vmatprep.subr.mxu0 0.0
    %1253 = vmatpush1.xpose.msra.mxu0 0.0
    %1254 = vmatprep.subr.mxu0 0.0
    %1255 = vmatpush1.xpose.msra.mxu0 0.0
    %1256 = vmatprep.subr.mxu0 0.0
    %1257 = vmatpush1.xpose.msra.mxu0 0.0
    %1258 = vmatprep.subr.mxu0 0.0
    %1259 = vmatpush1.xpose.msra.mxu0 0.0
    %1260 = vmatprep.subr.mxu0 0.0
    %1261 = vmatpush1.xpose.msra.mxu0 0.0
    %1262 = vmatprep.subr.mxu0 0.0
    %1263 = vmatpush1.xpose.msra.mxu0 0.0
    %1264 = vmatprep.subr.mxu0 0.0
    %1265 = vmatpush1.xpose.msra.mxu0 0.0
    %1266 = vmatprep.subr.mxu0 0.0
    %1267 = vmatpush1.xpose.msra.mxu0 0.0
    %1268 = vmatprep.subr.mxu0 0.0
    %1269 = vmatpush1.xpose.msra.mxu0 0.0
    %1270 = vmatprep.subr.mxu0 0.0
    %1271 = vmatpush1.xpose.msra.mxu0 0.0
    %1272 = vmatprep.subr.mxu0 0.0
    %1273 = vmatpush1.xpose.msra.mxu0 0.0
    %1274 = vmatprep.subr.mxu0 0.0
    %1275 = vmatpush1.xpose.msra.mxu0 0.0
    %1276 = vmatprep.subr.mxu0 0.0
    %1277 = vmatpush1.xpose.msra.mxu0 0.0
    %1278 = vmatprep.subr.mxu0 0.0
    %1279 = vmatpush1.xpose.msra.mxu0 0.0
    %1280 = vmatprep.subr.mxu0 0.0
    %1281 = vmatpush1.xpose.msra.mxu0 0.0
    %1282 = vmatprep.subr.mxu0 0.0
    %1283 = vmatpush1.xpose.msra.mxu0 0.0
    %1284 = vmatprep.subr.mxu0 0.0
    %1285 = vmatpush1.xpose.msra.mxu0 0.0
    %1286 = vmatprep.subr.mxu0 0.0
    %1287 = vmatpush1.xpose.msra.mxu0 0.0
    %1288 = vmatprep.mubr.f32.mxu0 0.0
    %1289 = vmatmul.mubr.f32.gmra.mrb[0].mxu0 %v1210
    %v1290 = vpop.f32.mrb[0].mxu0
    %v1291 = vadd.f32 0.0, %v1290
    %v1292 = vpop.f32.mrb[0].mxu0
    %1293 = vdwg.mxu0
    %v1294 = vld [vmem:[#allocation10] sm:$0xff]
    %v1295 = vld [vmem:[#allocation10 + $0x8] sm:$0xff]
    %v1296 = vld [vmem:[#allocation10 + $0x10] sm:$0xff]
    %v1297 = vld [vmem:[#allocation10 + $0x18] sm:$0xff]
    %v1298 = vld [vmem:[%s9] sm:$0x1]
    %v1300 = vlaneseq
    %v1301 = vshrl.u32 %v1300, 7
    %v1302 = vsub.s32 0, %v1301
    %v1303 = vrot.slane %v1298, %v1302
    %1305 = vxpose.xlu0.b32.start [1/16] %v1036, 128
    %1306 = vxpose.xlu0.b32.cont [2/16] %v1121, 128
    %1307 = vxpose.xlu0.b32.cont [3/16] %v1206, 128
    %1308 = vxpose.xlu0.b32.cont [4/16] %v1291, 128
    %1309 = vxpose.xlu0.b32.cont [5/16] 0.0, 128
    %1310 = vxpose.xlu0.b32.cont [6/16] 0.0, 128
    %1311 = vxpose.xlu0.b32.cont [7/16] 0.0, 128
    %1312 = vxpose.xlu0.b32.cont [8/16] 0.0, 128
    %1313 = vxpose.xlu0.b32.cont [9/16] 0.0, 128
    %1314 = vxpose.xlu0.b32.cont [10/16] 0.0, 128
    %1315 = vxpose.xlu0.b32.cont [11/16] 0.0, 128
    %1316 = vxpose.xlu0.b32.cont [12/16] 0.0, 128
    %1317 = vxpose.xlu0.b32.cont [13/16] 0.0, 128
    %1318 = vxpose.xlu0.b32.cont [14/16] 0.0, 128
    %1319 = vxpose.xlu0.b32.cont [15/16] 0.0, 128
    %1320 = vxpose.xlu0.b32.end [16/16] 0.0, 128
    %v1321 = vpop.trf.xlu0
    %v1322 = vpop.trf.xlu0
    %v1323 = vpop.trf.xlu0
    %v1324 = vpop.trf.xlu0
    %v1325 = vpop.trf.xlu0
    %v1326 = vpop.trf.xlu0
    %v1327 = vpop.trf.xlu0
    %v1328 = vpop.trf.xlu0
    %v1329 = vpop.trf.xlu0
    %v1330 = vpop.trf.xlu0
    %v1331 = vpop.trf.xlu0
    %v1332 = vpop.trf.xlu0
    %v1333 = vpop.trf.xlu0
    %v1334 = vpop.trf.xlu0
    %v1335 = vpop.trf.xlu0
    %v1336 = vpop.trf.xlu0
    %v1338 = vsel %vm777, %v1321, 0
    %v1341 = vsel %vm777, %v1322, 0
    %v1344 = vsel %vm777, %v1323, 0
    %v1347 = vsel %vm777, %v1324, 0
    %1349 = vmatprep.subr.mxu0 0.0
    %1350 = vmatpush1.msra.mxu0 %v1294
    %1351 = vmatprep.subr.mxu0 0.0
    %1352 = vmatpush1.msra.mxu0 %v1295
    %1353 = vmatprep.subr.mxu0 0.0
    %1354 = vmatpush1.msra.mxu0 %v1296
    %1355 = vmatprep.subr.mxu0 0.0
    %1356 = vmatpush1.msra.mxu0 %v1297
    %1357 = vmatprep.subr.mxu0 0.0
    %1358 = vmatpush1.msra.mxu0 0.0
    %1359 = vmatprep.subr.mxu0 0.0
    %1360 = vmatpush1.msra.mxu0 0.0
    %1361 = vmatprep.subr.mxu0 0.0
    %1362 = vmatpush1.msra.mxu0 0.0
    %1363 = vmatprep.subr.mxu0 0.0
    %1364 = vmatpush1.msra.mxu0 0.0
    %1365 = vmatprep.subr.mxu0 0.0
    %1366 = vmatpush1.msra.mxu0 0.0
    %1367 = vmatprep.subr.mxu0 0.0
    %1368 = vmatpush1.msra.mxu0 0.0
    %1369 = vmatprep.subr.mxu0 0.0
    %1370 = vmatpush1.msra.mxu0 0.0
    %1371 = vmatprep.subr.mxu0 0.0
    %1372 = vmatpush1.msra.mxu0 0.0
    %1373 = vmatprep.subr.mxu0 0.0
    %1374 = vmatpush1.msra.mxu0 0.0
    %1375 = vmatprep.subr.mxu0 0.0
    %1376 = vmatpush1.msra.mxu0 0.0
    %1377 = vmatprep.subr.mxu0 0.0
    %1378 = vmatpush1.msra.mxu0 0.0
    %1379 = vmatprep.subr.mxu0 0.0
    %1380 = vmatpush1.msra.mxu0 0.0
    %1381 = vmatprep.subr.mxu0 0.0
    %1382 = vmatpush1.msra.mxu0 0.0
    %1383 = vmatprep.subr.mxu0 0.0
    %1384 = vmatpush1.msra.mxu0 0.0
    %1385 = vmatprep.subr.mxu0 0.0
    %1386 = vmatpush1.msra.mxu0 0.0
    %1387 = vmatprep.subr.mxu0 0.0
    %1388 = vmatpush1.msra.mxu0 0.0
    %1389 = vmatprep.subr.mxu0 0.0
    %1390 = vmatpush1.msra.mxu0 0.0
    %1391 = vmatprep.subr.mxu0 0.0
    %1392 = vmatpush1.msra.mxu0 0.0
    %1393 = vmatprep.subr.mxu0 0.0
    %1394 = vmatpush1.msra.mxu0 0.0
    %1395 = vmatprep.subr.mxu0 0.0
    %1396 = vmatpush1.msra.mxu0 0.0
    %1397 = vmatprep.subr.mxu0 0.0
    %1398 = vmatpush1.msra.mxu0 0.0
    %1399 = vmatprep.subr.mxu0 0.0
    %1400 = vmatpush1.msra.mxu0 0.0
    %1401 = vmatprep.subr.mxu0 0.0
    %1402 = vmatpush1.msra.mxu0 0.0
    %1403 = vmatprep.subr.mxu0 0.0
    %1404 = vmatpush1.msra.mxu0 0.0
    %1405 = vmatprep.subr.mxu0 0.0
    %1406 = vmatpush1.msra.mxu0 0.0
    %1407 = vmatprep.subr.mxu0 0.0
    %1408 = vmatpush1.msra.mxu0 0.0
    %1409 = vmatprep.subr.mxu0 0.0
    %1410 = vmatpush1.msra.mxu0 0.0
    %1411 = vmatprep.subr.mxu0 0.0
    %1412 = vmatpush1.msra.mxu0 0.0
    %1413 = vmatprep.mubr.f32.mxu0 0.0
    %1414 = vmatmul.mubr.f32.gmra.mrb[0].mxu0 %v1338
    %v1415 = vpop.f32.mrb[0].mxu0
    %v1416 = vadd.f32 %v1303, %v1415
    %v1417 = vpop.f32.mrb[0].mxu0
    %1418 = vmatprep.mubr.f32.mxu0 0.0
    %1419 = vmatmul.mubr.f32.gmra.mrb[0].mxu0 %v1341
    %v1420 = vpop.f32.mrb[0].mxu0
    %v1421 = vadd.f32 %v1303, %v1420
    %v1422 = vpop.f32.mrb[0].mxu0
    %1423 = vmatprep.mubr.f32.mxu0 0.0
    %1424 = vmatmul.mubr.f32.gmra.mrb[0].mxu0 %v1344
    %v1425 = vpop.f32.mrb[0].mxu0
    %v1426 = vadd.f32 %v1303, %v1425
    %v1427 = vpop.f32.mrb[0].mxu0
    %1428 = vmatprep.mubr.f32.mxu0 0.0
    %1429 = vmatmul.mubr.f32.gmra.mrb[0].mxu0 %v1347
    %v1430 = vpop.f32.mrb[0].mxu0
    %v1431 = vadd.f32 %v1303, %v1430
    %v1432 = vpop.f32.mrb[0].mxu0
    %1433 = vdwg.mxu0
    %1434 = vadd.xlane.f32.xlu0 %v1416
    %v1435 = vpop.xlane.xlu0 %1434
    %1436 = vadd.xlane.f32.xlu0 %v1421
    %v1437 = vpop.xlane.xlu0 %1436
    %1438 = vadd.xlane.f32.xlu0 %v1426
    %v1439 = vpop.xlane.xlu0 %1438
    %1440 = vadd.xlane.f32.xlu0 %v1431
    %v1441 = vpop.xlane.xlu0 %1440
    %v1442 = vmul.f32 %v1435, 0.03125
    %v1443 = vmul.f32 %v1437, 0.03125
    %v1444 = vmul.f32 %v1439, 0.03125
    %v1445 = vmul.f32 %v1441, 0.03125
    %v1446 = vmul.f32 %v1416, %v1416
    %v1447 = vmul.f32 %v1421, %v1421
    %v1448 = vmul.f32 %v1426, %v1426
    %v1449 = vmul.f32 %v1431, %v1431
    %1450 = vadd.xlane.f32.xlu0 %v1446
    %v1451 = vpop.xlane.xlu0 %1450
    %1452 = vadd.xlane.f32.xlu0 %v1447
    %v1453 = vpop.xlane.xlu0 %1452
    %1454 = vadd.xlane.f32.xlu0 %v1448
    %v1455 = vpop.xlane.xlu0 %1454
    %1456 = vadd.xlane.f32.xlu0 %v1449
    %v1457 = vpop.xlane.xlu0 %1456
    %v1458 = vmul.f32 %v1451, 0.03125
    %v1459 = vmul.f32 %v1453, 0.03125
    %v1460 = vmul.f32 %v1455, 0.03125
    %v1461 = vmul.f32 %v1457, 0.03125
    %v1462 = vmul.f32 %v1442, %v1442
    %v1463 = vmul.f32 %v1443, %v1443
    %v1464 = vmul.f32 %v1444, %v1444
    %v1465 = vmul.f32 %v1445, %v1445
    %v1466 = vsub.f32 %v1458, %v1462
    %v1467 = vsub.f32 %v1459, %v1463
    %v1468 = vsub.f32 %v1460, %v1464
    %v1469 = vsub.f32 %v1461, %v1465
    %v1470 = vmax.f32 %v1466, 0.0
    %v1471 = vmax.f32 %v1467, 0.0
    %v1472 = vmax.f32 %v1468, 0.0
    %v1473 = vmax.f32 %v1469, 0.0
    %v1474 = vsub.f32 %v1416, %v1442
    %v1475 = vsub.f32 %v1421, %v1443
    %v1476 = vsub.f32 %v1426, %v1444
    %v1477 = vsub.f32 %v1431, %v1445
    %v1478 = vadd.f32 %v1470, 1e-05
    %v1479 = vadd.f32 %v1471, 1e-05
    %v1480 = vadd.f32 %v1472, 1e-05
    %v1481 = vadd.f32 %v1473, 1e-05
    %v1482 = vrsqrt.pop %v1478
    %v1483 = vrsqrt.pop %v1479
    %v1484 = vrsqrt.pop %v1480
    %v1485 = vrsqrt.pop %v1481
    %v1486 = vmul.f32 %v1474, %v1482
    %v1487 = vmul.f32 %v1475, %v1483
    %v1488 = vmul.f32 %v1476, %v1484
    %v1489 = vmul.f32 %v1477, %v1485
    %v1490 = vld [vmem:[%s10] sm:$0x1]
    %v1492 = vlaneseq
    %v1493 = vshrl.u32 %v1492, 7
    %v1494 = vsub.s32 0, %v1493
    %v1495 = vrot.slane %v1490, %v1494
    %v1497 = vmul.f32 %v1486, %v1495
    %v1498 = vmul.f32 %v1487, %v1495
    %v1499 = vmul.f32 %v1488, %v1495
    %v1500 = vmul.f32 %v1489, %v1495
    %v1501 = vld [vmem:[%s11] sm:$0x1]
    %v1503 = vlaneseq
    %v1504 = vshrl.u32 %v1503, 7
    %v1505 = vsub.s32 0, %v1504
    %v1506 = vrot.slane %v1501, %v1505
    %v1508 = vadd.f32 %v1497, %v1506
    %v1509 = vadd.f32 %v1498, %v1506
    %v1510 = vadd.f32 %v1499, %v1506
    %v1511 = vadd.f32 %v1500, %v1506
    %v1512 = vld [vmem:[%s12] sm:$0xff]
    %v1513 = vld [vmem:[%s12 + $0x8] sm:$0xff]
    %v1514 = vld [vmem:[%s12 + $0x10] sm:$0xff]
    %v1515 = vld [vmem:[%s12 + $0x18] sm:$0xff]
    %v1516 = vld [vmem:[%s12 + $0x20] sm:$0xff]
    %v1517 = vld [vmem:[%s12 + $0x28] sm:$0xff]
    %v1518 = vld [vmem:[%s12 + $0x30] sm:$0xff]
    %v1519 = vld [vmem:[%s12 + $0x38] sm:$0xff]
    %v1520 = vld [vmem:[%s12 + $0x40] sm:$0xff]
    %v1521 = vld [vmem:[%s12 + $0x48] sm:$0xff]
    %v1522 = vld [vmem:[%s12 + $0x50] sm:$0xff]
    %v1523 = vld [vmem:[%s12 + $0x58] sm:$0xff]
    %v1524 = vld [vmem:[%s12 + $0x60] sm:$0xff]
    %v1525 = vld [vmem:[%s12 + $0x68] sm:$0xff]
    %v1526 = vld [vmem:[%s12 + $0x70] sm:$0xff]
    %v1527 = vld [vmem:[%s12 + $0x78] sm:$0xff]
    %v1528 = vld [vmem:[%s13] sm:$0x1]
    %v1530 = vlaneseq
    %v1531 = vshrl.u32 %v1530, 7
    %v1532 = vsub.s32 0, %v1531
    %v1533 = vrot.slane %v1528, %v1532
    %1535 = vmatprep.subr.mxu0 0.0
    %1536 = vmatpush1.msra.mxu0 %v1512
    %1537 = vmatprep.subr.mxu0 0.0
    %1538 = vmatpush1.msra.mxu0 %v1513
    %1539 = vmatprep.subr.mxu0 0.0
    %1540 = vmatpush1.msra.mxu0 %v1514
    %1541 = vmatprep.subr.mxu0 0.0
    %1542 = vmatpush1.msra.mxu0 %v1515
    %1543 = vmatprep.subr.mxu0 0.0
    %1544 = vmatpush1.msra.mxu0 %v1516
    %1545 = vmatprep.subr.mxu0 0.0
    %1546 = vmatpush1.msra.mxu0 %v1517
    %1547 = vmatprep.subr.mxu0 0.0
    %1548 = vmatpush1.msra.mxu0 %v1518
    %1549 = vmatprep.subr.mxu0 0.0
    %1550 = vmatpush1.msra.mxu0 %v1519
    %1551 = vmatprep.subr.mxu0 0.0
    %1552 = vmatpush1.msra.mxu0 %v1520
    %1553 = vmatprep.subr.mxu0 0.0
    %1554 = vmatpush1.msra.mxu0 %v1521
    %1555 = vmatprep.subr.mxu0 0.0
    %1556 = vmatpush1.msra.mxu0 %v1522
    %1557 = vmatprep.subr.mxu0 0.0
    %1558 = vmatpush1.msra.mxu0 %v1523
    %1559 = vmatprep.subr.mxu0 0.0
    %1560 = vmatpush1.msra.mxu0 %v1524
    %1561 = vmatprep.subr.mxu0 0.0
    %1562 = vmatpush1.msra.mxu0 %v1525
    %1563 = vmatprep.subr.mxu0 0.0
    %1564 = vmatpush1.msra.mxu0 %v1526
    %1565 = vmatprep.subr.mxu0 0.0
    %1566 = vmatpush1.msra.mxu0 %v1527
    %1567 = vmatprep.subr.mxu0 0.0
    %1568 = vmatpush1.msra.mxu0 0.0
    %1569 = vmatprep.subr.mxu0 0.0
    %1570 = vmatpush1.msra.mxu0 0.0
    %1571 = vmatprep.subr.mxu0 0.0
    %1572 = vmatpush1.msra.mxu0 0.0
    %1573 = vmatprep.subr.mxu0 0.0
    %1574 = vmatpush1.msra.mxu0 0.0
    %1575 = vmatprep.subr.mxu0 0.0
    %1576 = vmatpush1.msra.mxu0 0.0
    %1577 = vmatprep.subr.mxu0 0.0
    %1578 = vmatpush1.msra.mxu0 0.0
    %1579 = vmatprep.subr.mxu0 0.0
    %1580 = vmatpush1.msra.mxu0 0.0
    %1581 = vmatprep.subr.mxu0 0.0
    %1582 = vmatpush1.msra.mxu0 0.0
    %1583 = vmatprep.subr.mxu0 0.0
    %1584 = vmatpush1.msra.mxu0 0.0
    %1585 = vmatprep.subr.mxu0 0.0
    %1586 = vmatpush1.msra.mxu0 0.0
    %1587 = vmatprep.subr.mxu0 0.0
    %1588 = vmatpush1.msra.mxu0 0.0
    %1589 = vmatprep.subr.mxu0 0.0
    %1590 = vmatpush1.msra.mxu0 0.0
    %1591 = vmatprep.subr.mxu0 0.0
    %1592 = vmatpush1.msra.mxu0 0.0
    %1593 = vmatprep.subr.mxu0 0.0
    %1594 = vmatpush1.msra.mxu0 0.0
    %1595 = vmatprep.subr.mxu0 0.0
    %1596 = vmatpush1.msra.mxu0 0.0
    %1597 = vmatprep.subr.mxu0 0.0
    %1598 = vmatpush1.msra.mxu0 0.0
    %1599 = vmatprep.mubr.f32.mxu0 0.0
    %1600 = vmatmul.mubr.f32.gmra.mrb[0].mxu0 %v1508
    %v1601 = vpop.f32.mrb[0].mxu0
    %v1602 = vadd.f32 %v1533, %v1601
    %v1603 = vpop.f32.mrb[0].mxu0
    %1604 = vmatprep.mubr.f32.mxu0 0.0
    %1605 = vmatmul.mubr.f32.gmra.mrb[0].mxu0 %v1509
    %v1606 = vpop.f32.mrb[0].mxu0
    %v1607 = vadd.f32 %v1533, %v1606
    %v1608 = vpop.f32.mrb[0].mxu0
    %1609 = vmatprep.mubr.f32.mxu0 0.0
    %1610 = vmatmul.mubr.f32.gmra.mrb[0].mxu0 %v1510
    %v1611 = vpop.f32.mrb[0].mxu0
    %v1612 = vadd.f32 %v1533, %v1611
    %v1613 = vpop.f32.mrb[0].mxu0
    %1614 = vmatprep.mubr.f32.mxu0 0.0
    %1615 = vmatmul.mubr.f32.gmra.mrb[0].mxu0 %v1511
    %v1616 = vpop.f32.mrb[0].mxu0
    %v1617 = vadd.f32 %v1533, %v1616
    %v1618 = vpop.f32.mrb[0].mxu0
    %1619 = vdwg.mxu0
    %v1620 = vmul.f32 %v1602, 0.5
    %v1621 = vmul.f32 %v1607, 0.5
    %v1622 = vmul.f32 %v1612, 0.5
    %v1623 = vmul.f32 %v1617, 0.5
    %v1624 = vmul.f32 %v1602, 0.70710677
    %v1625 = vmul.f32 %v1607, 0.70710677
    %v1626 = vmul.f32 %v1612, 0.70710677
    %v1627 = vmul.f32 %v1617, 0.70710677
    %v1628 = verf.f32.pop %v1624
    %v1629 = verf.f32.pop %v1625
    %v1630 = verf.f32.pop %v1626
    %v1631 = verf.f32.pop %v1627
    %v1632 = vadd.f32 %v1628, 1.0
    %v1633 = vadd.f32 %v1629, 1.0
    %v1634 = vadd.f32 %v1630, 1.0
    %v1635 = vadd.f32 %v1631, 1.0
    %v1636 = vmul.f32 %v1620, %v1632
    %v1637 = vmul.f32 %v1621, %v1633
    %v1638 = vmul.f32 %v1622, %v1634
    %v1639 = vmul.f32 %v1623, %v1635
    %v1640 = vld [vmem:[%s14] sm:$0xff]
    %v1641 = vld [vmem:[%s14 + $0x8] sm:$0xff]
    %v1642 = vld [vmem:[%s14 + $0x10] sm:$0xff]
    %v1643 = vld [vmem:[%s14 + $0x18] sm:$0xff]
    %v1644 = vld [vmem:[%s14 + $0x20] sm:$0xff]
    %v1645 = vld [vmem:[%s14 + $0x28] sm:$0xff]
    %v1646 = vld [vmem:[%s14 + $0x30] sm:$0xff]
    %v1647 = vld [vmem:[%s14 + $0x38] sm:$0xff]
    %v1648 = vld [vmem:[%s14 + $0x40] sm:$0xff]
    %v1649 = vld [vmem:[%s14 + $0x48] sm:$0xff]
    %v1650 = vld [vmem:[%s14 + $0x50] sm:$0xff]
    %v1651 = vld [vmem:[%s14 + $0x58] sm:$0xff]
    %v1652 = vld [vmem:[%s14 + $0x60] sm:$0xff]
    %v1653 = vld [vmem:[%s14 + $0x68] sm:$0xff]
    %v1654 = vld [vmem:[%s14 + $0x70] sm:$0xff]
    %v1655 = vld [vmem:[%s14 + $0x78] sm:$0xff]
    %v1656 = vld [vmem:[%s15] sm:$0x1]
    %v1658 = vlaneseq
    %v1659 = vshrl.u32 %v1658, 7
    %v1660 = vsub.s32 0, %v1659
    %v1661 = vrot.slane %v1656, %v1660
    %1663 = vmatprep.subr.mxu0 0.0
    %1664 = vmatpush1.msra.mxu0 %v1640
    %1665 = vmatprep.subr.mxu0 0.0
    %1666 = vmatpush1.msra.mxu0 %v1641
    %1667 = vmatprep.subr.mxu0 0.0
    %1668 = vmatpush1.msra.mxu0 %v1642
    %1669 = vmatprep.subr.mxu0 0.0
    %1670 = vmatpush1.msra.mxu0 %v1643
    %1671 = vmatprep.subr.mxu0 0.0
    %1672 = vmatpush1.msra.mxu0 %v1644
    %1673 = vmatprep.subr.mxu0 0.0
    %1674 = vmatpush1.msra.mxu0 %v1645
    %1675 = vmatprep.subr.mxu0 0.0
    %1676 = vmatpush1.msra.mxu0 %v1646
    %1677 = vmatprep.subr.mxu0 0.0
    %1678 = vmatpush1.msra.mxu0 %v1647
    %1679 = vmatprep.subr.mxu0 0.0
    %1680 = vmatpush1.msra.mxu0 %v1648
    %1681 = vmatprep.subr.mxu0 0.0
    %1682 = vmatpush1.msra.mxu0 %v1649
    %1683 = vmatprep.subr.mxu0 0.0
    %1684 = vmatpush1.msra.mxu0 %v1650
    %1685 = vmatprep.subr.mxu0 0.0
    %1686 = vmatpush1.msra.mxu0 %v1651
    %1687 = vmatprep.subr.mxu0 0.0
    %1688 = vmatpush1.msra.mxu0 %v1652
    %1689 = vmatprep.subr.mxu0 0.0
    %1690 = vmatpush1.msra.mxu0 %v1653
    %1691 = vmatprep.subr.mxu0 0.0
    %1692 = vmatpush1.msra.mxu0 %v1654
    %1693 = vmatprep.subr.mxu0 0.0
    %1694 = vmatpush1.msra.mxu0 %v1655
    %1695 = vmatprep.subr.mxu0 0.0
    %1696 = vmatpush1.msra.mxu0 0.0
    %1697 = vmatprep.subr.mxu0 0.0
    %1698 = vmatpush1.msra.mxu0 0.0
    %1699 = vmatprep.subr.mxu0 0.0
    %1700 = vmatpush1.msra.mxu0 0.0
    %1701 = vmatprep.subr.mxu0 0.0
    %1702 = vmatpush1.msra.mxu0 0.0
    %1703 = vmatprep.subr.mxu0 0.0
    %1704 = vmatpush1.msra.mxu0 0.0
    %1705 = vmatprep.subr.mxu0 0.0
    %1706 = vmatpush1.msra.mxu0 0.0
    %1707 = vmatprep.subr.mxu0 0.0
    %1708 = vmatpush1.msra.mxu0 0.0
    %1709 = vmatprep.subr.mxu0 0.0
    %1710 = vmatpush1.msra.mxu0 0.0
    %1711 = vmatprep.subr.mxu0 0.0
    %1712 = vmatpush1.msra.mxu0 0.0
    %1713 = vmatprep.subr.mxu0 0.0
    %1714 = vmatpush1.msra.mxu0 0.0
    %1715 = vmatprep.subr.mxu0 0.0
    %1716 = vmatpush1.msra.mxu0 0.0
    %1717 = vmatprep.subr.mxu0 0.0
    %1718 = vmatpush1.msra.mxu0 0.0
    %1719 = vmatprep.subr.mxu0 0.0
    %1720 = vmatpush1.msra.mxu0 0.0
    %1721 = vmatprep.subr.mxu0 0.0
    %1722 = vmatpush1.msra.mxu0 0.0
    %1723 = vmatprep.subr.mxu0 0.0
    %1724 = vmatpush1.msra.mxu0 0.0
    %1725 = vmatprep.subr.mxu0 0.0
    %1726 = vmatpush1.msra.mxu0 0.0
    %1727 = vmatprep.mubr.f32.mxu0 0.0
    %1728 = vmatmul.mubr.f32.gmra.mrb[0].mxu0 %v1636
    %v1729 = vpop.f32.mrb[0].mxu0
    %v1730 = vadd.f32 %v1661, %v1729
    %v1731 = vpop.f32.mrb[0].mxu0
    %1732 = vmatprep.mubr.f32.mxu0 0.0
    %1733 = vmatmul.mubr.f32.gmra.mrb[0].mxu0 %v1637
    %v1734 = vpop.f32.mrb[0].mxu0
    %v1735 = vadd.f32 %v1661, %v1734
    %v1736 = vpop.f32.mrb[0].mxu0
    %1737 = vmatprep.mubr.f32.mxu0 0.0
    %1738 = vmatmul.mubr.f32.gmra.mrb[0].mxu0 %v1638
    %v1739 = vpop.f32.mrb[0].mxu0
    %v1740 = vadd.f32 %v1661, %v1739
    %v1741 = vpop.f32.mrb[0].mxu0
    %1742 = vmatprep.mubr.f32.mxu0 0.0
    %1743 = vmatmul.mubr.f32.gmra.mrb[0].mxu0 %v1639
    %v1744 = vpop.f32.mrb[0].mxu0
    %v1745 = vadd.f32 %v1661, %v1744
    %v1746 = vpop.f32.mrb[0].mxu0
    %1747 = vdwg.mxu0
    %1748 = vst [vmem:[#allocation11] sm:$0xff] %v1730
    %1749 = vst [vmem:[#allocation11 + $0x8] sm:$0xff] %v1735
    %1750 = vst [vmem:[#allocation11 + $0x10] sm:$0xff] %v1740
    %1751 = vst [vmem:[#allocation11 + $0x18] sm:$0xff] %v1745
    // Predicated region
    $region86: #{tpu_custom_call.1} parent=1 // pred_check
      _
    $region87: #{tpu_custom_call.1} parent=1 // pred_check_branch
      %1753 = sbr.rel (0) target = $region89
    $region88: #{tpu_custom_call.1} parent=1 // pred_region
      %s1755 = ssub.s32 512, 512
      %1756 = vsyncadd [#allocation4], %s1755
      %s1757 = sshll.u32 [#allocation11], 4
      %s1758 = int_to_ptr.vmem [resolvable:$true] %s1757
      %1763 = dma.vmem_to_hbm [thread:$0]  %s1758, 512, %s16, [#allocation4], 128, 128, 8
    $region89: #{tpu_custom_call.1} parent=1 // pred_fallthru
      _
    // Predicated region
    $region90: #{tpu_custom_call.1} parent=1 // pred_check
      _
    $region91: #{tpu_custom_call.1} parent=1 // pred_check_branch
      %1765 = sbr.rel (0) target = $region93
    $region92: #{tpu_custom_call.1} parent=1 // pred_region
      %1766 = dma.done [#allocation4], 512
    $region93: #{tpu_custom_call.1} parent=1 // pred_fallthru
      _
    %1767 = vsyncpa [#allocation3], 1
    %1768 = vsyncpa [#allocation6], 1
    %1769 = vsyncpa [#allocation9], 1
    %1770 = vsyncpa [#allocation4], 1

// kernel: tpu_custom_call.1
$region0: #{tpu_custom_call.1}
  #allocation0 [shape = 'u32[]', space=smem, size = 0x4, offset = 0x4, fixed_abs, tag = 'smem constant byte address 0x4 - core index']
  #allocation1 [shape = 'u32[144,128]{1,0:T(1,128)}', space=vmem, size = 0x12000, scoped, tag = 'internal scratch']
  %s0 = inlined_call_operand.hbm [shape: f32[4,8,128], index: 0, kind: input, shape index: {}]
  %s1 = inlined_call_operand.hbm [shape: f32[8,128], index: 1, kind: input, shape index: {}]
  %s2 = inlined_call_operand.vmem [shape: f32[4,32,8], index: 2, kind: input, shape index: {}]
  %s3 = inlined_call_operand.hbm [shape: f32[32,32], index: 3, kind: input, shape index: {}]
  %s4 = inlined_call_operand.vmem [shape: f32[1,128], index: 4, kind: input, shape index: {}]
  %s5 = inlined_call_operand.vmem [shape: f32[1,128], index: 5, kind: input, shape index: {}]
  %s6 = inlined_call_operand.hbm [shape: f32[64,128], index: 6, kind: input, shape index: {}]
  %s7 = inlined_call_operand.vmem [shape: f32[64,1], index: 7, kind: input, shape index: {}]
  %s8 = inlined_call_operand.hbm [shape: f32[32,128], index: 8, kind: input, shape index: {}]
  %s9 = inlined_call_operand.vmem [shape: f32[1,128], index: 9, kind: input, shape index: {}]
  %s10 = inlined_call_operand.vmem [shape: f32[1,128], index: 10, kind: input, shape index: {}]
  %s11 = inlined_call_operand.vmem [shape: f32[1,128], index: 11, kind: input, shape index: {}]
  %s12 = inlined_call_operand.vmem [shape: f32[128,128], index: 12, kind: input, shape index: {}]
  %s13 = inlined_call_operand.vmem [shape: f32[1,128], index: 13, kind: input, shape index: {}]
  %s14 = inlined_call_operand.vmem [shape: f32[128,128], index: 14, kind: input, shape index: {}]
  %s15 = inlined_call_operand.vmem [shape: f32[1,128], index: 15, kind: input, shape index: {}]
  %s16 = inlined_call_operand.hbm [shape: f32[4,8,128], index: 16, kind: output, shape index: {}]
  %s17 = sld [smem:[#allocation0]]
  $region94: #{tpu_custom_call.1} parent=0
    _
  %s19 = ssub.s32 1, %s17
  %s20 = scalar_select 0, %s19, %s17
  $region1: #{tpu_custom_call.1} parent=0
    #allocation2 [shape = 'u8[16384]{0}', space=vmem, size = 0x4000, scoped, tag = 'input window, operand 0, single buffered']
    #allocation3 [shape = 's32[1]{0}', space=sflag, size = 0x4, scoped, tag = 'scoped memory for tpu_custom_call.1']
    #allocation4 [shape = 's32[1]{0}', space=sflag, size = 0x4, scoped, tag = 'scoped memory for tpu_custom_call.1']
    #allocation5 [shape = 'u8[4096]{0}', space=vmem, size = 0x1000, scoped, tag = 'input window, operand 1, single buffered']
    #allocation6 [shape = 's32[1]{0}', space=sflag, size = 0x4, scoped, tag = 'scoped memory for tpu_custom_call.1']
    #allocation7 [shape = 'u8[16384]{0}', space=vmem, size = 0x4000, scoped, tag = 'input window, operand 3, single buffered']
    #allocation8 [shape = 'u8[32768]{0}', space=vmem, size = 0x8000, scoped, tag = 'input window, operand 6, single buffered']
    #allocation9 [shape = 's32[1]{0}', space=sflag, size = 0x4, scoped, tag = 'scoped memory for tpu_custom_call.1']
    #allocation10 [shape = 'u8[16384]{0}', space=vmem, size = 0x4000, scoped, tag = 'input window, operand 8, single buffered']
    #allocation11 [shape = 'u8[16384]{0}', space=vmem, size = 0x4000, scoped, tag = 'output window, operand 0, single buffered']
    %21 = vsyncpa [#allocation3], 0
    %22 = vsyncpa [#allocation6], 0
    %23 = vsyncpa [#allocation9], 0
    %24 = vsyncpa [#allocation4], 0
    // Predicated region
    $region2: #{tpu_custom_call.1} parent=1 // pred_check
      _
    $region3: #{tpu_custom_call.1} parent=1 // pred_check_branch
      %26 = sbr.rel (0) target = $region5
    $region4: #{tpu_custom_call.1} parent=1 // pred_region
      %s28 = ssub.s32 512, 512
      %29 = vsyncadd [#allocation3], %s28
      %s30 = sshll.u32 [#allocation2], 4
      %s31 = int_to_ptr.vmem [resolvable:$true] %s30
      %36 = dma.hbm_to_vmem [thread:$0]  %s0, 512, %s31, [#allocation3], 128, 128, 8
    $region5: #{tpu_custom_call.1} parent=1 // pred_fallthru
      _
    // Predicated region
    $region6: #{tpu_custom_call.1} parent=1 // pred_check
      _
    $region7: #{tpu_custom_call.1} parent=1 // pred_check_branch
      %38 = sbr.rel (0) target = $region9
    $region8: #{tpu_custom_call.1} parent=1 // pred_region
      %s40 = ssub.s32 128, 128
      %41 = vsyncadd [#allocation6], %s40
      %s43 = sshll.u32 [#allocation5], 4
      %s44 = int_to_ptr.vmem [resolvable:$true] %s43
      %46 = dma.hbm_to_vmem [thread:$0]  %s1, 128, %s44, [#allocation6]
    $region9: #{tpu_custom_call.1} parent=1 // pred_fallthru
      _
    // Predicated region
    $region10: #{tpu_custom_call.1} parent=1 // pred_check
      _
    $region11: #{tpu_custom_call.1} parent=1 // pred_check_branch
      %48 = sbr.rel (0) target = $region13
    $region12: #{tpu_custom_call.1} parent=1 // pred_region
      _
    $region13: #{tpu_custom_call.1} parent=1 // pred_fallthru
      _
    // Predicated region
    $region14: #{tpu_custom_call.1} parent=1 // pred_check
      _
    $region15: #{tpu_custom_call.1} parent=1 // pred_check_branch
      %50 = sbr.rel (0) target = $region17
    $region16: #{tpu_custom_call.1} parent=1 // pred_region
      %s52 = ssub.s32 512, 512
      %53 = vsyncadd [#allocation6], %s52
      %s54 = sshll.u32 [#allocation7], 4
      %s55 = int_to_ptr.vmem [resolvable:$true] %s54
      %60 = dma.hbm_to_vmem [thread:$0]  %s3, 512, %s55, [#allocation6], 128, 128, 8
    $region17: #{tpu_custom_call.1} parent=1 // pred_fallthru
      _
    // Predicated region
    $region18: #{tpu_custom_call.1} parent=1 // pred_check
      _
    $region19: #{tpu_custom_call.1} parent=1 // pred_check_branch
      %62 = sbr.rel (0) target = $region21
    $region20: #{tpu_custom_call.1} parent=1 // pred_region
      _
    $region21: #{tpu_custom_call.1} parent=1 // pred_fallthru
      _
    // Predicated region
    $region22: #{tpu_custom_call.1} parent=1 // pred_check
      _
    $region23: #{tpu_custom_call.1} parent=1 // pred_check_branch
      %64 = sbr.rel (0) target = $region25
    $region24: #{tpu_custom_call.1} parent=1 // pred_region
      _
    $region25: #{tpu_custom_call.1} parent=1 // pred_fallthru
      _
    // Predicated region
    $region26: #{tpu_custom_call.1} parent=1 // pred_check
      _
    $region27: #{tpu_custom_call.1} parent=1 // pred_check_branch
      %66 = sbr.rel (0) target = $region29
    $region28: #{tpu_custom_call.1} parent=1 // pred_region
      %s68 = ssub.s32 1024, 1024
      %69 = vsyncadd [#allocation9], %s68
      %s70 = sshll.u32 [#allocation8], 4
      %s71 = int_to_ptr.vmem [resolvable:$true] %s70
      %76 = dma.hbm_to_vmem [thread:$0]  %s6, 1024, %s71, [#allocation9], 128, 128, 8
    $region29: #{tpu_custom_call.1} parent=1 // pred_fallthru
      _
    // Predicated region
    $region30: #{tpu_custom_call.1} parent=1 // pred_check
      _
    $region31: #{tpu_custom_call.1} parent=1 // pred_check_branch
      %78 = sbr.rel (0) target = $region33
    $region32: #{tpu_custom_call.1} parent=1 // pred_region
      _
    $region33: #{tpu_custom_call.1} parent=1 // pred_fallthru
      _
    // Predicated region
    $region34: #{tpu_custom_call.1} parent=1 // pred_check
      _
    $region35: #{tpu_custom_call.1} parent=1 // pred_check_branch
      %80 = sbr.rel (0) target = $region37
    $region36: #{tpu_custom_call.1} parent=1 // pred_region
      %s82 = ssub.s32 512, 512
      %83 = vsyncadd [#allocation9], %s82
      %s84 = sshll.u32 [#allocation10], 4
      %s85 = int_to_ptr.vmem [resolvable:$true] %s84
      %90 = dma.hbm_to_vmem [thread:$0]  %s8, 512, %s85, [#allocation9], 128, 128, 8
    $region37: #{tpu_custom_call.1} parent=1 // pred_fallthru
      _
    // Predicated region
    $region38: #{tpu_custom_call.1} parent=1 // pred_check
      _
    $region39: #{tpu_custom_call.1} parent=1 // pred_check_branch
      %92 = sbr.rel (0) target = $region41
    $region40: #{tpu_custom_call.1} parent=1 // pred_region
      _
    $region41: #{tpu_custom_call.1} parent=1 // pred_fallthru
      _
    // Predicated region
    $region42: #{tpu_custom_call.1} parent=1 // pred_check
      _
    $region43: #{tpu_custom_call.1} parent=1 // pred_check_branch
      %94 = sbr.rel (0) target = $region45
    $region44: #{tpu_custom_call.1} parent=1 // pred_region
      _
    $region45: #{tpu_custom_call.1} parent=1 // pred_fallthru
      _
    // Predicated region
    $region46: #{tpu_custom_call.1} parent=1 // pred_check
      _
    $region47: #{tpu_custom_call.1} parent=1 // pred_check_branch
      %96 = sbr.rel (0) target = $region49
    $region48: #{tpu_custom_call.1} parent=1 // pred_region
      _
    $region49: #{tpu_custom_call.1} parent=1 // pred_fallthru
      _
    // Predicated region
    $region50: #{tpu_custom_call.1} parent=1 // pred_check
      _
    $region51: #{tpu_custom_call.1} parent=1 // pred_check_branch
      %98 = sbr.rel (0) target = $region53
    $region52: #{tpu_custom_call.1} parent=1 // pred_region
      _
    $region53: #{tpu_custom_call.1} parent=1 // pred_fallthru
      _
    // Predicated region
    $region54: #{tpu_custom_call.1} parent=1 // pred_check
      _
    $region55: #{tpu_custom_call.1} parent=1 // pred_check_branch
      %100 = sbr.rel (0) target = $region57
    $region56: #{tpu_custom_call.1} parent=1 // pred_region
      _
    $region57: #{tpu_custom_call.1} parent=1 // pred_fallthru
      _
    // Predicated region
    $region58: #{tpu_custom_call.1} parent=1 // pred_check
      _
    $region59: #{tpu_custom_call.1} parent=1 // pred_check_branch
      %102 = sbr.rel (0) target = $region61
    $region60: #{tpu_custom_call.1} parent=1 // pred_region
      _
    $region61: #{tpu_custom_call.1} parent=1 // pred_fallthru
      _
    // Predicated region
    $region62: #{tpu_custom_call.1} parent=1 // pred_check
      _
    $region63: #{tpu_custom_call.1} parent=1 // pred_check_branch
      %104 = sbr.rel (0) target = $region65
    $region64: #{tpu_custom_call.1} parent=1 // pred_region
      _
    $region65: #{tpu_custom_call.1} parent=1 // pred_fallthru
      _
    // Predicated region
    $region66: #{tpu_custom_call.1} parent=1 // pred_check
      _
    $region67: #{tpu_custom_call.1} parent=1 // pred_check_branch
      %106 = sbr.rel (0) target = $region69
    $region68: #{tpu_custom_call.1} parent=1 // pred_region
      %107 = dma.done [#allocation3], 512
    $region69: #{tpu_custom_call.1} parent=1 // pred_fallthru
      _
    // Predicated region
    $region70: #{tpu_custom_call.1} parent=1 // pred_check
      _
    $region71: #{tpu_custom_call.1} parent=1 // pred_check_branch
      %109 = sbr.rel (0) target = $region73
    $region72: #{tpu_custom_call.1} parent=1 // pred_region
      %110 = dma.done [#allocation6], 128
    $region73: #{tpu_custom_call.1} parent=1 // pred_fallthru
      _
    // Predicated region
    $region74: #{tpu_custom_call.1} parent=1 // pred_check
      _
    $region75: #{tpu_custom_call.1} parent=1 // pred_check_branch
      %112 = sbr.rel (0) target = $region77
    $region76: #{tpu_custom_call.1} parent=1 // pred_region
      %113 = dma.done [#allocation6], 512
    $region77: #{tpu_custom_call.1} parent=1 // pred_fallthru
      _
    // Predicated region
    $region78: #{tpu_custom_call.1} parent=1 // pred_check
      _
    $region79: #{tpu_custom_call.1} parent=1 // pred_check_branch
      %115 = sbr.rel (0) target = $region81
    $region80: #{tpu_custom_call.1} parent=1 // pred_region
      %116 = dma.done [#allocation9], 1024
    $region81: #{tpu_custom_call.1} parent=1 // pred_fallthru
      _
    // Predicated region
    $region82: #{tpu_custom_call.1} parent=1 // pred_check
      _
    $region83: #{tpu_custom_call.1} parent=1 // pred_check_branch
      %118 = sbr.rel (0) target = $region85
    $region84: #{tpu_custom_call.1} parent=1 // pred_region
      %119 = dma.done [#allocation9], 512
    $region85: #{tpu_custom_call.1} parent=1 // pred_fallthru
      _
    %v120 = vld [vmem:[#allocation2] sm:$0xff]
    %v121 = vld [vmem:[#allocation2 + $0x8] sm:$0xff]
    %v122 = vld [vmem:[#allocation2 + $0x10] sm:$0xff]
    %v123 = vld [vmem:[#allocation2 + $0x18] sm:$0xff]
    %124 = vadd.xlane.f32.xlu0 %v120
    %v125 = vpop.xlane.xlu0 %124
    %126 = vadd.xlane.f32.xlu0 %v121
    %v127 = vpop.xlane.xlu0 %126
    %128 = vadd.xlane.f32.xlu0 %v122
    %v129 = vpop.xlane.xlu0 %128
    %130 = vadd.xlane.f32.xlu0 %v123
    %v131 = vpop.xlane.xlu0 %130
    %v132 = vmul.f32 %v125, 0.03125
    %v133 = vmul.f32 %v127, 0.03125
    %v134 = vmul.f32 %v129, 0.03125
    %v135 = vmul.f32 %v131, 0.03125
    %v136 = vmul.f32 %v120, %v120
    %v137 = vmul.f32 %v121, %v121
    %v138 = vmul.f32 %v122, %v122
    %v139 = vmul.f32 %v123, %v123
    %140 = vadd.xlane.f32.xlu0 %v136
    %v141 = vpop.xlane.xlu0 %140
    %142 = vadd.xlane.f32.xlu0 %v137
    %v143 = vpop.xlane.xlu0 %142
    %144 = vadd.xlane.f32.xlu0 %v138
    %v145 = vpop.xlane.xlu0 %144
    %146 = vadd.xlane.f32.xlu0 %v139
    %v147 = vpop.xlane.xlu0 %146
    %v148 = vmul.f32 %v141, 0.03125
    %v149 = vmul.f32 %v143, 0.03125
    %v150 = vmul.f32 %v145, 0.03125
    %v151 = vmul.f32 %v147, 0.03125
    %v152 = vmul.f32 %v132, %v132
    %v153 = vmul.f32 %v133, %v133
    %v154 = vmul.f32 %v134, %v134
    %v155 = vmul.f32 %v135, %v135
    %v156 = vsub.f32 %v148, %v152
    %v157 = vsub.f32 %v149, %v153
    %v158 = vsub.f32 %v150, %v154
    %v159 = vsub.f32 %v151, %v155
    %v160 = vmax.f32 %v156, 0.0
    %v161 = vmax.f32 %v157, 0.0
    %v162 = vmax.f32 %v158, 0.0
    %v163 = vmax.f32 %v159, 0.0
    %v164 = vsub.f32 %v120, %v132
    %v165 = vsub.f32 %v121, %v133
    %v166 = vsub.f32 %v122, %v134
    %v167 = vsub.f32 %v123, %v135
    %v168 = vadd.f32 %v160, 1e-05
    %v169 = vadd.f32 %v161, 1e-05
    %v170 = vadd.f32 %v162, 1e-05
    %v171 = vadd.f32 %v163, 1e-05
    %v172 = vrsqrt.pop %v168
    %v173 = vrsqrt.pop %v169
    %v174 = vrsqrt.pop %v170
    %v175 = vrsqrt.pop %v171
    %v176 = vmul.f32 %v164, %v172
    %v177 = vmul.f32 %v165, %v173
    %v178 = vmul.f32 %v166, %v174
    %v179 = vmul.f32 %v167, %v175
    %v180 = vld [vmem:[%s4] sm:$0x1]
    %v182 = vlaneseq
    %v183 = vshrl.u32 %v182, 7
    %v184 = vsub.s32 0, %v183
    %v185 = vrot.slane %v180, %v184
    %v187 = vmul.f32 %v176, %v185
    %v188 = vmul.f32 %v177, %v185
    %v189 = vmul.f32 %v178, %v185
    %v190 = vmul.f32 %v179, %v185
    %v191 = vld [vmem:[%s5] sm:$0x1]
    %v193 = vlaneseq
    %v194 = vshrl.u32 %v193, 7
    %v195 = vsub.s32 0, %v194
    %v196 = vrot.slane %v191, %v195
    %v198 = vadd.f32 %v187, %v196
    %v199 = vadd.f32 %v188, %v196
    %v200 = vadd.f32 %v189, %v196
    %v201 = vadd.f32 %v190, %v196
    %v202 = vld [vmem:[#allocation5] sm:$0xff]
    %v203 = vadd.f32 %v198, %v202
    %v204 = vadd.f32 %v199, %v202
    %v205 = vadd.f32 %v200, %v202
    %v206 = vadd.f32 %v201, %v202
    %v207 = vld [vmem:[#allocation8] sm:$0xff]
    %v208 = vld [vmem:[#allocation8 + $0x8] sm:$0xff]
    %v209 = vld [vmem:[#allocation8 + $0x10] sm:$0xff]
    %v210 = vld [vmem:[#allocation8 + $0x18] sm:$0xff]
    %v211 = vld [vmem:[#allocation8 + $0x20] sm:$0xff]
    %v212 = vld [vmem:[#allocation8 + $0x28] sm:$0xff]
    %v213 = vld [vmem:[#allocation8 + $0x30] sm:$0xff]
    %v214 = vld [vmem:[#allocation8 + $0x38] sm:$0xff]
    %v215 = vld [vmem:[%s7] sm:$0xff]
    %v216 = vld [vmem:[%s7 + $0x8] sm:$0xff]
    %v217 = vld [vmem:[%s7 + $0x10] sm:$0xff]
    %v218 = vld [vmem:[%s7 + $0x18] sm:$0xff]
    %v219 = vld [vmem:[%s7 + $0x20] sm:$0xff]
    %v220 = vld [vmem:[%s7 + $0x28] sm:$0xff]
    %v221 = vld [vmem:[%s7 + $0x30] sm:$0xff]
    %v222 = vld [vmem:[%s7 + $0x38] sm:$0xff]
    %224 = vset.pattern.permute.xlu0 0
    %225 = vperm.xlu0 %224, %v215
    %v226 = vpop.permute.xlu0 %225
    %229 = vset.pattern.permute.xlu0 0
    %230 = vperm.xlu0 %229, %v216
    %v231 = vpop.permute.xlu0 %230
    %234 = vset.pattern.permute.xlu0 0
    %235 = vperm.xlu0 %234, %v217
    %v236 = vpop.permute.xlu0 %235
    %239 = vset.pattern.permute.xlu0 0
    %240 = vperm.xlu0 %239, %v218
    %v241 = vpop.permute.xlu0 %240
    %244 = vset.pattern.permute.xlu0 0
    %245 = vperm.xlu0 %244, %v219
    %v246 = vpop.permute.xlu0 %245
    %249 = vset.pattern.permute.xlu0 0
    %250 = vperm.xlu0 %249, %v220
    %v251 = vpop.permute.xlu0 %250
    %254 = vset.pattern.permute.xlu0 0
    %255 = vperm.xlu0 %254, %v221
    %v256 = vpop.permute.xlu0 %255
    %259 = vset.pattern.permute.xlu0 0
    %260 = vperm.xlu0 %259, %v222
    %v261 = vpop.permute.xlu0 %260
    %263 = vmatprep.subr.mxu0 0.0
    %264 = vmatpush1.xpose.msra.mxu0 %v203
    %265 = vmatprep.subr.mxu0 0.0
    %266 = vmatpush1.xpose.msra.mxu0 %v204
    %267 = vmatprep.subr.mxu0 0.0
    %268 = vmatpush1.xpose.msra.mxu0 %v205
    %269 = vmatprep.subr.mxu0 0.0
    %270 = vmatpush1.xpose.msra.mxu0 %v206
    %271 = vmatprep.subr.mxu0 0.0
    %272 = vmatpush1.xpose.msra.mxu0 0.0
    %273 = vmatprep.subr.mxu0 0.0
    %274 = vmatpush1.xpose.msra.mxu0 0.0
    %275 = vmatprep.subr.mxu0 0.0
    %276 = vmatpush1.xpose.msra.mxu0 0.0
    %277 = vmatprep.subr.mxu0 0.0
    %278 = vmatpush1.xpose.msra.mxu0 0.0
    %279 = vmatprep.subr.mxu0 0.0
    %280 = vmatpush1.xpose.msra.mxu0 0.0
    %281 = vmatprep.subr.mxu0 0.0
    %282 = vmatpush1.xpose.msra.mxu0 0.0
    %283 = vmatprep.subr.mxu0 0.0
    %284 = vmatpush1.xpose.msra.mxu0 0.0
    %285 = vmatprep.subr.mxu0 0.0
    %286 = vmatpush1.xpose.msra.mxu0 0.0
    %287 = vmatprep.subr.mxu0 0.0
    %288 = vmatpush1.xpose.msra.mxu0 0.0
    %289 = vmatprep.subr.mxu0 0.0
    %290 = vmatpush1.xpose.msra.mxu0 0.0
    %291 = vmatprep.subr.mxu0 0.0
    %292 = vmatpush1.xpose.msra.mxu0 0.0
    %293 = vmatprep.subr.mxu0 0.0
    %294 = vmatpush1.xpose.msra.mxu0 0.0
    %295 = vmatprep.subr.mxu0 0.0
    %296 = vmatpush1.xpose.msra.mxu0 0.0
    %297 = vmatprep.subr.mxu0 0.0
    %298 = vmatpush1.xpose.msra.mxu0 0.0
    %299 = vmatprep.subr.mxu0 0.0
    %300 = vmatpush1.xpose.msra.mxu0 0.0
    %301 = vmatprep.subr.mxu0 0.0
    %302 = vmatpush1.xpose.msra.mxu0 0.0
    %303 = vmatprep.subr.mxu0 0.0
    %304 = vmatpush1.xpose.msra.mxu0 0.0
    %305 = vmatprep.subr.mxu0 0.0
    %306 = vmatpush1.xpose.msra.mxu0 0.0
    %307 = vmatprep.subr.mxu0 0.0
    %308 = vmatpush1.xpose.msra.mxu0 0.0
    %309 = vmatprep.subr.mxu0 0.0
    %310 = vmatpush1.xpose.msra.mxu0 0.0
    %311 = vmatprep.subr.mxu0 0.0
    %312 = vmatpush1.xpose.msra.mxu0 0.0
    %313 = vmatprep.subr.mxu0 0.0
    %314 = vmatpush1.xpose.msra.mxu0 0.0
    %315 = vmatprep.subr.mxu0 0.0
    %316 = vmatpush1.xpose.msra.mxu0 0.0
    %317 = vmatprep.subr.mxu0 0.0
    %318 = vmatpush1.xpose.msra.mxu0 0.0
    %319 = vmatprep.subr.mxu0 0.0
    %320 = vmatpush1.xpose.msra.mxu0 0.0
    %321 = vmatprep.subr.mxu0 0.0
    %322 = vmatpush1.xpose.msra.mxu0 0.0
    %323 = vmatprep.subr.mxu0 0.0
    %324 = vmatpush1.xpose.msra.mxu0 0.0
    %325 = vmatprep.subr.mxu0 0.0
    %326 = vmatpush1.xpose.msra.mxu0 0.0
    %327 = vmatprep.mubr.f32.mxu0 0.0
    %328 = vmatmul.mubr.f32.gmra.mrb[0].mxu0 %v207
    %v329 = vpop.f32.mrb[0].mxu0
    %v330 = vadd.f32 %v226, %v329
    %v331 = vpop.f32.mrb[0].mxu0
    %332 = vmatprep.mubr.f32.mxu0 0.0
    %333 = vmatmul.mubr.f32.gmra.mrb[0].mxu0 %v208
    %v334 = vpop.f32.mrb[0].mxu0
    %v335 = vadd.f32 %v231, %v334
    %v336 = vpop.f32.mrb[0].mxu0
    %337 = vmatprep.mubr.f32.mxu0 0.0
    %338 = vmatmul.mubr.f32.gmra.mrb[0].mxu0 %v209
    %v339 = vpop.f32.mrb[0].mxu0
    %v340 = vadd.f32 %v236, %v339
    %v341 = vpop.f32.mrb[0].mxu0
    %342 = vmatprep.mubr.f32.mxu0 0.0
    %343 = vmatmul.mubr.f32.gmra.mrb[0].mxu0 %v210
    %v344 = vpop.f32.mrb[0].mxu0
    %v345 = vadd.f32 %v241, %v344
    %v346 = vpop.f32.mrb[0].mxu0
    %347 = vmatprep.mubr.f32.mxu0 0.0
    %348 = vmatmul.mubr.f32.gmra.mrb[0].mxu0 %v211
    %v349 = vpop.f32.mrb[0].mxu0
    %v350 = vadd.f32 %v246, %v349
    %v351 = vpop.f32.mrb[0].mxu0
    %352 = vmatprep.mubr.f32.mxu0 0.0
    %353 = vmatmul.mubr.f32.gmra.mrb[0].mxu0 %v212
    %v354 = vpop.f32.mrb[0].mxu0
    %v355 = vadd.f32 %v251, %v354
    %v356 = vpop.f32.mrb[0].mxu0
    %357 = vmatprep.mubr.f32.mxu0 0.0
    %358 = vmatmul.mubr.f32.gmra.mrb[0].mxu0 %v213
    %v359 = vpop.f32.mrb[0].mxu0
    %v360 = vadd.f32 %v256, %v359
    %v361 = vpop.f32.mrb[0].mxu0
    %362 = vmatprep.mubr.f32.mxu0 0.0
    %363 = vmatmul.mubr.f32.gmra.mrb[0].mxu0 %v214
    %v364 = vpop.f32.mrb[0].mxu0
    %v365 = vadd.f32 %v261, %v364
    %v366 = vpop.f32.mrb[0].mxu0
    %367 = vdwg.mxu0
    %v368 = vld [vmem:[%s2] sm:$0xff]
    %v369 = vld [vmem:[%s2 + $0x8] sm:$0xff]
    %v370 = vld [vmem:[%s2 + $0x10] sm:$0xff]
    %v371 = vld [vmem:[%s2 + $0x18] sm:$0xff]
    %v372 = vld [vmem:[%s2 + $0x20] sm:$0xff]
    %v373 = vld [vmem:[%s2 + $0x28] sm:$0xff]
    %v374 = vld [vmem:[%s2 + $0x30] sm:$0xff]
    %v375 = vld [vmem:[%s2 + $0x38] sm:$0xff]
    %v376 = vld [vmem:[%s2 + $0x40] sm:$0xff]
    %v377 = vld [vmem:[%s2 + $0x48] sm:$0xff]
    %v378 = vld [vmem:[%s2 + $0x50] sm:$0xff]
    %v379 = vld [vmem:[%s2 + $0x58] sm:$0xff]
    %v380 = vld [vmem:[%s2 + $0x60] sm:$0xff]
    %v381 = vld [vmem:[%s2 + $0x68] sm:$0xff]
    %v382 = vld [vmem:[%s2 + $0x70] sm:$0xff]
    %v383 = vld [vmem:[%s2 + $0x78] sm:$0xff]
    %v384 = vld [vmem:[#allocation7] sm:$0xff]
    %v385 = vld [vmem:[#allocation7 + $0x8] sm:$0xff]
    %v386 = vld [vmem:[#allocation7 + $0x10] sm:$0xff]
    %v387 = vld [vmem:[#allocation7 + $0x18] sm:$0xff]
    %vm388 = vcmask 64512
    %v390 = vsel %vm388, %v368, 0
    %v393 = vsel %vm388, %v369, 0
    %v396 = vsel %vm388, %v370, 0
    %v399 = vsel %vm388, %v371, 0
    %401 = vmatprep.subr.mxu0 0.0
    %402 = vmatpush1.msra.mxu0 %v330
    %403 = vmatprep.subr.mxu0 0.0
    %404 = vmatpush1.msra.mxu0 0.0
    %405 = vmatprep.subr.mxu0 0.0
    %406 = vmatpush1.msra.mxu0 0.0
    %407 = vmatprep.subr.mxu0 0.0
    %408 = vmatpush1.msra.mxu0 0.0
    %409 = vmatprep.subr.mxu0 0.0
    %410 = vmatpush1.msra.mxu0 0.0
    %411 = vmatprep.subr.mxu0 0.0
    %412 = vmatpush1.msra.mxu0 0.0
    %413 = vmatprep.subr.mxu0 0.0
    %414 = vmatpush1.msra.mxu0 0.0
    %415 = vmatprep.subr.mxu0 0.0
    %416 = vmatpush1.msra.mxu0 0.0
    %417 = vmatprep.subr.mxu0 0.0
    %418 = vmatpush1.msra.mxu0 0.0
    %419 = vmatprep.subr.mxu0 0.0
    %420 = vmatpush1.msra.mxu0 0.0
    %421 = vmatprep.subr.mxu0 0.0
    %422 = vmatpush1.msra.mxu0 0.0
    %423 = vmatprep.subr.mxu0 0.0
    %424 = vmatpush1.msra.mxu0 0.0
    %425 = vmatprep.subr.mxu0 0.0
    %426 = vmatpush1.msra.mxu0 0.0
    %427 = vmatprep.subr.mxu0 0.0
    %428 = vmatpush1.msra.mxu0 0.0
    %429 = vmatprep.subr.mxu0 0.0
    %430 = vmatpush1.msra.mxu0 0.0
    %431 = vmatprep.subr.mxu0 0.0
    %432 = vmatpush1.msra.mxu0 0.0
    %433 = vmatprep.subr.mxu0 0.0
    %434 = vmatpush1.msra.mxu0 0.0
    %435 = vmatprep.subr.mxu0 0.0
    %436 = vmatpush1.msra.mxu0 0.0
    %437 = vmatprep.subr.mxu0 0.0
    %438 = vmatpush1.msra.mxu0 0.0
    %439 = vmatprep.subr.mxu0 0.0
    %440 = vmatpush1.msra.mxu0 0.0
    %441 = vmatprep.subr.mxu0 0.0
    %442 = vmatpush1.msra.mxu0 0.0
    %443 = vmatprep.subr.mxu0 0.0
    %444 = vmatpush1.msra.mxu0 0.0
    %445 = vmatprep.subr.mxu0 0.0
    %446 = vmatpush1.msra.mxu0 0.0
    %447 = vmatprep.subr.mxu0 0.0
    %448 = vmatpush1.msra.mxu0 0.0
    %449 = vmatprep.subr.mxu0 0.0
    %450 = vmatpush1.msra.mxu0 0.0
    %451 = vmatprep.subr.mxu0 0.0
    %452 = vmatpush1.msra.mxu0 0.0
    %453 = vmatprep.subr.mxu0 0.0
    %454 = vmatpush1.msra.mxu0 0.0
    %455 = vmatprep.subr.mxu0 0.0
    %456 = vmatpush1.msra.mxu0 0.0
    %457 = vmatprep.subr.mxu0 0.0
    %458 = vmatpush1.msra.mxu0 0.0
    %459 = vmatprep.subr.mxu0 0.0
    %460 = vmatpush1.msra.mxu0 0.0
    %461 = vmatprep.subr.mxu0 0.0
    %462 = vmatpush1.msra.mxu0 0.0
    %463 = vmatprep.subr.mxu0 0.0
    %464 = vmatpush1.msra.mxu0 0.0
    %465 = vmatprep.mubr.f32.mxu0 0.0
    %466 = vmatmul.mubr.f32.gmra.mrb[0].mxu0 %v390
    %v467 = vpop.f32.mrb[0].mxu0
    %v468 = vadd.f32 %v384, %v467
    %v469 = vpop.f32.mrb[0].mxu0
    %470 = vmatprep.mubr.f32.mxu0 0.0
    %471 = vmatmul.mubr.f32.gmra.mrb[0].mxu0 %v393
    %v472 = vpop.f32.mrb[0].mxu0
    %v473 = vadd.f32 %v385, %v472
    %v474 = vpop.f32.mrb[0].mxu0
    %475 = vmatprep.mubr.f32.mxu0 0.0
    %476 = vmatmul.mubr.f32.gmra.mrb[0].mxu0 %v396
    %v477 = vpop.f32.mrb[0].mxu0
    %v478 = vadd.f32 %v386, %v477
    %v479 = vpop.f32.mrb[0].mxu0
    %480 = vmatprep.mubr.f32.mxu0 0.0
    %481 = vmatmul.mubr.f32.gmra.mrb[0].mxu0 %v399
    %v482 = vpop.f32.mrb[0].mxu0
    %v483 = vadd.f32 %v387, %v482
    %v484 = vpop.f32.mrb[0].mxu0
    %485 = vdwg.mxu0
    %v487 = vsel %vm388, %v372, 0
    %v490 = vsel %vm388, %v373, 0
    %v493 = vsel %vm388, %v374, 0
    %v496 = vsel %vm388, %v375, 0
    %498 = vmatprep.subr.mxu0 0.0
    %499 = vmatpush1.msra.mxu0 %v335
    %500 = vmatprep.subr.mxu0 0.0
    %501 = vmatpush1.msra.mxu0 0.0
    %502 = vmatprep.subr.mxu0 0.0
    %503 = vmatpush1.msra.mxu0 0.0
    %504 = vmatprep.subr.mxu0 0.0
    %505 = vmatpush1.msra.mxu0 0.0
    %506 = vmatprep.subr.mxu0 0.0
    %507 = vmatpush1.msra.mxu0 0.0
    %508 = vmatprep.subr.mxu0 0.0
    %509 = vmatpush1.msra.mxu0 0.0
    %510 = vmatprep.subr.mxu0 0.0
    %511 = vmatpush1.msra.mxu0 0.0
    %512 = vmatprep.subr.mxu0 0.0
    %513 = vmatpush1.msra.mxu0 0.0
    %514 = vmatprep.subr.mxu0 0.0
    %515 = vmatpush1.msra.mxu0 0.0
    %516 = vmatprep.subr.mxu0 0.0
    %517 = vmatpush1.msra.mxu0 0.0
    %518 = vmatprep.subr.mxu0 0.0
    %519 = vmatpush1.msra.mxu0 0.0
    %520 = vmatprep.subr.mxu0 0.0
    %521 = vmatpush1.msra.mxu0 0.0
    %522 = vmatprep.subr.mxu0 0.0
    %523 = vmatpush1.msra.mxu0 0.0
    %524 = vmatprep.subr.mxu0 0.0
    %525 = vmatpush1.msra.mxu0 0.0
    %526 = vmatprep.subr.mxu0 0.0
    %527 = vmatpush1.msra.mxu0 0.0
    %528 = vmatprep.subr.mxu0 0.0
    %529 = vmatpush1.msra.mxu0 0.0
    %530 = vmatprep.subr.mxu0 0.0
    %531 = vmatpush1.msra.mxu0 0.0
    %532 = vmatprep.subr.mxu0 0.0
    %533 = vmatpush1.msra.mxu0 0.0
    %534 = vmatprep.subr.mxu0 0.0
    %535 = vmatpush1.msra.mxu0 0.0
    %536 = vmatprep.subr.mxu0 0.0
    %537 = vmatpush1.msra.mxu0 0.0
    %538 = vmatprep.subr.mxu0 0.0
    %539 = vmatpush1.msra.mxu0 0.0
    %540 = vmatprep.subr.mxu0 0.0
    %541 = vmatpush1.msra.mxu0 0.0
    %542 = vmatprep.subr.mxu0 0.0
    %543 = vmatpush1.msra.mxu0 0.0
    %544 = vmatprep.subr.mxu0 0.0
    %545 = vmatpush1.msra.mxu0 0.0
    %546 = vmatprep.subr.mxu0 0.0
    %547 = vmatpush1.msra.mxu0 0.0
    %548 = vmatprep.subr.mxu0 0.0
    %549 = vmatpush1.msra.mxu0 0.0
    %550 = vmatprep.subr.mxu0 0.0
    %551 = vmatpush1.msra.mxu0 0.0
    %552 = vmatprep.subr.mxu0 0.0
    %553 = vmatpush1.msra.mxu0 0.0
    %554 = vmatprep.subr.mxu0 0.0
    %555 = vmatpush1.msra.mxu0 0.0
    %556 = vmatprep.subr.mxu0 0.0
    %557 = vmatpush1.msra.mxu0 0.0
    %558 = vmatprep.subr.mxu0 0.0
    %559 = vmatpush1.msra.mxu0 0.0
    %560 = vmatprep.subr.mxu0 0.0
    %561 = vmatpush1.msra.mxu0 0.0
    %562 = vmatprep.mubr.f32.mxu0 0.0
    %563 = vmatmul.mubr.f32.gmra.mrb[0].mxu0 %v487
    %v564 = vpop.f32.mrb[0].mxu0
    %v565 = vadd.f32 %v384, %v564
    %v566 = vpop.f32.mrb[0].mxu0
    %567 = vmatprep.mubr.f32.mxu0 0.0
    %568 = vmatmul.mubr.f32.gmra.mrb[0].mxu0 %v490
    %v569 = vpop.f32.mrb[0].mxu0
    %v570 = vadd.f32 %v385, %v569
    %v571 = vpop.f32.mrb[0].mxu0
    %572 = vmatprep.mubr.f32.mxu0 0.0
    %573 = vmatmul.mubr.f32.gmra.mrb[0].mxu0 %v493
    %v574 = vpop.f32.mrb[0].mxu0
    %v575 = vadd.f32 %v386, %v574
    %v576 = vpop.f32.mrb[0].mxu0
    %577 = vmatprep.mubr.f32.mxu0 0.0
    %578 = vmatmul.mubr.f32.gmra.mrb[0].mxu0 %v496
    %v579 = vpop.f32.mrb[0].mxu0
    %v580 = vadd.f32 %v387, %v579
    %v581 = vpop.f32.mrb[0].mxu0
    %582 = vdwg.mxu0
    %v584 = vsel %vm388, %v376, 0
    %v587 = vsel %vm388, %v377, 0
    %v590 = vsel %vm388, %v378, 0
    %v593 = vsel %vm388, %v379, 0
    %595 = vmatprep.subr.mxu0 0.0
    %596 = vmatpush1.msra.mxu0 %v340
    %597 = vmatprep.subr.mxu0 0.0
    %598 = vmatpush1.msra.mxu0 0.0
    %599 = vmatprep.subr.mxu0 0.0
    %600 = vmatpush1.msra.mxu0 0.0
    %601 = vmatprep.subr.mxu0 0.0
    %602 = vmatpush1.msra.mxu0 0.0
    %603 = vmatprep.subr.mxu0 0.0
    %604 = vmatpush1.msra.mxu0 0.0
    %605 = vmatprep.subr.mxu0 0.0
    %606 = vmatpush1.msra.mxu0 0.0
    %607 = vmatprep.subr.mxu0 0.0
    %608 = vmatpush1.msra.mxu0 0.0
    %609 = vmatprep.subr.mxu0 0.0
    %610 = vmatpush1.msra.mxu0 0.0
    %611 = vmatprep.subr.mxu0 0.0
    %612 = vmatpush1.msra.mxu0 0.0
    %613 = vmatprep.subr.mxu0 0.0
    %614 = vmatpush1.msra.mxu0 0.0
    %615 = vmatprep.subr.mxu0 0.0
    %616 = vmatpush1.msra.mxu0 0.0
    %617 = vmatprep.subr.mxu0 0.0
    %618 = vmatpush1.msra.mxu0 0.0
    %619 = vmatprep.subr.mxu0 0.0
    %620 = vmatpush1.msra.mxu0 0.0
    %621 = vmatprep.subr.mxu0 0.0
    %622 = vmatpush1.msra.mxu0 0.0
    %623 = vmatprep.subr.mxu0 0.0
    %624 = vmatpush1.msra.mxu0 0.0
    %625 = vmatprep.subr.mxu0 0.0
    %626 = vmatpush1.msra.mxu0 0.0
    %627 = vmatprep.subr.mxu0 0.0
    %628 = vmatpush1.msra.mxu0 0.0
    %629 = vmatprep.subr.mxu0 0.0
    %630 = vmatpush1.msra.mxu0 0.0
    %631 = vmatprep.subr.mxu0 0.0
    %632 = vmatpush1.msra.mxu0 0.0
    %633 = vmatprep.subr.mxu0 0.0
    %634 = vmatpush1.msra.mxu0 0.0
    %635 = vmatprep.subr.mxu0 0.0
    %636 = vmatpush1.msra.mxu0 0.0
    %637 = vmatprep.subr.mxu0 0.0
    %638 = vmatpush1.msra.mxu0 0.0
    %639 = vmatprep.subr.mxu0 0.0
    %640 = vmatpush1.msra.mxu0 0.0
    %641 = vmatprep.subr.mxu0 0.0
    %642 = vmatpush1.msra.mxu0 0.0
    %643 = vmatprep.subr.mxu0 0.0
    %644 = vmatpush1.msra.mxu0 0.0
    %645 = vmatprep.subr.mxu0 0.0
    %646 = vmatpush1.msra.mxu0 0.0
    %647 = vmatprep.subr.mxu0 0.0
    %648 = vmatpush1.msra.mxu0 0.0
    %649 = vmatprep.subr.mxu0 0.0
    %650 = vmatpush1.msra.mxu0 0.0
    %651 = vmatprep.subr.mxu0 0.0
    %652 = vmatpush1.msra.mxu0 0.0
    %653 = vmatprep.subr.mxu0 0.0
    %654 = vmatpush1.msra.mxu0 0.0
    %655 = vmatprep.subr.mxu0 0.0
    %656 = vmatpush1.msra.mxu0 0.0
    %657 = vmatprep.subr.mxu0 0.0
    %658 = vmatpush1.msra.mxu0 0.0
    %659 = vmatprep.mubr.f32.mxu0 0.0
    %660 = vmatmul.mubr.f32.gmra.mrb[0].mxu0 %v584
    %v661 = vpop.f32.mrb[0].mxu0
    %v662 = vadd.f32 %v384, %v661
    %v663 = vpop.f32.mrb[0].mxu0
    %664 = vmatprep.mubr.f32.mxu0 0.0
    %665 = vmatmul.mubr.f32.gmra.mrb[0].mxu0 %v587
    %v666 = vpop.f32.mrb[0].mxu0
    %v667 = vadd.f32 %v385, %v666
    %v668 = vpop.f32.mrb[0].mxu0
    %669 = vmatprep.mubr.f32.mxu0 0.0
    %670 = vmatmul.mubr.f32.gmra.mrb[0].mxu0 %v590
    %v671 = vpop.f32.mrb[0].mxu0
    %v672 = vadd.f32 %v386, %v671
    %v673 = vpop.f32.mrb[0].mxu0
    %674 = vmatprep.mubr.f32.mxu0 0.0
    %675 = vmatmul.mubr.f32.gmra.mrb[0].mxu0 %v593
    %v676 = vpop.f32.mrb[0].mxu0
    %v677 = vadd.f32 %v387, %v676
    %v678 = vpop.f32.mrb[0].mxu0
    %679 = vdwg.mxu0
    %v681 = vsel %vm388, %v380, 0
    %v684 = vsel %vm388, %v381, 0
    %v687 = vsel %vm388, %v382, 0
    %v690 = vsel %vm388, %v383, 0
    %692 = vmatprep.subr.mxu0 0.0
    %693 = vmatpush1.msra.mxu0 %v345
    %694 = vmatprep.subr.mxu0 0.0
    %695 = vmatpush1.msra.mxu0 0.0
    %696 = vmatprep.subr.mxu0 0.0
    %697 = vmatpush1.msra.mxu0 0.0
    %698 = vmatprep.subr.mxu0 0.0
    %699 = vmatpush1.msra.mxu0 0.0
    %700 = vmatprep.subr.mxu0 0.0
    %701 = vmatpush1.msra.mxu0 0.0
    %702 = vmatprep.subr.mxu0 0.0
    %703 = vmatpush1.msra.mxu0 0.0
    %704 = vmatprep.subr.mxu0 0.0
    %705 = vmatpush1.msra.mxu0 0.0
    %706 = vmatprep.subr.mxu0 0.0
    %707 = vmatpush1.msra.mxu0 0.0
    %708 = vmatprep.subr.mxu0 0.0
    %709 = vmatpush1.msra.mxu0 0.0
    %710 = vmatprep.subr.mxu0 0.0
    %711 = vmatpush1.msra.mxu0 0.0
    %712 = vmatprep.subr.mxu0 0.0
    %713 = vmatpush1.msra.mxu0 0.0
    %714 = vmatprep.subr.mxu0 0.0
    %715 = vmatpush1.msra.mxu0 0.0
    %716 = vmatprep.subr.mxu0 0.0
    %717 = vmatpush1.msra.mxu0 0.0
    %718 = vmatprep.subr.mxu0 0.0
    %719 = vmatpush1.msra.mxu0 0.0
    %720 = vmatprep.subr.mxu0 0.0
    %721 = vmatpush1.msra.mxu0 0.0
    %722 = vmatprep.subr.mxu0 0.0
    %723 = vmatpush1.msra.mxu0 0.0
    %724 = vmatprep.subr.mxu0 0.0
    %725 = vmatpush1.msra.mxu0 0.0
    %726 = vmatprep.subr.mxu0 0.0
    %727 = vmatpush1.msra.mxu0 0.0
    %728 = vmatprep.subr.mxu0 0.0
    %729 = vmatpush1.msra.mxu0 0.0
    %730 = vmatprep.subr.mxu0 0.0
    %731 = vmatpush1.msra.mxu0 0.0
    %732 = vmatprep.subr.mxu0 0.0
    %733 = vmatpush1.msra.mxu0 0.0
    %734 = vmatprep.subr.mxu0 0.0
    %735 = vmatpush1.msra.mxu0 0.0
    %736 = vmatprep.subr.mxu0 0.0
    %737 = vmatpush1.msra.mxu0 0.0
    %738 = vmatprep.subr.mxu0 0.0
    %739 = vmatpush1.msra.mxu0 0.0
    %740 = vmatprep.subr.mxu0 0.0
    %741 = vmatpush1.msra.mxu0 0.0
    %742 = vmatprep.subr.mxu0 0.0
    %743 = vmatpush1.msra.mxu0 0.0
    %744 = vmatprep.subr.mxu0 0.0
    %745 = vmatpush1.msra.mxu0 0.0
    %746 = vmatprep.subr.mxu0 0.0
    %747 = vmatpush1.msra.mxu0 0.0
    %748 = vmatprep.subr.mxu0 0.0
    %749 = vmatpush1.msra.mxu0 0.0
    %750 = vmatprep.subr.mxu0 0.0
    %751 = vmatpush1.msra.mxu0 0.0
    %752 = vmatprep.subr.mxu0 0.0
    %753 = vmatpush1.msra.mxu0 0.0
    %754 = vmatprep.subr.mxu0 0.0
    %755 = vmatpush1.msra.mxu0 0.0
    %756 = vmatprep.mubr.f32.mxu0 0.0
    %757 = vmatmul.mubr.f32.gmra.mrb[0].mxu0 %v681
    %v758 = vpop.f32.mrb[0].mxu0
    %v759 = vadd.f32 %v384, %v758
    %v760 = vpop.f32.mrb[0].mxu0
    %761 = vmatprep.mubr.f32.mxu0 0.0
    %762 = vmatmul.mubr.f32.gmra.mrb[0].mxu0 %v684
    %v763 = vpop.f32.mrb[0].mxu0
    %v764 = vadd.f32 %v385, %v763
    %v765 = vpop.f32.mrb[0].mxu0
    %766 = vmatprep.mubr.f32.mxu0 0.0
    %767 = vmatmul.mubr.f32.gmra.mrb[0].mxu0 %v687
    %v768 = vpop.f32.mrb[0].mxu0
    %v769 = vadd.f32 %v386, %v768
    %v770 = vpop.f32.mrb[0].mxu0
    %771 = vmatprep.mubr.f32.mxu0 0.0
    %772 = vmatmul.mubr.f32.gmra.mrb[0].mxu0 %v690
    %v773 = vpop.f32.mrb[0].mxu0
    %v774 = vadd.f32 %v387, %v773
    %v775 = vpop.f32.mrb[0].mxu0
    %776 = vdwg.mxu0
    %vm777 = vcmask 261120
    %v778 = vsel %vm777, %v468, -inf
    %779 = vmax.xlane.f32.xlu0 %v778
    %v780 = vpop.xlane.xlu0 %779
    %v781 = vsel %vm777, %v473, -inf
    %782 = vmax.xlane.f32.xlu0 %v781
    %v783 = vpop.xlane.xlu0 %782
    %v784 = vsel %vm777, %v478, -inf
    %785 = vmax.xlane.f32.xlu0 %v784
    %v786 = vpop.xlane.xlu0 %785
    %v787 = vsel %vm777, %v483, -inf
    %788 = vmax.xlane.f32.xlu0 %v787
    %v789 = vpop.xlane.xlu0 %788
    %v790 = vsel %vm777, %v565, -inf
    %791 = vmax.xlane.f32.xlu0 %v790
    %v792 = vpop.xlane.xlu0 %791
    %v793 = vsel %vm777, %v570, -inf
    %794 = vmax.xlane.f32.xlu0 %v793
    %v795 = vpop.xlane.xlu0 %794
    %v796 = vsel %vm777, %v575, -inf
    %797 = vmax.xlane.f32.xlu0 %v796
    %v798 = vpop.xlane.xlu0 %797
    %v799 = vsel %vm777, %v580, -inf
    %800 = vmax.xlane.f32.xlu0 %v799
    %v801 = vpop.xlane.xlu0 %800
    %v802 = vsel %vm777, %v662, -inf
    %803 = vmax.xlane.f32.xlu0 %v802
    %v804 = vpop.xlane.xlu0 %803
    %v805 = vsel %vm777, %v667, -inf
    %806 = vmax.xlane.f32.xlu0 %v805
    %v807 = vpop.xlane.xlu0 %806
    %v808 = vsel %vm777, %v672, -inf
    %809 = vmax.xlane.f32.xlu0 %v808
    %v810 = vpop.xlane.xlu0 %809
    %v811 = vsel %vm777, %v677, -inf
    %812 = vmax.xlane.f32.xlu0 %v811
    %v813 = vpop.xlane.xlu0 %812
    %v814 = vsel %vm777, %v759, -inf
    %815 = vmax.xlane.f32.xlu0 %v814
    %v816 = vpop.xlane.xlu0 %815
    %v817 = vsel %vm777, %v764, -inf
    %818 = vmax.xlane.f32.xlu0 %v817
    %v819 = vpop.xlane.xlu0 %818
    %v820 = vsel %vm777, %v769, -inf
    %821 = vmax.xlane.f32.xlu0 %v820
    %v822 = vpop.xlane.xlu0 %821
    %v823 = vsel %vm777, %v774, -inf
    %824 = vmax.xlane.f32.xlu0 %v823
    %v825 = vpop.xlane.xlu0 %824
    %v826 = vsub.f32 %v468, %v780
    %v827 = vsub.f32 %v473, %v783
    %v828 = vsub.f32 %v478, %v786
    %v829 = vsub.f32 %v483, %v789
    %v830 = vsub.f32 %v565, %v792
    %v831 = vsub.f32 %v570, %v795
    %v832 = vsub.f32 %v575, %v798
    %v833 = vsub.f32 %v580, %v801
    %v834 = vsub.f32 %v662, %v804
    %v835 = vsub.f32 %v667, %v807
    %v836 = vsub.f32 %v672, %v810
    %v837 = vsub.f32 %v677, %v813
    %v838 = vsub.f32 %v759, %v816
    %v839 = vsub.f32 %v764, %v819
    %v840 = vsub.f32 %v769, %v822
    %v841 = vsub.f32 %v774, %v825
    %v842 = vmul.f32 %v826, 1.442695
    %v843 = vpow.pop %v842
    %v844 = vmul.f32 %v827, 1.442695
    %v845 = vpow.pop %v844
    %v846 = vmul.f32 %v828, 1.442695
    %v847 = vpow.pop %v846
    %v848 = vmul.f32 %v829, 1.442695
    %v849 = vpow.pop %v848
    %v850 = vmul.f32 %v830, 1.442695
    %v851 = vpow.pop %v850
    %v852 = vmul.f32 %v831, 1.442695
    %v853 = vpow.pop %v852
    %v854 = vmul.f32 %v832, 1.442695
    %v855 = vpow.pop %v854
    %v856 = vmul.f32 %v833, 1.442695
    %v857 = vpow.pop %v856
    %v858 = vmul.f32 %v834, 1.442695
    %v859 = vpow.pop %v858
    %v860 = vmul.f32 %v835, 1.442695
    %v861 = vpow.pop %v860
    %v862 = vmul.f32 %v836, 1.442695
    %v863 = vpow.pop %v862
    %v864 = vmul.f32 %v837, 1.442695
    %v865 = vpow.pop %v864
    %v866 = vmul.f32 %v838, 1.442695
    %v867 = vpow.pop %v866
    %v868 = vmul.f32 %v839, 1.442695
    %v869 = vpow.pop %v868
    %v870 = vmul.f32 %v840, 1.442695
    %v871 = vpow.pop %v870
    %v872 = vmul.f32 %v841, 1.442695
    %v873 = vpow.pop %v872
    %v874 = vsel %vm777, %v843, 0.0
    %875 = vadd.xlane.f32.xlu0 %v874
    %v876 = vpop.xlane.xlu0 %875
    %v877 = vsel %vm777, %v845, 0.0
    %878 = vadd.xlane.f32.xlu0 %v877
    %v879 = vpop.xlane.xlu0 %878
    %v880 = vsel %vm777, %v847, 0.0
    %881 = vadd.xlane.f32.xlu0 %v880
    %v882 = vpop.xlane.xlu0 %881
    %v883 = vsel %vm777, %v849, 0.0
    %884 = vadd.xlane.f32.xlu0 %v883
    %v885 = vpop.xlane.xlu0 %884
    %v886 = vsel %vm777, %v851, 0.0
    %887 = vadd.xlane.f32.xlu0 %v886
    %v888 = vpop.xlane.xlu0 %887
    %v889 = vsel %vm777, %v853, 0.0
    %890 = vadd.xlane.f32.xlu0 %v889
    %v891 = vpop.xlane.xlu0 %890
    %v892 = vsel %vm777, %v855, 0.0
    %893 = vadd.xlane.f32.xlu0 %v892
    %v894 = vpop.xlane.xlu0 %893
    %v895 = vsel %vm777, %v857, 0.0
    %896 = vadd.xlane.f32.xlu0 %v895
    %v897 = vpop.xlane.xlu0 %896
    %v898 = vsel %vm777, %v859, 0.0
    %899 = vadd.xlane.f32.xlu0 %v898
    %v900 = vpop.xlane.xlu0 %899
    %v901 = vsel %vm777, %v861, 0.0
    %902 = vadd.xlane.f32.xlu0 %v901
    %v903 = vpop.xlane.xlu0 %902
    %v904 = vsel %vm777, %v863, 0.0
    %905 = vadd.xlane.f32.xlu0 %v904
    %v906 = vpop.xlane.xlu0 %905
    %v907 = vsel %vm777, %v865, 0.0
    %908 = vadd.xlane.f32.xlu0 %v907
    %v909 = vpop.xlane.xlu0 %908
    %v910 = vsel %vm777, %v867, 0.0
    %911 = vadd.xlane.f32.xlu0 %v910
    %v912 = vpop.xlane.xlu0 %911
    %v913 = vsel %vm777, %v869, 0.0
    %914 = vadd.xlane.f32.xlu0 %v913
    %v915 = vpop.xlane.xlu0 %914
    %v916 = vsel %vm777, %v871, 0.0
    %917 = vadd.xlane.f32.xlu0 %v916
    %v918 = vpop.xlane.xlu0 %917
    %v919 = vsel %vm777, %v873, 0.0
    %920 = vadd.xlane.f32.xlu0 %v919
    %v921 = vpop.xlane.xlu0 %920
    %v922 = vrcp.pop %v876
    %v923 = vrcp.pop %v879
    %v924 = vrcp.pop %v882
    %v925 = vrcp.pop %v885
    %v926 = vrcp.pop %v888
    %v927 = vrcp.pop %v891
    %v928 = vrcp.pop %v894
    %v929 = vrcp.pop %v897
    %v930 = vrcp.pop %v900
    %v931 = vrcp.pop %v903
    %v932 = vrcp.pop %v906
    %v933 = vrcp.pop %v909
    %v934 = vrcp.pop %v912
    %v935 = vrcp.pop %v915
    %v936 = vrcp.pop %v918
    %v937 = vrcp.pop %v921
    %v938 = vmul.f32 %v843, %v922
    %v939 = vmul.f32 %v845, %v923
    %v940 = vmul.f32 %v847, %v924
    %v941 = vmul.f32 %v849, %v925
    %v942 = vmul.f32 %v851, %v926
    %v943 = vmul.f32 %v853, %v927
    %v944 = vmul.f32 %v855, %v928
    %v945 = vmul.f32 %v857, %v929
    %v946 = vmul.f32 %v859, %v930
    %v947 = vmul.f32 %v861, %v931
    %v948 = vmul.f32 %v863, %v932
    %v949 = vmul.f32 %v865, %v933
    %v950 = vmul.f32 %v867, %v934
    %v951 = vmul.f32 %v869, %v935
    %v952 = vmul.f32 %v871, %v936
    %v953 = vmul.f32 %v873, %v937
    %v955 = vsel %vm777, %v350, 0
    %v958 = vsel %vm777, %v938, 0
    %v961 = vsel %vm777, %v939, 0
    %v964 = vsel %vm777, %v940, 0
    %v967 = vsel %vm777, %v941, 0
    %969 = vmatprep.subr.mxu0 0.0
    %970 = vmatpush1.xpose.msra.mxu0 %v958
    %971 = vmatprep.subr.mxu0 0.0
    %972 = vmatpush1.xpose.msra.mxu0 %v961
    %973 = vmatprep.subr.mxu0 0.0
    %974 = vmatpush1.xpose.msra.mxu0 %v964
    %975 = vmatprep.subr.mxu0 0.0
    %976 = vmatpush1.xpose.msra.mxu0 %v967
    %977 = vmatprep.subr.mxu0 0.0
    %978 = vmatpush1.xpose.msra.mxu0 0.0
    %979 = vmatprep.subr.mxu0 0.0
    %980 = vmatpush1.xpose.msra.mxu0 0.0
    %981 = vmatprep.subr.mxu0 0.0
    %982 = vmatpush1.xpose.msra.mxu0 0.0
    %983 = vmatprep.subr.mxu0 0.0
    %984 = vmatpush1.xpose.msra.mxu0 0.0
    %985 = vmatprep.subr.mxu0 0.0
    %986 = vmatpush1.xpose.msra.mxu0 0.0
    %987 = vmatprep.subr.mxu0 0.0
    %988 = vmatpush1.xpose.msra.mxu0 0.0
    %989 = vmatprep.subr.mxu0 0.0
    %990 = vmatpush1.xpose.msra.mxu0 0.0
    %991 = vmatprep.subr.mxu0 0.0
    %992 = vmatpush1.xpose.msra.mxu0 0.0
    %993 = vmatprep.subr.mxu0 0.0
    %994 = vmatpush1.xpose.msra.mxu0 0.0
    %995 = vmatprep.subr.mxu0 0.0
    %996 = vmatpush1.xpose.msra.mxu0 0.0
    %997 = vmatprep.subr.mxu0 0.0
    %998 = vmatpush1.xpose.msra.mxu0 0.0
    %999 = vmatprep.subr.mxu0 0.0
    %1000 = vmatpush1.xpose.msra.mxu0 0.0
    %1001 = vmatprep.subr.mxu0 0.0
    %1002 = vmatpush1.xpose.msra.mxu0 0.0
    %1003 = vmatprep.subr.mxu0 0.0
    %1004 = vmatpush1.xpose.msra.mxu0 0.0
    %1005 = vmatprep.subr.mxu0 0.0
    %1006 = vmatpush1.xpose.msra.mxu0 0.0
    %1007 = vmatprep.subr.mxu0 0.0
    %1008 = vmatpush1.xpose.msra.mxu0 0.0
    %1009 = vmatprep.subr.mxu0 0.0
    %1010 = vmatpush1.xpose.msra.mxu0 0.0
    %1011 = vmatprep.subr.mxu0 0.0
    %1012 = vmatpush1.xpose.msra.mxu0 0.0
    %1013 = vmatprep.subr.mxu0 0.0
    %1014 = vmatpush1.xpose.msra.mxu0 0.0
    %1015 = vmatprep.subr.mxu0 0.0
    %1016 = vmatpush1.xpose.msra.mxu0 0.0
    %1017 = vmatprep.subr.mxu0 0.0
    %1018 = vmatpush1.xpose.msra.mxu0 0.0
    %1019 = vmatprep.subr.mxu0 0.0
    %1020 = vmatpush1.xpose.msra.mxu0 0.0
    %1021 = vmatprep.subr.mxu0 0.0
    %1022 = vmatpush1.xpose.msra.mxu0 0.0
    %1023 = vmatprep.subr.mxu0 0.0
    %1024 = vmatpush1.xpose.msra.mxu0 0.0
    %1025 = vmatprep.subr.mxu0 0.0
    %1026 = vmatpush1.xpose.msra.mxu0 0.0
    %1027 = vmatprep.subr.mxu0 0.0
    %1028 = vmatpush1.xpose.msra.mxu0 0.0
    %1029 = vmatprep.subr.mxu0 0.0
    %1030 = vmatpush1.xpose.msra.mxu0 0.0
    %1031 = vmatprep.subr.mxu0 0.0
    %1032 = vmatpush1.xpose.msra.mxu0 0.0
    %1033 = vmatprep.mubr.f32.mxu0 0.0
    %1034 = vmatmul.mubr.f32.gmra.mrb[0].mxu0 %v955
    %v1035 = vpop.f32.mrb[0].mxu0
    %v1036 = vadd.f32 0.0, %v1035
    %v1037 = vpop.f32.mrb[0].mxu0
    %1038 = vdwg.mxu0
    %v1040 = vsel %vm777, %v355, 0
    %v1043 = vsel %vm777, %v942, 0
    %v1046 = vsel %vm777, %v943, 0
    %v1049 = vsel %vm777, %v944, 0
    %v1052 = vsel %vm777, %v945, 0
    %1054 = vmatprep.subr.mxu0 0.0
    %1055 = vmatpush1.xpose.msra.mxu0 %v1043
    %1056 = vmatprep.subr.mxu0 0.0
    %1057 = vmatpush1.xpose.msra.mxu0 %v1046
    %1058 = vmatprep.subr.mxu0 0.0
    %1059 = vmatpush1.xpose.msra.mxu0 %v1049
    %1060 = vmatprep.subr.mxu0 0.0
    %1061 = vmatpush1.xpose.msra.mxu0 %v1052
    %1062 = vmatprep.subr.mxu0 0.0
    %1063 = vmatpush1.xpose.msra.mxu0 0.0
    %1064 = vmatprep.subr.mxu0 0.0
    %1065 = vmatpush1.xpose.msra.mxu0 0.0
    %1066 = vmatprep.subr.mxu0 0.0
    %1067 = vmatpush1.xpose.msra.mxu0 0.0
    %1068 = vmatprep.subr.mxu0 0.0
    %1069 = vmatpush1.xpose.msra.mxu0 0.0
    %1070 = vmatprep.subr.mxu0 0.0
    %1071 = vmatpush1.xpose.msra.mxu0 0.0
    %1072 = vmatprep.subr.mxu0 0.0
    %1073 = vmatpush1.xpose.msra.mxu0 0.0
    %1074 = vmatprep.subr.mxu0 0.0
    %1075 = vmatpush1.xpose.msra.mxu0 0.0
    %1076 = vmatprep.subr.mxu0 0.0
    %1077 = vmatpush1.xpose.msra.mxu0 0.0
    %1078 = vmatprep.subr.mxu0 0.0
    %1079 = vmatpush1.xpose.msra.mxu0 0.0
    %1080 = vmatprep.subr.mxu0 0.0
    %1081 = vmatpush1.xpose.msra.mxu0 0.0
    %1082 = vmatprep.subr.mxu0 0.0
    %1083 = vmatpush1.xpose.msra.mxu0 0.0
    %1084 = vmatprep.subr.mxu0 0.0
    %1085 = vmatpush1.xpose.msra.mxu0 0.0
    %1086 = vmatprep.subr.mxu0 0.0
    %1087 = vmatpush1.xpose.msra.mxu0 0.0
    %1088 = vmatprep.subr.mxu0 0.0
    %1089 = vmatpush1.xpose.msra.mxu0 0.0
    %1090 = vmatprep.subr.mxu0 0.0
    %1091 = vmatpush1.xpose.msra.mxu0 0.0
    %1092 = vmatprep.subr.mxu0 0.0
    %1093 = vmatpush1.xpose.msra.mxu0 0.0
    %1094 = vmatprep.subr.mxu0 0.0
    %1095 = vmatpush1.xpose.msra.mxu0 0.0
    %1096 = vmatprep.subr.mxu0 0.0
    %1097 = vmatpush1.xpose.msra.mxu0 0.0
    %1098 = vmatprep.subr.mxu0 0.0
    %1099 = vmatpush1.xpose.msra.mxu0 0.0
    %1100 = vmatprep.subr.mxu0 0.0
    %1101 = vmatpush1.xpose.msra.mxu0 0.0
    %1102 = vmatprep.subr.mxu0 0.0
    %1103 = vmatpush1.xpose.msra.mxu0 0.0
    %1104 = vmatprep.subr.mxu0 0.0
    %1105 = vmatpush1.xpose.msra.mxu0 0.0
    %1106 = vmatprep.subr.mxu0 0.0
    %1107 = vmatpush1.xpose.msra.mxu0 0.0
    %1108 = vmatprep.subr.mxu0 0.0
    %1109 = vmatpush1.xpose.msra.mxu0 0.0
    %1110 = vmatprep.subr.mxu0 0.0
    %1111 = vmatpush1.xpose.msra.mxu0 0.0
    %1112 = vmatprep.subr.mxu0 0.0
    %1113 = vmatpush1.xpose.msra.mxu0 0.0
    %1114 = vmatprep.subr.mxu0 0.0
    %1115 = vmatpush1.xpose.msra.mxu0 0.0
    %1116 = vmatprep.subr.mxu0 0.0
    %1117 = vmatpush1.xpose.msra.mxu0 0.0
    %1118 = vmatprep.mubr.f32.mxu0 0.0
    %1119 = vmatmul.mubr.f32.gmra.mrb[0].mxu0 %v1040
    %v1120 = vpop.f32.mrb[0].mxu0
    %v1121 = vadd.f32 0.0, %v1120
    %v1122 = vpop.f32.mrb[0].mxu0
    %1123 = vdwg.mxu0
    %v1125 = vsel %vm777, %v360, 0
    %v1128 = vsel %vm777, %v946, 0
    %v1131 = vsel %vm777, %v947, 0
    %v1134 = vsel %vm777, %v948, 0
    %v1137 = vsel %vm777, %v949, 0
    %1139 = vmatprep.subr.mxu0 0.0
    %1140 = vmatpush1.xpose.msra.mxu0 %v1128
    %1141 = vmatprep.subr.mxu0 0.0
    %1142 = vmatpush1.xpose.msra.mxu0 %v1131
    %1143 = vmatprep.subr.mxu0 0.0
    %1144 = vmatpush1.xpose.msra.mxu0 %v1134
    %1145 = vmatprep.subr.mxu0 0.0
    %1146 = vmatpush1.xpose.msra.mxu0 %v1137
    %1147 = vmatprep.subr.mxu0 0.0
    %1148 = vmatpush1.xpose.msra.mxu0 0.0
    %1149 = vmatprep.subr.mxu0 0.0
    %1150 = vmatpush1.xpose.msra.mxu0 0.0
    %1151 = vmatprep.subr.mxu0 0.0
    %1152 = vmatpush1.xpose.msra.mxu0 0.0
    %1153 = vmatprep.subr.mxu0 0.0
    %1154 = vmatpush1.xpose.msra.mxu0 0.0
    %1155 = vmatprep.subr.mxu0 0.0
    %1156 = vmatpush1.xpose.msra.mxu0 0.0
    %1157 = vmatprep.subr.mxu0 0.0
    %1158 = vmatpush1.xpose.msra.mxu0 0.0
    %1159 = vmatprep.subr.mxu0 0.0
    %1160 = vmatpush1.xpose.msra.mxu0 0.0
    %1161 = vmatprep.subr.mxu0 0.0
    %1162 = vmatpush1.xpose.msra.mxu0 0.0
    %1163 = vmatprep.subr.mxu0 0.0
    %1164 = vmatpush1.xpose.msra.mxu0 0.0
    %1165 = vmatprep.subr.mxu0 0.0
    %1166 = vmatpush1.xpose.msra.mxu0 0.0
    %1167 = vmatprep.subr.mxu0 0.0
    %1168 = vmatpush1.xpose.msra.mxu0 0.0
    %1169 = vmatprep.subr.mxu0 0.0
    %1170 = vmatpush1.xpose.msra.mxu0 0.0
    %1171 = vmatprep.subr.mxu0 0.0
    %1172 = vmatpush1.xpose.msra.mxu0 0.0
    %1173 = vmatprep.subr.mxu0 0.0
    %1174 = vmatpush1.xpose.msra.mxu0 0.0
    %1175 = vmatprep.subr.mxu0 0.0
    %1176 = vmatpush1.xpose.msra.mxu0 0.0
    %1177 = vmatprep.subr.mxu0 0.0
    %1178 = vmatpush1.xpose.msra.mxu0 0.0
    %1179 = vmatprep.subr.mxu0 0.0
    %1180 = vmatpush1.xpose.msra.mxu0 0.0
    %1181 = vmatprep.subr.mxu0 0.0
    %1182 = vmatpush1.xpose.msra.mxu0 0.0
    %1183 = vmatprep.subr.mxu0 0.0
    %1184 = vmatpush1.xpose.msra.mxu0 0.0
    %1185 = vmatprep.subr.mxu0 0.0
    %1186 = vmatpush1.xpose.msra.mxu0 0.0
    %1187 = vmatprep.subr.mxu0 0.0
    %1188 = vmatpush1.xpose.msra.mxu0 0.0
    %1189 = vmatprep.subr.mxu0 0.0
    %1190 = vmatpush1.xpose.msra.mxu0 0.0
    %1191 = vmatprep.subr.mxu0 0.0
    %1192 = vmatpush1.xpose.msra.mxu0 0.0
    %1193 = vmatprep.subr.mxu0 0.0
    %1194 = vmatpush1.xpose.msra.mxu0 0.0
    %1195 = vmatprep.subr.mxu0 0.0
    %1196 = vmatpush1.xpose.msra.mxu0 0.0
    %1197 = vmatprep.subr.mxu0 0.0
    %1198 = vmatpush1.xpose.msra.mxu0 0.0
    %1199 = vmatprep.subr.mxu0 0.0
    %1200 = vmatpush1.xpose.msra.mxu0 0.0
    %1201 = vmatprep.subr.mxu0 0.0
    %1202 = vmatpush1.xpose.msra.mxu0 0.0
    %1203 = vmatprep.mubr.f32.mxu0 0.0
    %1204 = vmatmul.mubr.f32.gmra.mrb[0].mxu0 %v1125
    %v1205 = vpop.f32.mrb[0].mxu0
    %v1206 = vadd.f32 0.0, %v1205
    %v1207 = vpop.f32.mrb[0].mxu0
    %1208 = vdwg.mxu0
    %v1210 = vsel %vm777, %v365, 0
    %v1213 = vsel %vm777, %v950, 0
    %v1216 = vsel %vm777, %v951, 0
    %v1219 = vsel %vm777, %v952, 0
    %v1222 = vsel %vm777, %v953, 0
    %1224 = vmatprep.subr.mxu0 0.0
    %1225 = vmatpush1.xpose.msra.mxu0 %v1213
    %1226 = vmatprep.subr.mxu0 0.0
    %1227 = vmatpush1.xpose.msra.mxu0 %v1216
    %1228 = vmatprep.subr.mxu0 0.0
    %1229 = vmatpush1.xpose.msra.mxu0 %v1219
    %1230 = vmatprep.subr.mxu0 0.0
    %1231 = vmatpush1.xpose.msra.mxu0 %v1222
    %1232 = vmatprep.subr.mxu0 0.0
    %1233 = vmatpush1.xpose.msra.mxu0 0.0
    %1234 = vmatprep.subr.mxu0 0.0
    %1235 = vmatpush1.xpose.msra.mxu0 0.0
    %1236 = vmatprep.subr.mxu0 0.0
    %1237 = vmatpush1.xpose.msra.mxu0 0.0
    %1238 = vmatprep.subr.mxu0 0.0
    %1239 = vmatpush1.xpose.msra.mxu0 0.0
    %1240 = vmatprep.subr.mxu0 0.0
    %1241 = vmatpush1.xpose.msra.mxu0 0.0
    %1242 = vmatprep.subr.mxu0 0.0
    %1243 = vmatpush1.xpose.msra.mxu0 0.0
    %1244 = vmatprep.subr.mxu0 0.0
    %1245 = vmatpush1.xpose.msra.mxu0 0.0
    %1246 = vmatprep.subr.mxu0 0.0
    %1247 = vmatpush1.xpose.msra.mxu0 0.0
    %1248 = vmatprep.subr.mxu0 0.0
    %1249 = vmatpush1.xpose.msra.mxu0 0.0
    %1250 = vmatprep.subr.mxu0 0.0
    %1251 = vmatpush1.xpose.msra.mxu0 0.0
    %1252 = vmatprep.subr.mxu0 0.0
    %1253 = vmatpush1.xpose.msra.mxu0 0.0
    %1254 = vmatprep.subr.mxu0 0.0
    %1255 = vmatpush1.xpose.msra.mxu0 0.0
    %1256 = vmatprep.subr.mxu0 0.0
    %1257 = vmatpush1.xpose.msra.mxu0 0.0
    %1258 = vmatprep.subr.mxu0 0.0
    %1259 = vmatpush1.xpose.msra.mxu0 0.0
    %1260 = vmatprep.subr.mxu0 0.0
    %1261 = vmatpush1.xpose.msra.mxu0 0.0
    %1262 = vmatprep.subr.mxu0 0.0
    %1263 = vmatpush1.xpose.msra.mxu0 0.0
    %1264 = vmatprep.subr.mxu0 0.0
    %1265 = vmatpush1.xpose.msra.mxu0 0.0
    %1266 = vmatprep.subr.mxu0 0.0
    %1267 = vmatpush1.xpose.msra.mxu0 0.0
    %1268 = vmatprep.subr.mxu0 0.0
    %1269 = vmatpush1.xpose.msra.mxu0 0.0
    %1270 = vmatprep.subr.mxu0 0.0
    %1271 = vmatpush1.xpose.msra.mxu0 0.0
    %1272 = vmatprep.subr.mxu0 0.0
    %1273 = vmatpush1.xpose.msra.mxu0 0.0
    %1274 = vmatprep.subr.mxu0 0.0
    %1275 = vmatpush1.xpose.msra.mxu0 0.0
    %1276 = vmatprep.subr.mxu0 0.0
    %1277 = vmatpush1.xpose.msra.mxu0 0.0
    %1278 = vmatprep.subr.mxu0 0.0
    %1279 = vmatpush1.xpose.msra.mxu0 0.0
    %1280 = vmatprep.subr.mxu0 0.0
    %1281 = vmatpush1.xpose.msra.mxu0 0.0
    %1282 = vmatprep.subr.mxu0 0.0
    %1283 = vmatpush1.xpose.msra.mxu0 0.0
    %1284 = vmatprep.subr.mxu0 0.0
    %1285 = vmatpush1.xpose.msra.mxu0 0.0
    %1286 = vmatprep.subr.mxu0 0.0
    %1287 = vmatpush1.xpose.msra.mxu0 0.0
    %1288 = vmatprep.mubr.f32.mxu0 0.0
    %1289 = vmatmul.mubr.f32.gmra.mrb[0].mxu0 %v1210
    %v1290 = vpop.f32.mrb[0].mxu0
    %v1291 = vadd.f32 0.0, %v1290
    %v1292 = vpop.f32.mrb[0].mxu0
    %1293 = vdwg.mxu0
    %v1294 = vld [vmem:[#allocation10] sm:$0xff]
    %v1295 = vld [vmem:[#allocation10 + $0x8] sm:$0xff]
    %v1296 = vld [vmem:[#allocation10 + $0x10] sm:$0xff]
    %v1297 = vld [vmem:[#allocation10 + $0x18] sm:$0xff]
    %v1298 = vld [vmem:[%s9] sm:$0x1]
    %v1300 = vlaneseq
    %v1301 = vshrl.u32 %v1300, 7
    %v1302 = vsub.s32 0, %v1301
    %v1303 = vrot.slane %v1298, %v1302
    %1305 = vxpose.xlu0.b32.start [1/16] %v1036, 128
    %1306 = vxpose.xlu0.b32.cont [2/16] %v1121, 128
    %1307 = vxpose.xlu0.b32.cont [3/16] %v1206, 128
    %1308 = vxpose.xlu0.b32.cont [4/16] %v1291, 128
    %1309 = vxpose.xlu0.b32.cont [5/16] 0.0, 128
    %1310 = vxpose.xlu0.b32.cont [6/16] 0.0, 128
    %1311 = vxpose.xlu0.b32.cont [7/16] 0.0, 128
    %1312 = vxpose.xlu0.b32.cont [8/16] 0.0, 128
    %1313 = vxpose.xlu0.b32.cont [9/16] 0.0, 128
    %1314 = vxpose.xlu0.b32.cont [10/16] 0.0, 128
    %1315 = vxpose.xlu0.b32.cont [11/16] 0.0, 128
    %1316 = vxpose.xlu0.b32.cont [12/16] 0.0, 128
    %1317 = vxpose.xlu0.b32.cont [13/16] 0.0, 128
    %1318 = vxpose.xlu0.b32.cont [14/16] 0.0, 128
    %1319 = vxpose.xlu0.b32.cont [15/16] 0.0, 128
    %1320 = vxpose.xlu0.b32.end [16/16] 0.0, 128
    %v1321 = vpop.trf.xlu0
    %v1322 = vpop.trf.xlu0
    %v1323 = vpop.trf.xlu0
    %v1324 = vpop.trf.xlu0
    %v1325 = vpop.trf.xlu0
    %v1326 = vpop.trf.xlu0
    %v1327 = vpop.trf.xlu0
    %v1328 = vpop.trf.xlu0
    %v1329 = vpop.trf.xlu0
    %v1330 = vpop.trf.xlu0
    %v1331 = vpop.trf.xlu0
    %v1332 = vpop.trf.xlu0
    %v1333 = vpop.trf.xlu0
    %v1334 = vpop.trf.xlu0
    %v1335 = vpop.trf.xlu0
    %v1336 = vpop.trf.xlu0
    %v1338 = vsel %vm777, %v1321, 0
    %v1341 = vsel %vm777, %v1322, 0
    %v1344 = vsel %vm777, %v1323, 0
    %v1347 = vsel %vm777, %v1324, 0
    %1349 = vmatprep.subr.mxu0 0.0
    %1350 = vmatpush1.msra.mxu0 %v1294
    %1351 = vmatprep.subr.mxu0 0.0
    %1352 = vmatpush1.msra.mxu0 %v1295
    %1353 = vmatprep.subr.mxu0 0.0
    %1354 = vmatpush1.msra.mxu0 %v1296
    %1355 = vmatprep.subr.mxu0 0.0
    %1356 = vmatpush1.msra.mxu0 %v1297
    %1357 = vmatprep.subr.mxu0 0.0
    %1358 = vmatpush1.msra.mxu0 0.0
    %1359 = vmatprep.subr.mxu0 0.0
    %1360 = vmatpush1.msra.mxu0 0.0
    %1361 = vmatprep.subr.mxu0 0.0
    %1362 = vmatpush1.msra.mxu0 0.0
    %1363 = vmatprep.subr.mxu0 0.0
    %1364 = vmatpush1.msra.mxu0 0.0
    %1365 = vmatprep.subr.mxu0 0.0
    %1366 = vmatpush1.msra.mxu0 0.0
    %1367 = vmatprep.subr.mxu0 0.0
    %1368 = vmatpush1.msra.mxu0 0.0
    %1369 = vmatprep.subr.mxu0 0.0
    %1370 = vmatpush1.msra.mxu0 0.0
    %1371 = vmatprep.subr.mxu0 0.0
    %1372 = vmatpush1.msra.mxu0 0.0
    %1373 = vmatprep.subr.mxu0 0.0
    %1374 = vmatpush1.msra.mxu0 0.0
    %1375 = vmatprep.subr.mxu0 0.0
    %1376 = vmatpush1.msra.mxu0 0.0
    %1377 = vmatprep.subr.mxu0 0.0
    %1378 = vmatpush1.msra.mxu0 0.0
    %1379 = vmatprep.subr.mxu0 0.0
    %1380 = vmatpush1.msra.mxu0 0.0
    %1381 = vmatprep.subr.mxu0 0.0
    %1382 = vmatpush1.msra.mxu0 0.0
    %1383 = vmatprep.subr.mxu0 0.0
    %1384 = vmatpush1.msra.mxu0 0.0
    %1385 = vmatprep.subr.mxu0 0.0
    %1386 = vmatpush1.msra.mxu0 0.0
    %1387 = vmatprep.subr.mxu0 0.0
    %1388 = vmatpush1.msra.mxu0 0.0
    %1389 = vmatprep.subr.mxu0 0.0
    %1390 = vmatpush1.msra.mxu0 0.0
    %1391 = vmatprep.subr.mxu0 0.0
    %1392 = vmatpush1.msra.mxu0 0.0
    %1393 = vmatprep.subr.mxu0 0.0
    %1394 = vmatpush1.msra.mxu0 0.0
    %1395 = vmatprep.subr.mxu0 0.0
    %1396 = vmatpush1.msra.mxu0 0.0
    %1397 = vmatprep.subr.mxu0 0.0
    %1398 = vmatpush1.msra.mxu0 0.0
    %1399 = vmatprep.subr.mxu0 0.0
    %1400 = vmatpush1.msra.mxu0 0.0
    %1401 = vmatprep.subr.mxu0 0.0
    %1402 = vmatpush1.msra.mxu0 0.0
    %1403 = vmatprep.subr.mxu0 0.0
    %1404 = vmatpush1.msra.mxu0 0.0
    %1405 = vmatprep.subr.mxu0 0.0
    %1406 = vmatpush1.msra.mxu0 0.0
    %1407 = vmatprep.subr.mxu0 0.0
    %1408 = vmatpush1.msra.mxu0 0.0
    %1409 = vmatprep.subr.mxu0 0.0
    %1410 = vmatpush1.msra.mxu0 0.0
    %1411 = vmatprep.subr.mxu0 0.0
    %1412 = vmatpush1.msra.mxu0 0.0
    %1413 = vmatprep.mubr.f32.mxu0 0.0
    %1414 = vmatmul.mubr.f32.gmra.mrb[0].mxu0 %v1338
    %v1415 = vpop.f32.mrb[0].mxu0
    %v1416 = vadd.f32 %v1303, %v1415
    %v1417 = vpop.f32.mrb[0].mxu0
    %1418 = vmatprep.mubr.f32.mxu0 0.0
    %1419 = vmatmul.mubr.f32.gmra.mrb[0].mxu0 %v1341
    %v1420 = vpop.f32.mrb[0].mxu0
    %v1421 = vadd.f32 %v1303, %v1420
    %v1422 = vpop.f32.mrb[0].mxu0
    %1423 = vmatprep.mubr.f32.mxu0 0.0
    %1424 = vmatmul.mubr.f32.gmra.mrb[0].mxu0 %v1344
    %v1425 = vpop.f32.mrb[0].mxu0
    %v1426 = vadd.f32 %v1303, %v1425
    %v1427 = vpop.f32.mrb[0].mxu0
    %1428 = vmatprep.mubr.f32.mxu0 0.0
    %1429 = vmatmul.mubr.f32.gmra.mrb[0].mxu0 %v1347
    %v1430 = vpop.f32.mrb[0].mxu0
    %v1431 = vadd.f32 %v1303, %v1430
    %v1432 = vpop.f32.mrb[0].mxu0
    %1433 = vdwg.mxu0
    %1434 = vadd.xlane.f32.xlu0 %v1416
    %v1435 = vpop.xlane.xlu0 %1434
    %1436 = vadd.xlane.f32.xlu0 %v1421
    %v1437 = vpop.xlane.xlu0 %1436
    %1438 = vadd.xlane.f32.xlu0 %v1426
    %v1439 = vpop.xlane.xlu0 %1438
    %1440 = vadd.xlane.f32.xlu0 %v1431
    %v1441 = vpop.xlane.xlu0 %1440
    %v1442 = vmul.f32 %v1435, 0.03125
    %v1443 = vmul.f32 %v1437, 0.03125
    %v1444 = vmul.f32 %v1439, 0.03125
    %v1445 = vmul.f32 %v1441, 0.03125
    %v1446 = vmul.f32 %v1416, %v1416
    %v1447 = vmul.f32 %v1421, %v1421
    %v1448 = vmul.f32 %v1426, %v1426
    %v1449 = vmul.f32 %v1431, %v1431
    %1450 = vadd.xlane.f32.xlu0 %v1446
    %v1451 = vpop.xlane.xlu0 %1450
    %1452 = vadd.xlane.f32.xlu0 %v1447
    %v1453 = vpop.xlane.xlu0 %1452
    %1454 = vadd.xlane.f32.xlu0 %v1448
    %v1455 = vpop.xlane.xlu0 %1454
    %1456 = vadd.xlane.f32.xlu0 %v1449
    %v1457 = vpop.xlane.xlu0 %1456
    %v1458 = vmul.f32 %v1451, 0.03125
    %v1459 = vmul.f32 %v1453, 0.03125
    %v1460 = vmul.f32 %v1455, 0.03125
    %v1461 = vmul.f32 %v1457, 0.03125
    %v1462 = vmul.f32 %v1442, %v1442
    %v1463 = vmul.f32 %v1443, %v1443
    %v1464 = vmul.f32 %v1444, %v1444
    %v1465 = vmul.f32 %v1445, %v1445
    %v1466 = vsub.f32 %v1458, %v1462
    %v1467 = vsub.f32 %v1459, %v1463
    %v1468 = vsub.f32 %v1460, %v1464
    %v1469 = vsub.f32 %v1461, %v1465
    %v1470 = vmax.f32 %v1466, 0.0
    %v1471 = vmax.f32 %v1467, 0.0
    %v1472 = vmax.f32 %v1468, 0.0
    %v1473 = vmax.f32 %v1469, 0.0
    %v1474 = vsub.f32 %v1416, %v1442
    %v1475 = vsub.f32 %v1421, %v1443
    %v1476 = vsub.f32 %v1426, %v1444
    %v1477 = vsub.f32 %v1431, %v1445
    %v1478 = vadd.f32 %v1470, 1e-05
    %v1479 = vadd.f32 %v1471, 1e-05
    %v1480 = vadd.f32 %v1472, 1e-05
    %v1481 = vadd.f32 %v1473, 1e-05
    %v1482 = vrsqrt.pop %v1478
    %v1483 = vrsqrt.pop %v1479
    %v1484 = vrsqrt.pop %v1480
    %v1485 = vrsqrt.pop %v1481
    %v1486 = vmul.f32 %v1474, %v1482
    %v1487 = vmul.f32 %v1475, %v1483
    %v1488 = vmul.f32 %v1476, %v1484
    %v1489 = vmul.f32 %v1477, %v1485
    %v1490 = vld [vmem:[%s10] sm:$0x1]
    %v1492 = vlaneseq
    %v1493 = vshrl.u32 %v1492, 7
    %v1494 = vsub.s32 0, %v1493
    %v1495 = vrot.slane %v1490, %v1494
    %v1497 = vmul.f32 %v1486, %v1495
    %v1498 = vmul.f32 %v1487, %v1495
    %v1499 = vmul.f32 %v1488, %v1495
    %v1500 = vmul.f32 %v1489, %v1495
    %v1501 = vld [vmem:[%s11] sm:$0x1]
    %v1503 = vlaneseq
    %v1504 = vshrl.u32 %v1503, 7
    %v1505 = vsub.s32 0, %v1504
    %v1506 = vrot.slane %v1501, %v1505
    %v1508 = vadd.f32 %v1497, %v1506
    %v1509 = vadd.f32 %v1498, %v1506
    %v1510 = vadd.f32 %v1499, %v1506
    %v1511 = vadd.f32 %v1500, %v1506
    %v1512 = vld [vmem:[%s12] sm:$0xff]
    %v1513 = vld [vmem:[%s12 + $0x8] sm:$0xff]
    %v1514 = vld [vmem:[%s12 + $0x10] sm:$0xff]
    %v1515 = vld [vmem:[%s12 + $0x18] sm:$0xff]
    %v1516 = vld [vmem:[%s12 + $0x20] sm:$0xff]
    %v1517 = vld [vmem:[%s12 + $0x28] sm:$0xff]
    %v1518 = vld [vmem:[%s12 + $0x30] sm:$0xff]
    %v1519 = vld [vmem:[%s12 + $0x38] sm:$0xff]
    %v1520 = vld [vmem:[%s12 + $0x40] sm:$0xff]
    %v1521 = vld [vmem:[%s12 + $0x48] sm:$0xff]
    %v1522 = vld [vmem:[%s12 + $0x50] sm:$0xff]
    %v1523 = vld [vmem:[%s12 + $0x58] sm:$0xff]
    %v1524 = vld [vmem:[%s12 + $0x60] sm:$0xff]
    %v1525 = vld [vmem:[%s12 + $0x68] sm:$0xff]
    %v1526 = vld [vmem:[%s12 + $0x70] sm:$0xff]
    %v1527 = vld [vmem:[%s12 + $0x78] sm:$0xff]
    %v1528 = vld [vmem:[%s13] sm:$0x1]
    %v1530 = vlaneseq
    %v1531 = vshrl.u32 %v1530, 7
    %v1532 = vsub.s32 0, %v1531
    %v1533 = vrot.slane %v1528, %v1532
    %1535 = vmatprep.subr.mxu0 0.0
    %1536 = vmatpush1.msra.mxu0 %v1512
    %1537 = vmatprep.subr.mxu0 0.0
    %1538 = vmatpush1.msra.mxu0 %v1513
    %1539 = vmatprep.subr.mxu0 0.0
    %1540 = vmatpush1.msra.mxu0 %v1514
    %1541 = vmatprep.subr.mxu0 0.0
    %1542 = vmatpush1.msra.mxu0 %v1515
    %1543 = vmatprep.subr.mxu0 0.0
    %1544 = vmatpush1.msra.mxu0 %v1516
    %1545 = vmatprep.subr.mxu0 0.0
    %1546 = vmatpush1.msra.mxu0 %v1517
    %1547 = vmatprep.subr.mxu0 0.0
    %1548 = vmatpush1.msra.mxu0 %v1518
    %1549 = vmatprep.subr.mxu0 0.0
    %1550 = vmatpush1.msra.mxu0 %v1519
    %1551 = vmatprep.subr.mxu0 0.0
    %1552 = vmatpush1.msra.mxu0 %v1520
    %1553 = vmatprep.subr.mxu0 0.0
    %1554 = vmatpush1.msra.mxu0 %v1521
    %1555 = vmatprep.subr.mxu0 0.0
    %1556 = vmatpush1.msra.mxu0 %v1522
    %1557 = vmatprep.subr.mxu0 0.0
    %1558 = vmatpush1.msra.mxu0 %v1523
    %1559 = vmatprep.subr.mxu0 0.0
    %1560 = vmatpush1.msra.mxu0 %v1524
    %1561 = vmatprep.subr.mxu0 0.0
    %1562 = vmatpush1.msra.mxu0 %v1525
    %1563 = vmatprep.subr.mxu0 0.0
    %1564 = vmatpush1.msra.mxu0 %v1526
    %1565 = vmatprep.subr.mxu0 0.0
    %1566 = vmatpush1.msra.mxu0 %v1527
    %1567 = vmatprep.subr.mxu0 0.0
    %1568 = vmatpush1.msra.mxu0 0.0
    %1569 = vmatprep.subr.mxu0 0.0
    %1570 = vmatpush1.msra.mxu0 0.0
    %1571 = vmatprep.subr.mxu0 0.0
    %1572 = vmatpush1.msra.mxu0 0.0
    %1573 = vmatprep.subr.mxu0 0.0
    %1574 = vmatpush1.msra.mxu0 0.0
    %1575 = vmatprep.subr.mxu0 0.0
    %1576 = vmatpush1.msra.mxu0 0.0
    %1577 = vmatprep.subr.mxu0 0.0
    %1578 = vmatpush1.msra.mxu0 0.0
    %1579 = vmatprep.subr.mxu0 0.0
    %1580 = vmatpush1.msra.mxu0 0.0
    %1581 = vmatprep.subr.mxu0 0.0
    %1582 = vmatpush1.msra.mxu0 0.0
    %1583 = vmatprep.subr.mxu0 0.0
    %1584 = vmatpush1.msra.mxu0 0.0
    %1585 = vmatprep.subr.mxu0 0.0
    %1586 = vmatpush1.msra.mxu0 0.0
    %1587 = vmatprep.subr.mxu0 0.0
    %1588 = vmatpush1.msra.mxu0 0.0
    %1589 = vmatprep.subr.mxu0 0.0
    %1590 = vmatpush1.msra.mxu0 0.0
    %1591 = vmatprep.subr.mxu0 0.0
    %1592 = vmatpush1.msra.mxu0 0.0
    %1593 = vmatprep.subr.mxu0 0.0
    %1594 = vmatpush1.msra.mxu0 0.0
    %1595 = vmatprep.subr.mxu0 0.0
    %1596 = vmatpush1.msra.mxu0 0.0
    %1597 = vmatprep.subr.mxu0 0.0
    %1598 = vmatpush1.msra.mxu0 0.0
    %1599 = vmatprep.mubr.f32.mxu0 0.0
    %1600 = vmatmul.mubr.f32.gmra.mrb[0].mxu0 %v1508
    %v1601 = vpop.f32.mrb[0].mxu0
    %v1602 = vadd.f32 %v1533, %v1601
    %v1603 = vpop.f32.mrb[0].mxu0
    %1604 = vmatprep.mubr.f32.mxu0 0.0
    %1605 = vmatmul.mubr.f32.gmra.mrb[0].mxu0 %v1509
    %v1606 = vpop.f32.mrb[0].mxu0
    %v1607 = vadd.f32 %v1533, %v1606
    %v1608 = vpop.f32.mrb[0].mxu0
    %1609 = vmatprep.mubr.f32.mxu0 0.0
    %1610 = vmatmul.mubr.f32.gmra.mrb[0].mxu0 %v1510
    %v1611 = vpop.f32.mrb[0].mxu0
    %v1612 = vadd.f32 %v1533, %v1611
    %v1613 = vpop.f32.mrb[0].mxu0
    %1614 = vmatprep.mubr.f32.mxu0 0.0
    %1615 = vmatmul.mubr.f32.gmra.mrb[0].mxu0 %v1511
    %v1616 = vpop.f32.mrb[0].mxu0
    %v1617 = vadd.f32 %v1533, %v1616
    %v1618 = vpop.f32.mrb[0].mxu0
    %1619 = vdwg.mxu0
    %v1620 = vmul.f32 %v1602, 0.5
    %v1621 = vmul.f32 %v1607, 0.5
    %v1622 = vmul.f32 %v1612, 0.5
    %v1623 = vmul.f32 %v1617, 0.5
    %v1624 = vmul.f32 %v1602, 0.70710677
    %v1625 = vmul.f32 %v1607, 0.70710677
    %v1626 = vmul.f32 %v1612, 0.70710677
    %v1627 = vmul.f32 %v1617, 0.70710677
    %v1628 = verf.f32.pop %v1624
    %v1629 = verf.f32.pop %v1625
    %v1630 = verf.f32.pop %v1626
    %v1631 = verf.f32.pop %v1627
    %v1632 = vadd.f32 %v1628, 1.0
    %v1633 = vadd.f32 %v1629, 1.0
    %v1634 = vadd.f32 %v1630, 1.0
    %v1635 = vadd.f32 %v1631, 1.0
    %v1636 = vmul.f32 %v1620, %v1632
    %v1637 = vmul.f32 %v1621, %v1633
    %v1638 = vmul.f32 %v1622, %v1634
    %v1639 = vmul.f32 %v1623, %v1635
    %v1640 = vld [vmem:[%s14] sm:$0xff]
    %v1641 = vld [vmem:[%s14 + $0x8] sm:$0xff]
    %v1642 = vld [vmem:[%s14 + $0x10] sm:$0xff]
    %v1643 = vld [vmem:[%s14 + $0x18] sm:$0xff]
    %v1644 = vld [vmem:[%s14 + $0x20] sm:$0xff]
    %v1645 = vld [vmem:[%s14 + $0x28] sm:$0xff]
    %v1646 = vld [vmem:[%s14 + $0x30] sm:$0xff]
    %v1647 = vld [vmem:[%s14 + $0x38] sm:$0xff]
    %v1648 = vld [vmem:[%s14 + $0x40] sm:$0xff]
    %v1649 = vld [vmem:[%s14 + $0x48] sm:$0xff]
    %v1650 = vld [vmem:[%s14 + $0x50] sm:$0xff]
    %v1651 = vld [vmem:[%s14 + $0x58] sm:$0xff]
    %v1652 = vld [vmem:[%s14 + $0x60] sm:$0xff]
    %v1653 = vld [vmem:[%s14 + $0x68] sm:$0xff]
    %v1654 = vld [vmem:[%s14 + $0x70] sm:$0xff]
    %v1655 = vld [vmem:[%s14 + $0x78] sm:$0xff]
    %v1656 = vld [vmem:[%s15] sm:$0x1]
    %v1658 = vlaneseq
    %v1659 = vshrl.u32 %v1658, 7
    %v1660 = vsub.s32 0, %v1659
    %v1661 = vrot.slane %v1656, %v1660
    %1663 = vmatprep.subr.mxu0 0.0
    %1664 = vmatpush1.msra.mxu0 %v1640
    %1665 = vmatprep.subr.mxu0 0.0
    %1666 = vmatpush1.msra.mxu0 %v1641
    %1667 = vmatprep.subr.mxu0 0.0
    %1668 = vmatpush1.msra.mxu0 %v1642
    %1669 = vmatprep.subr.mxu0 0.0
    %1670 = vmatpush1.msra.mxu0 %v1643
    %1671 = vmatprep.subr.mxu0 0.0
    %1672 = vmatpush1.msra.mxu0 %v1644
    %1673 = vmatprep.subr.mxu0 0.0
    %1674 = vmatpush1.msra.mxu0 %v1645
    %1675 = vmatprep.subr.mxu0 0.0
    %1676 = vmatpush1.msra.mxu0 %v1646
    %1677 = vmatprep.subr.mxu0 0.0
    %1678 = vmatpush1.msra.mxu0 %v1647
    %1679 = vmatprep.subr.mxu0 0.0
    %1680 = vmatpush1.msra.mxu0 %v1648
    %1681 = vmatprep.subr.mxu0 0.0
    %1682 = vmatpush1.msra.mxu0 %v1649
    %1683 = vmatprep.subr.mxu0 0.0
    %1684 = vmatpush1.msra.mxu0 %v1650
    %1685 = vmatprep.subr.mxu0 0.0
    %1686 = vmatpush1.msra.mxu0 %v1651
    %1687 = vmatprep.subr.mxu0 0.0
    %1688 = vmatpush1.msra.mxu0 %v1652
    %1689 = vmatprep.subr.mxu0 0.0
    %1690 = vmatpush1.msra.mxu0 %v1653
    %1691 = vmatprep.subr.mxu0 0.0
    %1692 = vmatpush1.msra.mxu0 %v1654
    %1693 = vmatprep.subr.mxu0 0.0
    %1694 = vmatpush1.msra.mxu0 %v1655
    %1695 = vmatprep.subr.mxu0 0.0
    %1696 = vmatpush1.msra.mxu0 0.0
    %1697 = vmatprep.subr.mxu0 0.0
    %1698 = vmatpush1.msra.mxu0 0.0
    %1699 = vmatprep.subr.mxu0 0.0
    %1700 = vmatpush1.msra.mxu0 0.0
    %1701 = vmatprep.subr.mxu0 0.0
    %1702 = vmatpush1.msra.mxu0 0.0
    %1703 = vmatprep.subr.mxu0 0.0
    %1704 = vmatpush1.msra.mxu0 0.0
    %1705 = vmatprep.subr.mxu0 0.0
    %1706 = vmatpush1.msra.mxu0 0.0
    %1707 = vmatprep.subr.mxu0 0.0
    %1708 = vmatpush1.msra.mxu0 0.0
    %1709 = vmatprep.subr.mxu0 0.0
    %1710 = vmatpush1.msra.mxu0 0.0
    %1711 = vmatprep.subr.mxu0 0.0
    %1712 = vmatpush1.msra.mxu0 0.0
    %1713 = vmatprep.subr.mxu0 0.0
    %1714 = vmatpush1.msra.mxu0 0.0
    %1715 = vmatprep.subr.mxu0 0.0
    %1716 = vmatpush1.msra.mxu0 0.0
    %1717 = vmatprep.subr.mxu0 0.0
    %1718 = vmatpush1.msra.mxu0 0.0
    %1719 = vmatprep.subr.mxu0 0.0
    %1720 = vmatpush1.msra.mxu0 0.0
    %1721 = vmatprep.subr.mxu0 0.0
    %1722 = vmatpush1.msra.mxu0 0.0
    %1723 = vmatprep.subr.mxu0 0.0
    %1724 = vmatpush1.msra.mxu0 0.0
    %1725 = vmatprep.subr.mxu0 0.0
    %1726 = vmatpush1.msra.mxu0 0.0
    %1727 = vmatprep.mubr.f32.mxu0 0.0
    %1728 = vmatmul.mubr.f32.gmra.mrb[0].mxu0 %v1636
    %v1729 = vpop.f32.mrb[0].mxu0
    %v1730 = vadd.f32 %v1661, %v1729
    %v1731 = vpop.f32.mrb[0].mxu0
    %1732 = vmatprep.mubr.f32.mxu0 0.0
    %1733 = vmatmul.mubr.f32.gmra.mrb[0].mxu0 %v1637
    %v1734 = vpop.f32.mrb[0].mxu0
    %v1735 = vadd.f32 %v1661, %v1734
    %v1736 = vpop.f32.mrb[0].mxu0
    %1737 = vmatprep.mubr.f32.mxu0 0.0
    %1738 = vmatmul.mubr.f32.gmra.mrb[0].mxu0 %v1638
    %v1739 = vpop.f32.mrb[0].mxu0
    %v1740 = vadd.f32 %v1661, %v1739
    %v1741 = vpop.f32.mrb[0].mxu0
    %1742 = vmatprep.mubr.f32.mxu0 0.0
    %1743 = vmatmul.mubr.f32.gmra.mrb[0].mxu0 %v1639
    %v1744 = vpop.f32.mrb[0].mxu0
    %v1745 = vadd.f32 %v1661, %v1744
    %v1746 = vpop.f32.mrb[0].mxu0
    %1747 = vdwg.mxu0
    %1748 = vst [vmem:[#allocation11] sm:$0xff] %v1730
    %1749 = vst [vmem:[#allocation11 + $0x8] sm:$0xff] %v1735
    %1750 = vst [vmem:[#allocation11 + $0x10] sm:$0xff] %v1740
    %1751 = vst [vmem:[#allocation11 + $0x18] sm:$0xff] %v1745
    // Predicated region
    $region86: #{tpu_custom_call.1} parent=1 // pred_check
      _
    $region87: #{tpu_custom_call.1} parent=1 // pred_check_branch
      %1753 = sbr.rel (0) target = $region89
    $region88: #{tpu_custom_call.1} parent=1 // pred_region
      %s1755 = ssub.s32 512, 512
      %1756 = vsyncadd [#allocation4], %s1755
      %s1757 = sshll.u32 [#allocation11], 4
      %s1758 = int_to_ptr.vmem [resolvable:$true] %s1757
      %1763 = dma.vmem_to_hbm [thread:$0]  %s1758, 512, %s16, [#allocation4], 128, 128, 8
    $region89: #{tpu_custom_call.1} parent=1 // pred_fallthru
      _
    // Predicated region
    $region90: #{tpu_custom_call.1} parent=1 // pred_check
      _
    $region91: #{tpu_custom_call.1} parent=1 // pred_check_branch
      %1765 = sbr.rel (0) target = $region93
    $region92: #{tpu_custom_call.1} parent=1 // pred_region
      %1766 = dma.done [#allocation4], 512
    $region93: #{tpu_custom_call.1} parent=1 // pred_fallthru
      _
    %1767 = vsyncpa [#allocation3], 1
    %1768 = vsyncpa [#allocation6], 1
    %1769 = vsyncpa [#allocation9], 1
    %1770 = vsyncpa [#allocation4], 1

</llo_original>
